<compile_context>
chip_gen: v7x
topology: tpu7x:2x2x1
jax: 0.10.0
libtpu: 0.0.40
codegen_flags: <defaults>
</compile_context>

<pallas_src>
import jax
import jax.numpy as jnp
from jax import lax
from jax.experimental import pallas as pl
from jax.experimental.pallas import tpu as pltpu


_VMEM_LIMIT_BYTES = 48 * 1024 * 1024  # < 64 MiB v7x physical, > v5e 16 MiB default


# ----------------------------- Pallas kernels ------------------------------

def _conv_relu_pool_kernel(p_ref, w_ref, b_ref, o_ref):
    """Fused conv-as-matmul + bias + ReLU + 2x2 max-pool (single grid step).

      p_ref: [4, tm, K] bf16  im2col patches, axis 0 = pool-window corner
      w_ref: [K, N]     bf16  conv weight as a matrix
      b_ref: [1, N]     f32   conv bias
      o_ref: [tm, N]    bf16  pooled conv output (rows = (b, hp, wp))
    """
    w = w_ref[...]
    y = jnp.dot(p_ref[0], w, preferred_element_type=jnp.float32)
    for c in range(1, 4):
        y = jnp.maximum(
            y, jnp.dot(p_ref[c], w, preferred_element_type=jnp.float32))
    # max over corners commutes with the (monotone) bias-add + ReLU epilogue.
    y = jnp.maximum(y + b_ref[...], 0.0)
    o_ref[...] = y.astype(o_ref.dtype)


def _fc_classifier_kernel(x_ref, wf_ref, bf_ref, wc_ref, bc_ref, o_ref):
    """logits = relu(x @ Wfc + bfc) @ Wcls + bcls, fully fused in VMEM."""
    h = jnp.dot(x_ref[...], wf_ref[...], preferred_element_type=jnp.float32)
    h = jnp.maximum(h + bf_ref[...], 0.0)
    logits = jnp.dot(h.astype(wc_ref.dtype), wc_ref[...],
                     preferred_element_type=jnp.float32)
    o_ref[...] = logits + bc_ref[...]


# ----------------------------- tiling helpers -------------------------------

def _round_up(x, m):
    return (x + m - 1) // m * m


def _cdiv(a, b):
    return (a + b - 1) // b


def _choose_m_tile(m, cap, min_tiles=2):
    """Pick (tm, padded_M).

    tm is a multiple of 8, <= cap, targets at least `min_tiles` grid steps
    (so both v7x TensorCores get work), and prefers a value that divides the
    (8-rounded) M exactly so the big corners tensor never needs jnp.pad.
    """
    m8 = _round_up(m, 8)
    target = max(8, min(cap, _round_up(_cdiv(m8, min_tiles), 8)))
    tm = target
    t = target
    while t >= max(8, target // 2):
        if m8 % t == 0:
            tm = t
            break
        t -= 8
    return tm, _round_up(m8, tm)


# ----------------------------- Pallas wrappers ------------------------------

def pallas_conv_relu_pool(corners, w_mat, b, *, tm_cap):
    """corners:[4,M,K] bf16, w_mat:[K,N] bf16, b:[N] f32 -> [M,N] bf16."""
    _, mp, k = corners.shape
    n = w_mat.shape[1]
    tm, mpad = _choose_m_tile(mp, tm_cap)
    if mpad != mp:
        corners = jnp.pad(corners, ((0, 0), (0, mpad - mp), (0, 0)))
    out = pl.pallas_call(
        _conv_relu_pool_kernel,
        out_shape=jax.ShapeDtypeStruct((mpad, n), jnp.bfloat16),
        grid=(mpad // tm,),
        in_specs=[
            pl.BlockSpec((4, tm, k), lambda i: (0, i, 0)),
            pl.BlockSpec((k, n), lambda i: (0, 0)),
            pl.BlockSpec((1, n), lambda i: (0, 0)),
        ],
        out_specs=pl.BlockSpec((tm, n), lambda i: (i, 0)),
        compiler_params=pltpu.CompilerParams(
            dimension_semantics=("parallel",),
            vmem_limit_bytes=_VMEM_LIMIT_BYTES),
    )(corners, w_mat, b.reshape(1, n).astype(jnp.float32))
    return out[:mp]


def pallas_fc_classifier(x, wf, bf, wc, bc, *, tm_cap):
    """x:[M,K] bf16, wf:[K,H] bf16, wc:[H,C] bf16 -> logits [M,C] f32."""
    m, k = x.shape
    nh = wf.shape[1]
    nc = wc.shape[1]
    tm, mpad = _choose_m_tile(m, tm_cap)
    if mpad != m:
        x = jnp.pad(x, ((0, mpad - m), (0, 0)))
    out = pl.pallas_call(
        _fc_classifier_kernel,
        out_shape=jax.ShapeDtypeStruct((mpad, nc), jnp.float32),
        grid=(mpad // tm,),
        in_specs=[
            pl.BlockSpec((tm, k), lambda i: (i, 0)),
            pl.BlockSpec((k, nh), lambda i: (0, 0)),
            pl.BlockSpec((1, nh), lambda i: (0, 0)),
            pl.BlockSpec((nh, nc), lambda i: (0, 0)),
            pl.BlockSpec((1, nc), lambda i: (0, 0)),
        ],
        out_specs=pl.BlockSpec((tm, nc), lambda i: (i, 0)),
        compiler_params=pltpu.CompilerParams(
            dimension_semantics=("parallel",),
            vmem_limit_bytes=_VMEM_LIMIT_BYTES),
    )(x, wf, bf.reshape(1, nh).astype(jnp.float32),
      wc, bc.reshape(1, nc).astype(jnp.float32))
    return out[:m]


# ----------------------------- glue helpers ---------------------------------
# TODO(synk): im2col / pool-corner extraction stays in plain JAX glue; it is a
# pure data-layout slice/stack (no FLOPs) feeding the fused conv+pool kernel.

def _im2col_pool_corners(x_nhwc, k):
    """x:[B,H,W,C] -> corners [4, B*ohp*owp, k*k*C] grouped by 2x2-pool corner.

    K ordering is (kh, kw, cin) to match the conv-weight transpose.
    Conv output (oh=H-k+1, ow=W-k+1) must be even (true for this net).
    """
    B, H, W, C = x_nhwc.shape
    oh, ow = H - k + 1, W - k + 1
    ohp, owp = oh // 2, ow // 2
    cols = []
    for i in range(k):
        for j in range(k):
            cols.append(x_nhwc[:, i:i + oh, j:j + ow, :])      # [B,oh,ow,C]
    patches = jnp.stack(cols, axis=3).reshape(B, oh, ow, k * k * C)
    corners = jnp.stack([
        patches[:, 0::2, 0::2, :],
        patches[:, 0::2, 1::2, :],
        patches[:, 1::2, 0::2, :],
        patches[:, 1::2, 1::2, :],
    ], axis=0)                                                 # [4,B,ohp,owp,K]
    return corners.reshape(4, B * ohp * owp, k * k * C), (B, ohp, owp)


# ----------------------------- parameters -----------------------------------

def init_params(key):
    ks = jax.random.split(key, 8)

    def nrm(k, shape, fan_in):
        return (jax.random.normal(k, shape, jnp.float32)
                * (1.0 / jnp.sqrt(fan_in)))

    return {
        "conv1_w": nrm(ks[0], (20, 1, 5, 5), 1 * 5 * 5),
        "conv1_b": nrm(ks[1], (20,), 1 * 5 * 5),
        "conv2_w": nrm(ks[2], (50, 20, 5, 5), 20 * 5 * 5),
        "conv2_b": nrm(ks[3], (50,), 20 * 5 * 5),
        "fc_w": nrm(ks[4], (128, 50 * 4 * 4), 50 * 4 * 4),
        "fc_b": nrm(ks[5], (128,), 50 * 4 * 4),
        "cls_w": nrm(ks[6], (3, 128), 128),
        "cls_b": nrm(ks[7], (3,), 128),
    }


def prepare_params(params):
    """One-time weight reshaping/casting so the forward has zero transposes."""

    def conv_w_mat(w):  # [Cout,Cin,kh,kw] -> [kh*kw*Cin, Cout]
        cout, cin, kh, kw = w.shape
        return jnp.transpose(w, (2, 3, 1, 0)).reshape(kh * kw * cin, cout)

    # fc weight: columns are PyTorch NCHW-flatten order (c, h, w); re-index
    # rows to NHWC-flatten order (h, w, c) so flat = y2.reshape(B, 800) works.
    fc_w = params["fc_w"]                                   # [128, 800]
    fc_wm = jnp.transpose(fc_w.reshape(128, 50, 4, 4), (2, 3, 1, 0))
    fc_wm = fc_wm.reshape(4 * 4 * 50, 128)                  # [800, 128]

    return {
        "conv1_wm": conv_w_mat(params["conv1_w"]).astype(jnp.bfloat16),
        "conv1_b": params["conv1_b"],
        "conv2_wm": conv_w_mat(params["conv2_w"]).astype(jnp.bfloat16),
        "conv2_b": params["conv2_b"],
        "fc_wm": fc_wm.astype(jnp.bfloat16),
        "fc_b": params["fc_b"],
        "cls_wm": params["cls_w"].T.astype(jnp.bfloat16),   # [128, 3]
        "cls_b": params["cls_b"],
    }


# ----------------------------- forward pass ---------------------------------

def basic_conv_net_forward(prepped, x_nchw):
    """Input: NCHW float32 [B, 1, 28, 28]. Output: [B, 3] logits (f32)."""
    B = x_nchw.shape[0]
    # Single bf16 cast of the input; all activations stay bf16 from here on.
    x = jnp.transpose(x_nchw, (0, 2, 3, 1)).astype(jnp.bfloat16)  # NHWC

    # conv1 (5x5, 1->20) + ReLU + pool(2), fused        -> rows = B*12*12
    c1, (_, h1, w1) = _im2col_pool_corners(x, 5)                 # [4,B*144,25]
    y1 = pallas_conv_relu_pool(c1, prepped["conv1_wm"], prepped["conv1_b"],
                               tm_cap=4096)
    y1 = y1.reshape(B, h1, w1, 20)                               # [B,12,12,20]

    # conv2 (5x5, 20->50) + ReLU + pool(2), fused       -> rows = B*4*4
    c2, (_, h2, w2) = _im2col_pool_corners(y1, 5)                # [4,B*16,500]
    y2 = pallas_conv_relu_pool(c2, prepped["conv2_wm"], prepped["conv2_b"],
                               tm_cap=2048)

    # NHWC flatten (fc weight rows were pre-permuted to match this order).
    flat = y2.reshape(B, h2 * w2 * 50)                           # [B, 800]

    # fc + ReLU + classifier, fused.
    return pallas_fc_classifier(flat, prepped["fc_wm"], prepped["fc_b"],
                                prepped["cls_wm"], prepped["cls_b"],
                                tm_cap=4096)


# ----------------------------- pure-JAX reference ----------------------------

def _reference_forward(params, x_nchw):
    dn = ("NCHW", "OIHW", "NCHW")
    y = lax.conv_general_dilated(x_nchw, params["conv1_w"], (1, 1), "VALID",
                                 dimension_numbers=dn)
    y = jax.nn.relu(y + params["conv1_b"][None, :, None, None])
    y = lax.reduce_window(y, -jnp.inf, lax.max, (1, 1, 2, 2), (1, 1, 2, 2),
                          "VALID")
    y = lax.conv_general_dilated(y, params["conv2_w"], (1, 1), "VALID",
                                 dimension_numbers=dn)
    y = jax.nn.relu(y + params["conv2_b"][None, :, None, None])
    y = lax.reduce_window(y, -jnp.inf, lax.max, (1, 1, 2, 2), (1, 1, 2, 2),
                          "VALID")
    flat = y.reshape(y.shape[0], -1)
    h = jax.nn.relu(flat @ params["fc_w"].T + params["fc_b"])
    return h @ params["cls_w"].T + params["cls_b"]


if __name__ == "__main__":
    key = jax.random.PRNGKey(0)
    pkey, xkey = jax.random.split(key)
    params = init_params(pkey)
    prepped = prepare_params(params)

    # The module's arithmetic (50*4*4 flatten) implies 1x28x28 inputs.
    x = jax.random.normal(xkey, (2, 1, 28, 28), jnp.float32)

    fwd = jax.jit(basic_conv_net_forward)
    logits = fwd(prepped, x)
    jax.block_until_ready(logits)

    assert logits.shape == (2, 3) and logits.dtype == jnp.float32
    ref = _reference_forward(params, x)
    assert bool(jnp.all(jnp.isfinite(logits)))
    assert bool(jnp.allclose(logits, ref, rtol=1e-1, atol=1e-1)), (
        "Pallas forward deviates from reference")
    print("KERNEL_OK")
</pallas_src>

<mosaic_0001>
module attributes {stable_mosaic.version = 11 : i64} {
  func.func @_conv_relu_pool_kernel(%arg0: i32, %arg1: memref<4x144x25xbf16, #tpu.memory_space<vmem>>, %arg2: memref<25x20xbf16, #tpu.memory_space<vmem>>, %arg3: memref<1x20xf32, #tpu.memory_space<vmem>>, %arg4: memref<144x20xbf16, #tpu.memory_space<vmem>>) attributes {dimension_semantics = [#tpu.dimension_semantics<parallel>], iteration_bounds = array<i64: 2>, scalar_prefetch = 0 : i64, scratch_operands = 0 : i64, tpu.core_type = #tpu.core_type<tc>, window_params = [{transform_indices = @transform_0, window_bounds = array<i64: 4, 144, 25>}, {pipeline_mode = #tpu.pipeline_mode<synchronous>, transform_indices = @transform_1, window_bounds = array<i64: 25, 20>}, {pipeline_mode = #tpu.pipeline_mode<synchronous>, transform_indices = @transform_2, window_bounds = array<i64: 1, 20>}, {transform_indices = @transform_3, window_bounds = array<i64: 144, 20>}]} {
    %c0 = arith.constant 0 : index
    %c0_0 = arith.constant 0 : index
    %0 = vector.load %arg2[%c0, %c0_0] : memref<25x20xbf16, #tpu.memory_space<vmem>>, vector<25x20xbf16>
    %c0_1 = arith.constant 0 : index
    %c0_2 = arith.constant 0 : index
    %c0_3 = arith.constant 0 : index
    %1 = vector.load %arg1[%c0_1, %c0_2, %c0_3] : memref<4x144x25xbf16, #tpu.memory_space<vmem>>, vector<1x144x25xbf16>
    %2 = vector.shape_cast %1 : vector<1x144x25xbf16> to vector<144x25xbf16>
    %cst = arith.constant dense<0.000000e+00> : vector<144x20xf32>
    %3 = tpu.matmul %2, %0, %cst {dimension_numbers = #tpu.dot_dimension_numbers<[1], [0], [0], [1], [0, 0, 1, 1], [], []>} : vector<144x25xbf16>, vector<25x20xbf16>, vector<144x20xf32> -> vector<144x20xf32>
    %c1 = arith.constant 1 : index
    %c0_4 = arith.constant 0 : index
    %c0_5 = arith.constant 0 : index
    %4 = vector.load %arg1[%c1, %c0_4, %c0_5] : memref<4x144x25xbf16, #tpu.memory_space<vmem>>, vector<1x144x25xbf16>
    %5 = vector.shape_cast %4 : vector<1x144x25xbf16> to vector<144x25xbf16>
    %cst_6 = arith.constant dense<0.000000e+00> : vector<144x20xf32>
    %6 = tpu.matmul %5, %0, %cst_6 {dimension_numbers = #tpu.dot_dimension_numbers<[1], [0], [0], [1], [0, 0, 1, 1], [], []>} : vector<144x25xbf16>, vector<25x20xbf16>, vector<144x20xf32> -> vector<144x20xf32>
    %7 = arith.maximumf %3, %6 : vector<144x20xf32>
    %c2 = arith.constant 2 : index
    %c0_7 = arith.constant 0 : index
    %c0_8 = arith.constant 0 : index
    %8 = vector.load %arg1[%c2, %c0_7, %c0_8] : memref<4x144x25xbf16, #tpu.memory_space<vmem>>, vector<1x144x25xbf16>
    %9 = vector.shape_cast %8 : vector<1x144x25xbf16> to vector<144x25xbf16>
    %cst_9 = arith.constant dense<0.000000e+00> : vector<144x20xf32>
    %10 = tpu.matmul %9, %0, %cst_9 {dimension_numbers = #tpu.dot_dimension_numbers<[1], [0], [0], [1], [0, 0, 1, 1], [], []>} : vector<144x25xbf16>, vector<25x20xbf16>, vector<144x20xf32> -> vector<144x20xf32>
    %11 = arith.maximumf %7, %10 : vector<144x20xf32>
    %c3 = arith.constant 3 : index
    %c0_10 = arith.constant 0 : index
    %c0_11 = arith.constant 0 : index
    %12 = vector.load %arg1[%c3, %c0_10, %c0_11] : memref<4x144x25xbf16, #tpu.memory_space<vmem>>, vector<1x144x25xbf16>
    %13 = vector.shape_cast %12 : vector<1x144x25xbf16> to vector<144x25xbf16>
    %cst_12 = arith.constant dense<0.000000e+00> : vector<144x20xf32>
    %14 = tpu.matmul %13, %0, %cst_12 {dimension_numbers = #tpu.dot_dimension_numbers<[1], [0], [0], [1], [0, 0, 1, 1], [], []>} : vector<144x25xbf16>, vector<25x20xbf16>, vector<144x20xf32> -> vector<144x20xf32>
    %15 = arith.maximumf %11, %14 : vector<144x20xf32>
    %c0_13 = arith.constant 0 : index
    %c0_14 = arith.constant 0 : index
    %16 = vector.load %arg3[%c0_13, %c0_14] : memref<1x20xf32, #tpu.memory_space<vmem>>, vector<1x20xf32>
    %17 = vector.broadcast %16 : vector<1x20xf32> to vector<144x20xf32>
    %18 = arith.addf %15, %17 : vector<144x20xf32>
    %cst_15 = arith.constant 0.000000e+00 : f32
    %19 = vector.broadcast %cst_15 : f32 to vector<144x20xf32>
    %20 = arith.maximumf %18, %19 : vector<144x20xf32>
    %21 = arith.truncf %20 : vector<144x20xf32> to vector<144x20xbf16>
    %c0_16 = arith.constant 0 : index
    %c0_17 = arith.constant 0 : index
    %22 = vector.load %arg4[%c0_16, %c0_17] : memref<144x20xbf16, #tpu.memory_space<vmem>>, vector<144x20xbf16>
    tpu.vector_store %arg4[%c0_16, %c0_17], %21 {strides = array<i32>} : memref<144x20xbf16, #tpu.memory_space<vmem>>, vector<144x20xbf16>,
    return
  }
  func.func @transform_0(%arg0: i32) -> (i32, i32, i32) {
    %c0_i32 = arith.constant 0 : i32
    %c0_i32_0 = arith.constant 0 : i32
    %c0_i32_1 = arith.constant 0 : i32
    return %c0_i32, %arg0, %c0_i32_0 : i32, i32, i32
  }
  func.func @transform_1(%arg0: i32) -> (i32, i32) {
    %c0_i32 = arith.constant 0 : i32
    %c0_i32_0 = arith.constant 0 : i32
    %c0_i32_1 = arith.constant 0 : i32
    return %c0_i32, %c0_i32_0 : i32, i32
  }
  func.func @transform_2(%arg0: i32) -> (i32, i32) {
    %c0_i32 = arith.constant 0 : i32
    %c0_i32_0 = arith.constant 0 : i32
    %c0_i32_1 = arith.constant 0 : i32
    return %c0_i32, %c0_i32_0 : i32, i32
  }
  func.func @transform_3(%arg0: i32) -> (i32, i32) {
    %c0_i32 = arith.constant 0 : i32
    %c0_i32_0 = arith.constant 0 : i32
    return %arg0, %c0_i32 : i32, i32
  }
}

module attributes {stable_mosaic.version = 11 : i64} {
  func.func @_conv_relu_pool_kernel(%arg0: i32, %arg1: memref<4x16x500xbf16, #tpu.memory_space<vmem>>, %arg2: memref<500x50xbf16, #tpu.memory_space<vmem>>, %arg3: memref<1x50xf32, #tpu.memory_space<vmem>>, %arg4: memref<16x50xbf16, #tpu.memory_space<vmem>>) attributes {dimension_semantics = [#tpu.dimension_semantics<parallel>], iteration_bounds = array<i64: 2>, scalar_prefetch = 0 : i64, scratch_operands = 0 : i64, tpu.core_type = #tpu.core_type<tc>, window_params = [{transform_indices = @transform_0, window_bounds = array<i64: 4, 16, 500>}, {pipeline_mode = #tpu.pipeline_mode<synchronous>, transform_indices = @transform_1, window_bounds = array<i64: 500, 50>}, {pipeline_mode = #tpu.pipeline_mode<synchronous>, transform_indices = @transform_2, window_bounds = array<i64: 1, 50>}, {transform_indices = @transform_3, window_bounds = array<i64: 16, 50>}]} {
    %c0 = arith.constant 0 : index
    %c0_0 = arith.constant 0 : index
    %0 = vector.load %arg2[%c0, %c0_0] : memref<500x50xbf16, #tpu.memory_space<vmem>>, vector<500x50xbf16>
    %c0_1 = arith.constant 0 : index
    %c0_2 = arith.constant 0 : index
    %c0_3 = arith.constant 0 : index
    %1 = vector.load %arg1[%c0_1, %c0_2, %c0_3] : memref<4x16x500xbf16, #tpu.memory_space<vmem>>, vector<1x16x500xbf16>
    %2 = vector.shape_cast %1 : vector<1x16x500xbf16> to vector<16x500xbf16>
    %cst = arith.constant dense<0.000000e+00> : vector<16x50xf32>
    %3 = tpu.matmul %2, %0, %cst {dimension_numbers = #tpu.dot_dimension_numbers<[1], [0], [0], [1], [0, 0, 1, 1], [], []>} : vector<16x500xbf16>, vector<500x50xbf16>, vector<16x50xf32> -> vector<16x50xf32>
    %c1 = arith.constant 1 : index
    %c0_4 = arith.constant 0 : index
    %c0_5 = arith.constant 0 : index
    %4 = vector.load %arg1[%c1, %c0_4, %c0_5] : memref<4x16x500xbf16, #tpu.memory_space<vmem>>, vector<1x16x500xbf16>
    %5 = vector.shape_cast %4 : vector<1x16x500xbf16> to vector<16x500xbf16>
    %cst_6 = arith.constant dense<0.000000e+00> : vector<16x50xf32>
    %6 = tpu.matmul %5, %0, %cst_6 {dimension_numbers = #tpu.dot_dimension_numbers<[1], [0], [0], [1], [0, 0, 1, 1], [], []>} : vector<16x500xbf16>, vector<500x50xbf16>, vector<16x50xf32> -> vector<16x50xf32>
    %7 = arith.maximumf %3, %6 : vector<16x50xf32>
    %c2 = arith.constant 2 : index
    %c0_7 = arith.constant 0 : index
    %c0_8 = arith.constant 0 : index
    %8 = vector.load %arg1[%c2, %c0_7, %c0_8] : memref<4x16x500xbf16, #tpu.memory_space<vmem>>, vector<1x16x500xbf16>
    %9 = vector.shape_cast %8 : vector<1x16x500xbf16> to vector<16x500xbf16>
    %cst_9 = arith.constant dense<0.000000e+00> : vector<16x50xf32>
    %10 = tpu.matmul %9, %0, %cst_9 {dimension_numbers = #tpu.dot_dimension_numbers<[1], [0], [0], [1], [0, 0, 1, 1], [], []>} : vector<16x500xbf16>, vector<500x50xbf16>, vector<16x50xf32> -> vector<16x50xf32>
    %11 = arith.maximumf %7, %10 : vector<16x50xf32>
    %c3 = arith.constant 3 : index
    %c0_10 = arith.constant 0 : index
    %c0_11 = arith.constant 0 : index
    %12 = vector.load %arg1[%c3, %c0_10, %c0_11] : memref<4x16x500xbf16, #tpu.memory_space<vmem>>, vector<1x16x500xbf16>
    %13 = vector.shape_cast %12 : vector<1x16x500xbf16> to vector<16x500xbf16>
    %cst_12 = arith.constant dense<0.000000e+00> : vector<16x50xf32>
    %14 = tpu.matmul %13, %0, %cst_12 {dimension_numbers = #tpu.dot_dimension_numbers<[1], [0], [0], [1], [0, 0, 1, 1], [], []>} : vector<16x500xbf16>, vector<500x50xbf16>, vector<16x50xf32> -> vector<16x50xf32>
    %15 = arith.maximumf %11, %14 : vector<16x50xf32>
    %c0_13 = arith.constant 0 : index
    %c0_14 = arith.constant 0 : index
    %16 = vector.load %arg3[%c0_13, %c0_14] : memref<1x50xf32, #tpu.memory_space<vmem>>, vector<1x50xf32>
    %17 = vector.broadcast %16 : vector<1x50xf32> to vector<16x50xf32>
    %18 = arith.addf %15, %17 : vector<16x50xf32>
    %cst_15 = arith.constant 0.000000e+00 : f32
    %19 = vector.broadcast %cst_15 : f32 to vector<16x50xf32>
    %20 = arith.maximumf %18, %19 : vector<16x50xf32>
    %21 = arith.truncf %20 : vector<16x50xf32> to vector<16x50xbf16>
    %c0_16 = arith.constant 0 : index
    %c0_17 = arith.constant 0 : index
    %22 = vector.load %arg4[%c0_16, %c0_17] : memref<16x50xbf16, #tpu.memory_space<vmem>>, vector<16x50xbf16>
    tpu.vector_store %arg4[%c0_16, %c0_17], %21 {strides = array<i32>} : memref<16x50xbf16, #tpu.memory_space<vmem>>, vector<16x50xbf16>,
    return
  }
  func.func @transform_0(%arg0: i32) -> (i32, i32, i32) {
    %c0_i32 = arith.constant 0 : i32
    %c0_i32_0 = arith.constant 0 : i32
    %c0_i32_1 = arith.constant 0 : i32
    return %c0_i32, %arg0, %c0_i32_0 : i32, i32, i32
  }
  func.func @transform_1(%arg0: i32) -> (i32, i32) {
    %c0_i32 = arith.constant 0 : i32
    %c0_i32_0 = arith.constant 0 : i32
    %c0_i32_1 = arith.constant 0 : i32
    return %c0_i32, %c0_i32_0 : i32, i32
  }
  func.func @transform_2(%arg0: i32) -> (i32, i32) {
    %c0_i32 = arith.constant 0 : i32
    %c0_i32_0 = arith.constant 0 : i32
    %c0_i32_1 = arith.constant 0 : i32
    return %c0_i32, %c0_i32_0 : i32, i32
  }
  func.func @transform_3(%arg0: i32) -> (i32, i32) {
    %c0_i32 = arith.constant 0 : i32
    %c0_i32_0 = arith.constant 0 : i32
    return %arg0, %c0_i32 : i32, i32
  }
}

module attributes {stable_mosaic.version = 11 : i64} {
  func.func @_fc_classifier_kernel(%arg0: i32, %arg1: memref<8x800xbf16, #tpu.memory_space<vmem>>, %arg2: memref<800x128xbf16, #tpu.memory_space<vmem>>, %arg3: memref<1x128xf32, #tpu.memory_space<vmem>>, %arg4: memref<128x3xbf16, #tpu.memory_space<vmem>>, %arg5: memref<1x3xf32, #tpu.memory_space<vmem>>, %arg6: memref<8x3xf32, #tpu.memory_space<vmem>>) attributes {dimension_semantics = [#tpu.dimension_semantics<parallel>], iteration_bounds = array<i64: 1>, scalar_prefetch = 0 : i64, scratch_operands = 0 : i64, tpu.core_type = #tpu.core_type<tc>, window_params = [{transform_indices = @transform_0, window_bounds = array<i64: 8, 800>}, {pipeline_mode = #tpu.pipeline_mode<synchronous>, transform_indices = @transform_1, window_bounds = array<i64: 800, 128>}, {pipeline_mode = #tpu.pipeline_mode<synchronous>, transform_indices = @transform_2, window_bounds = array<i64: 1, 128>}, {pipeline_mode = #tpu.pipeline_mode<synchronous>, transform_indices = @transform_3, window_bounds = array<i64: 128, 3>}, {pipeline_mode = #tpu.pipeline_mode<synchronous>, transform_indices = @transform_4, window_bounds = array<i64: 1, 3>}, {transform_indices = @transform_5, window_bounds = array<i64: 8, 3>}]} {
    %c0 = arith.constant 0 : index
    %c0_0 = arith.constant 0 : index
    %0 = vector.load %arg1[%c0, %c0_0] : memref<8x800xbf16, #tpu.memory_space<vmem>>, vector<8x800xbf16>
    %c0_1 = arith.constant 0 : index
    %c0_2 = arith.constant 0 : index
    %1 = vector.load %arg2[%c0_1, %c0_2] : memref<800x128xbf16, #tpu.memory_space<vmem>>, vector<800x128xbf16>
    %cst = arith.constant dense<0.000000e+00> : vector<8x128xf32>
    %2 = tpu.matmul %0, %1, %cst {dimension_numbers = #tpu.dot_dimension_numbers<[1], [0], [0], [1], [0, 0, 1, 1], [], []>} : vector<8x800xbf16>, vector<800x128xbf16>, vector<8x128xf32> -> vector<8x128xf32>
    %c0_3 = arith.constant 0 : index
    %c0_4 = arith.constant 0 : index
    %3 = vector.load %arg3[%c0_3, %c0_4] : memref<1x128xf32, #tpu.memory_space<vmem>>, vector<1x128xf32>
    %4 = vector.broadcast %3 : vector<1x128xf32> to vector<8x128xf32>
    %5 = arith.addf %2, %4 : vector<8x128xf32>
    %cst_5 = arith.constant 0.000000e+00 : f32
    %6 = vector.broadcast %cst_5 : f32 to vector<8x128xf32>
    %7 = arith.maximumf %5, %6 : vector<8x128xf32>
    %8 = arith.truncf %7 : vector<8x128xf32> to vector<8x128xbf16>
    %c0_6 = arith.constant 0 : index
    %c0_7 = arith.constant 0 : index
    %9 = vector.load %arg4[%c0_6, %c0_7] : memref<128x3xbf16, #tpu.memory_space<vmem>>, vector<128x3xbf16>
    %cst_8 = arith.constant dense<0.000000e+00> : vector<8x3xf32>
    %10 = tpu.matmul %8, %9, %cst_8 {dimension_numbers = #tpu.dot_dimension_numbers<[1], [0], [0], [1], [0, 0, 1, 1], [], []>} : vector<8x128xbf16>, vector<128x3xbf16>, vector<8x3xf32> -> vector<8x3xf32>
    %c0_9 = arith.constant 0 : index
    %c0_10 = arith.constant 0 : index
    %11 = vector.load %arg5[%c0_9, %c0_10] : memref<1x3xf32, #tpu.memory_space<vmem>>, vector<1x3xf32>
    %12 = vector.broadcast %11 : vector<1x3xf32> to vector<8x3xf32>
    %13 = arith.addf %10, %12 : vector<8x3xf32>
    %c0_11 = arith.constant 0 : index
    %c0_12 = arith.constant 0 : index
    %14 = vector.load %arg6[%c0_11, %c0_12] : memref<8x3xf32, #tpu.memory_space<vmem>>, vector<8x3xf32>
    tpu.vector_store %arg6[%c0_11, %c0_12], %13 {strides = array<i32>} : memref<8x3xf32, #tpu.memory_space<vmem>>, vector<8x3xf32>,
    return
  }
  func.func @transform_0(%arg0: i32) -> (i32, i32) {
    %c0_i32 = arith.constant 0 : i32
    %c0_i32_0 = arith.constant 0 : i32
    return %arg0, %c0_i32 : i32, i32
  }
  func.func @transform_1(%arg0: i32) -> (i32, i32) {
    %c0_i32 = arith.constant 0 : i32
    %c0_i32_0 = arith.constant 0 : i32
    %c0_i32_1 = arith.constant 0 : i32
    return %c0_i32, %c0_i32_0 : i32, i32
  }
  func.func @transform_2(%arg0: i32) -> (i32, i32) {
    %c0_i32 = arith.constant 0 : i32
    %c0_i32_0 = arith.constant 0 : i32
    %c0_i32_1 = arith.constant 0 : i32
    return %c0_i32, %c0_i32_0 : i32, i32
  }
  func.func @transform_3(%arg0: i32) -> (i32, i32) {
    %c0_i32 = arith.constant 0 : i32
    %c0_i32_0 = arith.constant 0 : i32
    %c0_i32_1 = arith.constant 0 : i32
    return %c0_i32, %c0_i32_0 : i32, i32
  }
  func.func @transform_4(%arg0: i32) -> (i32, i32) {
    %c0_i32 = arith.constant 0 : i32
    %c0_i32_0 = arith.constant 0 : i32
    %c0_i32_1 = arith.constant 0 : i32
    return %c0_i32, %c0_i32_0 : i32, i32
  }
  func.func @transform_5(%arg0: i32) -> (i32, i32) {
    %c0_i32 = arith.constant 0 : i32
    %c0_i32_0 = arith.constant 0 : i32
    return %arg0, %c0_i32 : i32, i32
  }
}

</mosaic_0001>

<llo_original>
// kernel: basic_conv_net_forward.3
$region0: #{basic_conv_net_forward.3}
  #allocation0 [shape = 'u32[]', space=smem, size = 0x4, offset = 0x4, fixed_abs, tag = 'smem constant byte address 0x4 - core index']
  #allocation1 [shape = 'u32[144,128]{1,0:T(1,128)}', space=vmem, size = 0x12000, scoped, tag = 'internal scratch']
  %s0 = inlined_call_operand.vmem [shape: bf16[4,288,25], index: 0, kind: input, shape index: {}]
  %s1 = inlined_call_operand.vmem [shape: bf16[25,20], index: 1, kind: input, shape index: {}]
  %s2 = inlined_call_operand.vmem [shape: f32[1,20], index: 2, kind: input, shape index: {}]
  %s3 = inlined_call_operand.vmem [shape: bf16[288,20], index: 3, kind: output, shape index: {}]
  %s4 = sld [smem:[#allocation0]]
  $region86: #{basic_conv_net_forward.3} parent=0
    _
  %s6 = ssub.s32 1, %s4
  %s7 = scalar_select 0, %s6, %s4
  $region1: #{basic_conv_net_forward.3} parent=0
    #allocation2 [shape = 'u8[294912]{0}', space=vmem, size = 0x48000, scoped, tag = 'input window, operand 0']
    loop: start=0, step=1, limit=4
    $region2: #{basic_conv_net_forward.3} parent=1 // loop_pre_header
      _
    $region3: #{basic_conv_net_forward.3} parent=1 // loop_header
      %s9 = sphi 0, %s13
      %p10 = scmp.ge.s32.totalorder %s9, 4
      %s19 = sphi 0, %s21
      %s22 = sphi 0, %s19
      %s23 = sphi 0, %s22
      %s39 = sphi 0, %s23
      %s43 = sphi 0, %s43
      %s45 = sphi 0, %s43
      %s46 = sphi 0, %s45
      %s60 = sphi 0, %s46
      %s64 = sphi 0, %s64
      %s66 = sphi 0, %s64
      %s67 = sphi 0, %s66
      %s81 = sphi 0, %s67
      %s87 = sphi 0, %s89
      %s90 = sphi 0, %s87
      %s91 = sphi 0, %s90
      %s107 = sphi 0, %s91
    $region4: #{basic_conv_net_forward.3} parent=1 // loop_header_branch
      %12 = sbr.rel (%p10) target = $region8
    $region5: #{basic_conv_net_forward.3} parent=1 // loop_body
      %s14 = ssub.s32 %s9, 1
      %s15 = ssub.s32 %s9, 2
      %s16 = sadd.s32 %s9, 1
      %s17 = ssub.s32 %s9, %s16
      %p18 = scmp.eq.s32.totalorder %s17, 0
      %s20 = sadd.s32 %s19, 1
      %s21 = scalar_select %p18, %s19, %s20
      %p24 = pneg %p18
      %p25 = scmp.eq.s32.totalorder %s9, 1
      %p26 = por %p24, %p25
      %p27 = scmp.ne.s32.totalorder %s19, %s22
      %p28 = scmp.eq.s32.totalorder %s9, 0
      %p29 = por %p27, %p28
      %p30 = scmp.ne.s32.totalorder %s19, %s22
      %p31 = scmp.eq.s32.totalorder %s14, 1
      %p32 = por %p30, %p31
      %p33 = scmp.ne.s32.totalorder %s22, %s23
      %p34 = scmp.eq.s32.totalorder %s14, 0
      %p35 = por %p33, %p34
      %p36 = scmp.ne.s32.totalorder %s22, %s23
      %p37 = scmp.eq.s32.totalorder %s15, 1
      %p38 = por %p36, %p37
      %p40 = scmp.ne.s32.totalorder %s23, %s39
      %p41 = scmp.eq.s32.totalorder %s15, 0
      %p42 = por %p40, %p41
      %s44 = sadd.s32 %s43, 1
      %p47 = scmp.eq.s32.totalorder %s9, 1
      %p48 = scmp.ne.s32.totalorder %s43, %s45
      %p49 = scmp.eq.s32.totalorder %s9, 0
      %p50 = por %p48, %p49
      %p51 = scmp.ne.s32.totalorder %s43, %s45
      %p52 = scmp.eq.s32.totalorder %s14, 1
      %p53 = por %p51, %p52
      %p54 = scmp.ne.s32.totalorder %s45, %s46
      %p55 = scmp.eq.s32.totalorder %s14, 0
      %p56 = por %p54, %p55
      %p57 = scmp.ne.s32.totalorder %s45, %s46
      %p58 = scmp.eq.s32.totalorder %s15, 1
      %p59 = por %p57, %p58
      %p61 = scmp.ne.s32.totalorder %s46, %s60
      %p62 = scmp.eq.s32.totalorder %s15, 0
      %p63 = por %p61, %p62
      %s65 = sadd.s32 %s64, 1
      %p68 = scmp.eq.s32.totalorder %s9, 1
      %p69 = scmp.ne.s32.totalorder %s64, %s66
      %p70 = scmp.eq.s32.totalorder %s9, 0
      %p71 = por %p69, %p70
      %p72 = scmp.ne.s32.totalorder %s64, %s66
      %p73 = scmp.eq.s32.totalorder %s14, 1
      %p74 = por %p72, %p73
      %p75 = scmp.ne.s32.totalorder %s66, %s67
      %p76 = scmp.eq.s32.totalorder %s14, 0
      %p77 = por %p75, %p76
      %p78 = scmp.ne.s32.totalorder %s66, %s67
      %p79 = scmp.eq.s32.totalorder %s15, 1
      %p80 = por %p78, %p79
      %p82 = scmp.ne.s32.totalorder %s67, %s81
      %p83 = scmp.eq.s32.totalorder %s15, 0
      %p84 = por %p82, %p83
      %s85 = ssub.s32 %s9, %s16
      %p86 = scmp.eq.s32.totalorder %s85, 0
      %s88 = sadd.s32 %s87, 1
      %s89 = scalar_select %p86, %s87, %s88
      %p92 = pneg %p86
      %p93 = scmp.eq.s32.totalorder %s9, 1
      %p94 = por %p92, %p93
      %p95 = scmp.ne.s32.totalorder %s87, %s90
      %p96 = scmp.eq.s32.totalorder %s9, 0
      %p97 = por %p95, %p96
      %p98 = scmp.ne.s32.totalorder %s87, %s90
      %p99 = scmp.eq.s32.totalorder %s14, 1
      %p100 = por %p98, %p99
      %p101 = scmp.ne.s32.totalorder %s90, %s91
      %p102 = scmp.eq.s32.totalorder %s14, 0
      %p103 = por %p101, %p102
      %p104 = scmp.ne.s32.totalorder %s90, %s91
      %p105 = scmp.eq.s32.totalorder %s15, 1
      %p106 = por %p104, %p105
      %p108 = scmp.ne.s32.totalorder %s91, %s107
      %p109 = scmp.eq.s32.totalorder %s15, 0
      %p110 = por %p108, %p109
      %p111 = scmp.le.s32.totalorder 1, %s9
      %p112 = scmp.lt.s32.totalorder %s9, 3
      %p113 = pnand %p111, %p112
      %p114 = pneg %p113
      // Predicated region
      $region9: #{basic_conv_net_forward.3} parent=5 // pred_check
        _
      $region10: #{basic_conv_net_forward.3} parent=5 // pred_check_branch
        %116 = sbr.rel (%p113) target = $region12
      $region11: #{basic_conv_net_forward.3} parent=5 // pred_region
        %s117 = ssub.s32 %s9, 1
        // Predicated region
        $region13: #{basic_conv_net_forward.3} parent=11 // pred_check
          %p118 = pneg %p56
        $region14: #{basic_conv_net_forward.3} parent=11 // pred_check_branch
          %120 = sbr.rel (%p118) target = $region16
        $region15: #{basic_conv_net_forward.3} parent=11 // pred_region
          _
        $region16: #{basic_conv_net_forward.3} parent=11 // pred_fallthru
          _
        // Predicated region
        $region17: #{basic_conv_net_forward.3} parent=11 // pred_check
          %p121 = pneg %p77
        $region18: #{basic_conv_net_forward.3} parent=11 // pred_check_branch
          %123 = sbr.rel (%p121) target = $region20
        $region19: #{basic_conv_net_forward.3} parent=11 // pred_region
          _
        $region20: #{basic_conv_net_forward.3} parent=11 // pred_fallthru
          _
      $region12: #{basic_conv_net_forward.3} parent=5 // pred_fallthru
        _
      %p124 = scmp.lt.s32.totalorder %s9, 2
      // Predicated region
      $region21: #{basic_conv_net_forward.3} parent=5 // pred_check
        %p125 = pneg %p124
      $region22: #{basic_conv_net_forward.3} parent=5 // pred_check_branch
        %127 = sbr.rel (%p125) target = $region24
      $region23: #{basic_conv_net_forward.3} parent=5 // pred_region
        // Predicated region
        $region25: #{basic_conv_net_forward.3} parent=23 // pred_check
          %p128 = pneg %p29
        $region26: #{basic_conv_net_forward.3} parent=23 // pred_check_branch
          %130 = sbr.rel (%p128) target = $region28
        $region27: #{basic_conv_net_forward.3} parent=23 // pred_region
          %s131 = sand.u32 %s19, 1
          %s132 = sand.u32 %s19, 1
          %s133 = smul.addr %s132, 288
          %s134 = scalar_lea.vmem [#allocation2], %s133
          %s135 = smul.u32 18, %s9
          %s136 = smul.addr %s135, 4
          %s137 = scalar_lea.vmem %s0, %s136
          // Predicated region
          $region29: #{basic_conv_net_forward.3} parent=27 // pred_check
            _
          $region30: #{basic_conv_net_forward.3} parent=27 // pred_check_branch
            %139 = sbr.rel (0) target = $region32
          $region31: #{basic_conv_net_forward.3} parent=27 // pred_region
            // Predicated region
            $region33: #{basic_conv_net_forward.3} parent=31 // pred_check
              _
            $region34: #{basic_conv_net_forward.3} parent=31 // pred_check_branch
              %141 = sbr.rel target = $region36
            $region35: #{basic_conv_net_forward.3} parent=31 // pred_region
              // Predicated region
              $region48: #{basic_conv_net_forward.3} parent=35 // pred_check
                _
              $region49: #{basic_conv_net_forward.3} parent=35 // pred_check_branch
                %298 = sbr.rel (0) target = $region51
              $region50: #{basic_conv_net_forward.3} parent=35 // pred_region
                loop: start=0, step=1, limit=1
                $region52: #{basic_conv_net_forward.3} parent=50 // loop_pre_header
                  _
                $region53: #{basic_conv_net_forward.3} parent=50 // loop_header
                  %s300 = sphi 0, %s304
                  %p301 = scmp.ge.s32.totalorder %s300, 1
                  %s305 = sphi %s137, %s137
                  %s306 = sphi %s134, %s134
                $region54: #{basic_conv_net_forward.3} parent=50 // loop_header_branch
                  %303 = sbr.rel (%p301) target = $region58
                $region55: #{basic_conv_net_forward.3} parent=50 // loop_body
                  _
                $region56: #{basic_conv_net_forward.3} parent=50 // loop_footer
                  %s304 = sadd.s32 1, %s300
                $region57: #{basic_conv_net_forward.3} parent=50 // loop_footer_branch
                  %299 = sbr.rel target = $region53
                $region58: #{basic_conv_net_forward.3} parent=50 // loop_exit
                  _
                loop: start=0, step=1, limit=1
                $region59: #{basic_conv_net_forward.3} parent=50 // loop_pre_header
                  _
                $region60: #{basic_conv_net_forward.3} parent=50 // loop_header
                  %s309 = sphi 0, %s313
                  %p310 = scmp.ge.s32.totalorder %s309, 1
                  %s314 = sphi %s137, %s137
                  %s315 = sphi %s134, %s134
                $region61: #{basic_conv_net_forward.3} parent=50 // loop_header_branch
                  %312 = sbr.rel (%p310) target = $region65
                $region62: #{basic_conv_net_forward.3} parent=50 // loop_body
                  %v316 = vld [vmem:[%s314] sm:$0xf]
                  %317 = vst [vmem:[%s315] sm:$0xf] %v316
                  %v318 = vld [vmem:[%s314 + $0x4] sm:$0xf]
                  %319 = vst [vmem:[%s315 + $0x4] sm:$0xf] %v318
                  %v320 = vld [vmem:[%s314 + $0x8] sm:$0xf]
                  %321 = vst [vmem:[%s315 + $0x8] sm:$0xf] %v320
                  %v322 = vld [vmem:[%s314 + $0xc] sm:$0xf]
                  %323 = vst [vmem:[%s315 + $0xc] sm:$0xf] %v322
                  %v324 = vld [vmem:[%s314 + $0x10] sm:$0xf]
                  %325 = vst [vmem:[%s315 + $0x10] sm:$0xf] %v324
                  %v326 = vld [vmem:[%s314 + $0x14] sm:$0xf]
                  %327 = vst [vmem:[%s315 + $0x14] sm:$0xf] %v326
                  %v328 = vld [vmem:[%s314 + $0x18] sm:$0xf]
                  %329 = vst [vmem:[%s315 + $0x18] sm:$0xf] %v328
                  %v330 = vld [vmem:[%s314 + $0x1c] sm:$0xf]
                  %331 = vst [vmem:[%s315 + $0x1c] sm:$0xf] %v330
                  %v332 = vld [vmem:[%s314 + $0x20] sm:$0xf]
                  %333 = vst [vmem:[%s315 + $0x20] sm:$0xf] %v332
                  %v334 = vld [vmem:[%s314 + $0x24] sm:$0xf]
                  %335 = vst [vmem:[%s315 + $0x24] sm:$0xf] %v334
                  %v336 = vld [vmem:[%s314 + $0x28] sm:$0xf]
                  %337 = vst [vmem:[%s315 + $0x28] sm:$0xf] %v336
                  %v338 = vld [vmem:[%s314 + $0x2c] sm:$0xf]
                  %339 = vst [vmem:[%s315 + $0x2c] sm:$0xf] %v338
                  %v340 = vld [vmem:[%s314 + $0x30] sm:$0xf]
                  %341 = vst [vmem:[%s315 + $0x30] sm:$0xf] %v340
                  %v342 = vld [vmem:[%s314 + $0x34] sm:$0xf]
                  %343 = vst [vmem:[%s315 + $0x34] sm:$0xf] %v342
                  %v344 = vld [vmem:[%s314 + $0x38] sm:$0xf]
                  %345 = vst [vmem:[%s315 + $0x38] sm:$0xf] %v344
                  %v346 = vld [vmem:[%s314 + $0x3c] sm:$0xf]
                  %347 = vst [vmem:[%s315 + $0x3c] sm:$0xf] %v346
                  %v348 = vld [vmem:[%s314 + $0x40] sm:$0xf]
                  %349 = vst [vmem:[%s315 + $0x40] sm:$0xf] %v348
                  %v350 = vld [vmem:[%s314 + $0x44] sm:$0xf]
                  %351 = vst [vmem:[%s315 + $0x44] sm:$0xf] %v350
                  %v352 = vld [vmem:[%s314 + $0x90] sm:$0xf]
                  %353 = vst [vmem:[%s315 + $0x48] sm:$0xf] %v352
                  %v354 = vld [vmem:[%s314 + $0x94] sm:$0xf]
                  %355 = vst [vmem:[%s315 + $0x4c] sm:$0xf] %v354
                  %v356 = vld [vmem:[%s314 + $0x98] sm:$0xf]
                  %357 = vst [vmem:[%s315 + $0x50] sm:$0xf] %v356
                  %v358 = vld [vmem:[%s314 + $0x9c] sm:$0xf]
                  %359 = vst [vmem:[%s315 + $0x54] sm:$0xf] %v358
                  %v360 = vld [vmem:[%s314 + $0xa0] sm:$0xf]
                  %361 = vst [vmem:[%s315 + $0x58] sm:$0xf] %v360
                  %v362 = vld [vmem:[%s314 + $0xa4] sm:$0xf]
                  %363 = vst [vmem:[%s315 + $0x5c] sm:$0xf] %v362
                  %v364 = vld [vmem:[%s314 + $0xa8] sm:$0xf]
                  %365 = vst [vmem:[%s315 + $0x60] sm:$0xf] %v364
                  %v366 = vld [vmem:[%s314 + $0xac] sm:$0xf]
                  %367 = vst [vmem:[%s315 + $0x64] sm:$0xf] %v366
                  %v368 = vld [vmem:[%s314 + $0xb0] sm:$0xf]
                  %369 = vst [vmem:[%s315 + $0x68] sm:$0xf] %v368
                  %v370 = vld [vmem:[%s314 + $0xb4] sm:$0xf]
                  %371 = vst [vmem:[%s315 + $0x6c] sm:$0xf] %v370
                  %v372 = vld [vmem:[%s314 + $0xb8] sm:$0xf]
                  %373 = vst [vmem:[%s315 + $0x70] sm:$0xf] %v372
                  %v374 = vld [vmem:[%s314 + $0xbc] sm:$0xf]
                  %375 = vst [vmem:[%s315 + $0x74] sm:$0xf] %v374
                  %v376 = vld [vmem:[%s314 + $0xc0] sm:$0xf]
                  %377 = vst [vmem:[%s315 + $0x78] sm:$0xf] %v376
                  %v378 = vld [vmem:[%s314 + $0xc4] sm:$0xf]
                  %379 = vst [vmem:[%s315 + $0x7c] sm:$0xf] %v378
                  %v380 = vld [vmem:[%s314 + $0xc8] sm:$0xf]
                  %381 = vst [vmem:[%s315 + $0x80] sm:$0xf] %v380
                  %v382 = vld [vmem:[%s314 + $0xcc] sm:$0xf]
                  %383 = vst [vmem:[%s315 + $0x84] sm:$0xf] %v382
                  %v384 = vld [vmem:[%s314 + $0xd0] sm:$0xf]
                  %385 = vst [vmem:[%s315 + $0x88] sm:$0xf] %v384
                  %v386 = vld [vmem:[%s314 + $0xd4] sm:$0xf]
                  %387 = vst [vmem:[%s315 + $0x8c] sm:$0xf] %v386
                  %v388 = vld [vmem:[%s314 + $0x120] sm:$0xf]
                  %389 = vst [vmem:[%s315 + $0x90] sm:$0xf] %v388
                  %v390 = vld [vmem:[%s314 + $0x124] sm:$0xf]
                  %391 = vst [vmem:[%s315 + $0x94] sm:$0xf] %v390
                  %v392 = vld [vmem:[%s314 + $0x128] sm:$0xf]
                  %393 = vst [vmem:[%s315 + $0x98] sm:$0xf] %v392
                  %v394 = vld [vmem:[%s314 + $0x12c] sm:$0xf]
                  %395 = vst [vmem:[%s315 + $0x9c] sm:$0xf] %v394
                  %v396 = vld [vmem:[%s314 + $0x130] sm:$0xf]
                  %397 = vst [vmem:[%s315 + $0xa0] sm:$0xf] %v396
                  %v398 = vld [vmem:[%s314 + $0x134] sm:$0xf]
                  %399 = vst [vmem:[%s315 + $0xa4] sm:$0xf] %v398
                  %v400 = vld [vmem:[%s314 + $0x138] sm:$0xf]
                  %401 = vst [vmem:[%s315 + $0xa8] sm:$0xf] %v400
                  %v402 = vld [vmem:[%s314 + $0x13c] sm:$0xf]
                  %403 = vst [vmem:[%s315 + $0xac] sm:$0xf] %v402
                  %v404 = vld [vmem:[%s314 + $0x140] sm:$0xf]
                  %405 = vst [vmem:[%s315 + $0xb0] sm:$0xf] %v404
                  %v406 = vld [vmem:[%s314 + $0x144] sm:$0xf]
                  %407 = vst [vmem:[%s315 + $0xb4] sm:$0xf] %v406
                  %v408 = vld [vmem:[%s314 + $0x148] sm:$0xf]
                  %409 = vst [vmem:[%s315 + $0xb8] sm:$0xf] %v408
                  %v410 = vld [vmem:[%s314 + $0x14c] sm:$0xf]
                  %411 = vst [vmem:[%s315 + $0xbc] sm:$0xf] %v410
                  %v412 = vld [vmem:[%s314 + $0x150] sm:$0xf]
                  %413 = vst [vmem:[%s315 + $0xc0] sm:$0xf] %v412
                  %v414 = vld [vmem:[%s314 + $0x154] sm:$0xf]
                  %415 = vst [vmem:[%s315 + $0xc4] sm:$0xf] %v414
                  %v416 = vld [vmem:[%s314 + $0x158] sm:$0xf]
                  %417 = vst [vmem:[%s315 + $0xc8] sm:$0xf] %v416
                  %v418 = vld [vmem:[%s314 + $0x15c] sm:$0xf]
                  %419 = vst [vmem:[%s315 + $0xcc] sm:$0xf] %v418
                  %v420 = vld [vmem:[%s314 + $0x160] sm:$0xf]
                  %421 = vst [vmem:[%s315 + $0xd0] sm:$0xf] %v420
                  %v422 = vld [vmem:[%s314 + $0x164] sm:$0xf]
                  %423 = vst [vmem:[%s315 + $0xd4] sm:$0xf] %v422
                  %v424 = vld [vmem:[%s314 + $0x1b0] sm:$0xf]
                  %425 = vst [vmem:[%s315 + $0xd8] sm:$0xf] %v424
                  %v426 = vld [vmem:[%s314 + $0x1b4] sm:$0xf]
                  %427 = vst [vmem:[%s315 + $0xdc] sm:$0xf] %v426
                  %v428 = vld [vmem:[%s314 + $0x1b8] sm:$0xf]
                  %429 = vst [vmem:[%s315 + $0xe0] sm:$0xf] %v428
                  %v430 = vld [vmem:[%s314 + $0x1bc] sm:$0xf]
                  %431 = vst [vmem:[%s315 + $0xe4] sm:$0xf] %v430
                  %v432 = vld [vmem:[%s314 + $0x1c0] sm:$0xf]
                  %433 = vst [vmem:[%s315 + $0xe8] sm:$0xf] %v432
                  %v434 = vld [vmem:[%s314 + $0x1c4] sm:$0xf]
                  %435 = vst [vmem:[%s315 + $0xec] sm:$0xf] %v434
                  %v436 = vld [vmem:[%s314 + $0x1c8] sm:$0xf]
                  %437 = vst [vmem:[%s315 + $0xf0] sm:$0xf] %v436
                  %v438 = vld [vmem:[%s314 + $0x1cc] sm:$0xf]
                  %439 = vst [vmem:[%s315 + $0xf4] sm:$0xf] %v438
                  %v440 = vld [vmem:[%s314 + $0x1d0] sm:$0xf]
                  %441 = vst [vmem:[%s315 + $0xf8] sm:$0xf] %v440
                  %v442 = vld [vmem:[%s314 + $0x1d4] sm:$0xf]
                  %443 = vst [vmem:[%s315 + $0xfc] sm:$0xf] %v442
                  %v444 = vld [vmem:[%s314 + $0x1d8] sm:$0xf]
                  %445 = vst [vmem:[%s315 + $0x100] sm:$0xf] %v444
                  %v446 = vld [vmem:[%s314 + $0x1dc] sm:$0xf]
                  %447 = vst [vmem:[%s315 + $0x104] sm:$0xf] %v446
                  %v448 = vld [vmem:[%s314 + $0x1e0] sm:$0xf]
                  %449 = vst [vmem:[%s315 + $0x108] sm:$0xf] %v448
                  %v450 = vld [vmem:[%s314 + $0x1e4] sm:$0xf]
                  %451 = vst [vmem:[%s315 + $0x10c] sm:$0xf] %v450
                  %v452 = vld [vmem:[%s314 + $0x1e8] sm:$0xf]
                  %453 = vst [vmem:[%s315 + $0x110] sm:$0xf] %v452
                  %v454 = vld [vmem:[%s314 + $0x1ec] sm:$0xf]
                  %455 = vst [vmem:[%s315 + $0x114] sm:$0xf] %v454
                  %v456 = vld [vmem:[%s314 + $0x1f0] sm:$0xf]
                  %457 = vst [vmem:[%s315 + $0x118] sm:$0xf] %v456
                  %v458 = vld [vmem:[%s314 + $0x1f4] sm:$0xf]
                  %459 = vst [vmem:[%s315 + $0x11c] sm:$0xf] %v458
                $region63: #{basic_conv_net_forward.3} parent=50 // loop_footer
                  %s313 = sadd.s32 1, %s309
                $region64: #{basic_conv_net_forward.3} parent=50 // loop_footer_branch
                  %308 = sbr.rel target = $region60
                $region65: #{basic_conv_net_forward.3} parent=50 // loop_exit
                  _
              $region51: #{basic_conv_net_forward.3} parent=35 // pred_fallthru
                _
            $region36: #{basic_conv_net_forward.3} parent=31 // pred_fallthru
              _
            // Predicated region
            $region37: #{basic_conv_net_forward.3} parent=31 // pred_check
              _
            $region38: #{basic_conv_net_forward.3} parent=31 // pred_check_branch
              %143 = sbr.rel (0) target = $region40
            $region39: #{basic_conv_net_forward.3} parent=31 // pred_region
              loop: start=0, step=1, limit=1
              $region41: #{basic_conv_net_forward.3} parent=39 // loop_pre_header
                _
              $region42: #{basic_conv_net_forward.3} parent=39 // loop_header
                %s146 = sphi 0, %s150
                %p147 = scmp.ge.s32.totalorder %s146, 1
                %s151 = sphi %s137, %s137
                %s152 = sphi %s134, %s134
              $region43: #{basic_conv_net_forward.3} parent=39 // loop_header_branch
                %149 = sbr.rel (%p147) target = $region47
              $region44: #{basic_conv_net_forward.3} parent=39 // loop_body
                %v153 = vld [vmem:[%s151] sm:$0xf]
                %154 = vst [vmem:[%s152] sm:$0xf] %v153
                %v155 = vld [vmem:[%s151 + $0x4] sm:$0xf]
                %156 = vst [vmem:[%s152 + $0x4] sm:$0xf] %v155
                %v157 = vld [vmem:[%s151 + $0x8] sm:$0xf]
                %158 = vst [vmem:[%s152 + $0x8] sm:$0xf] %v157
                %v159 = vld [vmem:[%s151 + $0xc] sm:$0xf]
                %160 = vst [vmem:[%s152 + $0xc] sm:$0xf] %v159
                %v161 = vld [vmem:[%s151 + $0x10] sm:$0xf]
                %162 = vst [vmem:[%s152 + $0x10] sm:$0xf] %v161
                %v163 = vld [vmem:[%s151 + $0x14] sm:$0xf]
                %164 = vst [vmem:[%s152 + $0x14] sm:$0xf] %v163
                %v165 = vld [vmem:[%s151 + $0x18] sm:$0xf]
                %166 = vst [vmem:[%s152 + $0x18] sm:$0xf] %v165
                %v167 = vld [vmem:[%s151 + $0x1c] sm:$0xf]
                %168 = vst [vmem:[%s152 + $0x1c] sm:$0xf] %v167
                %v169 = vld [vmem:[%s151 + $0x20] sm:$0xf]
                %170 = vst [vmem:[%s152 + $0x20] sm:$0xf] %v169
                %v171 = vld [vmem:[%s151 + $0x24] sm:$0xf]
                %172 = vst [vmem:[%s152 + $0x24] sm:$0xf] %v171
                %v173 = vld [vmem:[%s151 + $0x28] sm:$0xf]
                %174 = vst [vmem:[%s152 + $0x28] sm:$0xf] %v173
                %v175 = vld [vmem:[%s151 + $0x2c] sm:$0xf]
                %176 = vst [vmem:[%s152 + $0x2c] sm:$0xf] %v175
                %v177 = vld [vmem:[%s151 + $0x30] sm:$0xf]
                %178 = vst [vmem:[%s152 + $0x30] sm:$0xf] %v177
                %v179 = vld [vmem:[%s151 + $0x34] sm:$0xf]
                %180 = vst [vmem:[%s152 + $0x34] sm:$0xf] %v179
                %v181 = vld [vmem:[%s151 + $0x38] sm:$0xf]
                %182 = vst [vmem:[%s152 + $0x38] sm:$0xf] %v181
                %v183 = vld [vmem:[%s151 + $0x3c] sm:$0xf]
                %184 = vst [vmem:[%s152 + $0x3c] sm:$0xf] %v183
                %v185 = vld [vmem:[%s151 + $0x40] sm:$0xf]
                %186 = vst [vmem:[%s152 + $0x40] sm:$0xf] %v185
                %v187 = vld [vmem:[%s151 + $0x44] sm:$0xf]
                %188 = vst [vmem:[%s152 + $0x44] sm:$0xf] %v187
                %v189 = vld [vmem:[%s151 + $0x90] sm:$0xf]
                %190 = vst [vmem:[%s152 + $0x48] sm:$0xf] %v189
                %v191 = vld [vmem:[%s151 + $0x94] sm:$0xf]
                %192 = vst [vmem:[%s152 + $0x4c] sm:$0xf] %v191
                %v193 = vld [vmem:[%s151 + $0x98] sm:$0xf]
                %194 = vst [vmem:[%s152 + $0x50] sm:$0xf] %v193
                %v195 = vld [vmem:[%s151 + $0x9c] sm:$0xf]
                %196 = vst [vmem:[%s152 + $0x54] sm:$0xf] %v195
                %v197 = vld [vmem:[%s151 + $0xa0] sm:$0xf]
                %198 = vst [vmem:[%s152 + $0x58] sm:$0xf] %v197
                %v199 = vld [vmem:[%s151 + $0xa4] sm:$0xf]
                %200 = vst [vmem:[%s152 + $0x5c] sm:$0xf] %v199
                %v201 = vld [vmem:[%s151 + $0xa8] sm:$0xf]
                %202 = vst [vmem:[%s152 + $0x60] sm:$0xf] %v201
                %v203 = vld [vmem:[%s151 + $0xac] sm:$0xf]
                %204 = vst [vmem:[%s152 + $0x64] sm:$0xf] %v203
                %v205 = vld [vmem:[%s151 + $0xb0] sm:$0xf]
                %206 = vst [vmem:[%s152 + $0x68] sm:$0xf] %v205
                %v207 = vld [vmem:[%s151 + $0xb4] sm:$0xf]
                %208 = vst [vmem:[%s152 + $0x6c] sm:$0xf] %v207
                %v209 = vld [vmem:[%s151 + $0xb8] sm:$0xf]
                %210 = vst [vmem:[%s152 + $0x70] sm:$0xf] %v209
                %v211 = vld [vmem:[%s151 + $0xbc] sm:$0xf]
                %212 = vst [vmem:[%s152 + $0x74] sm:$0xf] %v211
                %v213 = vld [vmem:[%s151 + $0xc0] sm:$0xf]
                %214 = vst [vmem:[%s152 + $0x78] sm:$0xf] %v213
                %v215 = vld [vmem:[%s151 + $0xc4] sm:$0xf]
                %216 = vst [vmem:[%s152 + $0x7c] sm:$0xf] %v215
                %v217 = vld [vmem:[%s151 + $0xc8] sm:$0xf]
                %218 = vst [vmem:[%s152 + $0x80] sm:$0xf] %v217
                %v219 = vld [vmem:[%s151 + $0xcc] sm:$0xf]
                %220 = vst [vmem:[%s152 + $0x84] sm:$0xf] %v219
                %v221 = vld [vmem:[%s151 + $0xd0] sm:$0xf]
                %222 = vst [vmem:[%s152 + $0x88] sm:$0xf] %v221
                %v223 = vld [vmem:[%s151 + $0xd4] sm:$0xf]
                %224 = vst [vmem:[%s152 + $0x8c] sm:$0xf] %v223
                %v225 = vld [vmem:[%s151 + $0x120] sm:$0xf]
                %226 = vst [vmem:[%s152 + $0x90] sm:$0xf] %v225
                %v227 = vld [vmem:[%s151 + $0x124] sm:$0xf]
                %228 = vst [vmem:[%s152 + $0x94] sm:$0xf] %v227
                %v229 = vld [vmem:[%s151 + $0x128] sm:$0xf]
                %230 = vst [vmem:[%s152 + $0x98] sm:$0xf] %v229
                %v231 = vld [vmem:[%s151 + $0x12c] sm:$0xf]
                %232 = vst [vmem:[%s152 + $0x9c] sm:$0xf] %v231
                %v233 = vld [vmem:[%s151 + $0x130] sm:$0xf]
                %234 = vst [vmem:[%s152 + $0xa0] sm:$0xf] %v233
                %v235 = vld [vmem:[%s151 + $0x134] sm:$0xf]
                %236 = vst [vmem:[%s152 + $0xa4] sm:$0xf] %v235
                %v237 = vld [vmem:[%s151 + $0x138] sm:$0xf]
                %238 = vst [vmem:[%s152 + $0xa8] sm:$0xf] %v237
                %v239 = vld [vmem:[%s151 + $0x13c] sm:$0xf]
                %240 = vst [vmem:[%s152 + $0xac] sm:$0xf] %v239
                %v241 = vld [vmem:[%s151 + $0x140] sm:$0xf]
                %242 = vst [vmem:[%s152 + $0xb0] sm:$0xf] %v241
                %v243 = vld [vmem:[%s151 + $0x144] sm:$0xf]
                %244 = vst [vmem:[%s152 + $0xb4] sm:$0xf] %v243
                %v245 = vld [vmem:[%s151 + $0x148] sm:$0xf]
                %246 = vst [vmem:[%s152 + $0xb8] sm:$0xf] %v245
                %v247 = vld [vmem:[%s151 + $0x14c] sm:$0xf]
                %248 = vst [vmem:[%s152 + $0xbc] sm:$0xf] %v247
                %v249 = vld [vmem:[%s151 + $0x150] sm:$0xf]
                %250 = vst [vmem:[%s152 + $0xc0] sm:$0xf] %v249
                %v251 = vld [vmem:[%s151 + $0x154] sm:$0xf]
                %252 = vst [vmem:[%s152 + $0xc4] sm:$0xf] %v251
                %v253 = vld [vmem:[%s151 + $0x158] sm:$0xf]
                %254 = vst [vmem:[%s152 + $0xc8] sm:$0xf] %v253
                %v255 = vld [vmem:[%s151 + $0x15c] sm:$0xf]
                %256 = vst [vmem:[%s152 + $0xcc] sm:$0xf] %v255
                %v257 = vld [vmem:[%s151 + $0x160] sm:$0xf]
                %258 = vst [vmem:[%s152 + $0xd0] sm:$0xf] %v257
                %v259 = vld [vmem:[%s151 + $0x164] sm:$0xf]
                %260 = vst [vmem:[%s152 + $0xd4] sm:$0xf] %v259
                %v261 = vld [vmem:[%s151 + $0x1b0] sm:$0xf]
                %262 = vst [vmem:[%s152 + $0xd8] sm:$0xf] %v261
                %v263 = vld [vmem:[%s151 + $0x1b4] sm:$0xf]
                %264 = vst [vmem:[%s152 + $0xdc] sm:$0xf] %v263
                %v265 = vld [vmem:[%s151 + $0x1b8] sm:$0xf]
                %266 = vst [vmem:[%s152 + $0xe0] sm:$0xf] %v265
                %v267 = vld [vmem:[%s151 + $0x1bc] sm:$0xf]
                %268 = vst [vmem:[%s152 + $0xe4] sm:$0xf] %v267
                %v269 = vld [vmem:[%s151 + $0x1c0] sm:$0xf]
                %270 = vst [vmem:[%s152 + $0xe8] sm:$0xf] %v269
                %v271 = vld [vmem:[%s151 + $0x1c4] sm:$0xf]
                %272 = vst [vmem:[%s152 + $0xec] sm:$0xf] %v271
                %v273 = vld [vmem:[%s151 + $0x1c8] sm:$0xf]
                %274 = vst [vmem:[%s152 + $0xf0] sm:$0xf] %v273
                %v275 = vld [vmem:[%s151 + $0x1cc] sm:$0xf]
                %276 = vst [vmem:[%s152 + $0xf4] sm:$0xf] %v275
                %v277 = vld [vmem:[%s151 + $0x1d0] sm:$0xf]
                %278 = vst [vmem:[%s152 + $0xf8] sm:$0xf] %v277
                %v279 = vld [vmem:[%s151 + $0x1d4] sm:$0xf]
                %280 = vst [vmem:[%s152 + $0xfc] sm:$0xf] %v279
                %v281 = vld [vmem:[%s151 + $0x1d8] sm:$0xf]
                %282 = vst [vmem:[%s152 + $0x100] sm:$0xf] %v281
                %v283 = vld [vmem:[%s151 + $0x1dc] sm:$0xf]
                %284 = vst [vmem:[%s152 + $0x104] sm:$0xf] %v283
                %v285 = vld [vmem:[%s151 + $0x1e0] sm:$0xf]
                %286 = vst [vmem:[%s152 + $0x108] sm:$0xf] %v285
                %v287 = vld [vmem:[%s151 + $0x1e4] sm:$0xf]
                %288 = vst [vmem:[%s152 + $0x10c] sm:$0xf] %v287
                %v289 = vld [vmem:[%s151 + $0x1e8] sm:$0xf]
                %290 = vst [vmem:[%s152 + $0x110] sm:$0xf] %v289
                %v291 = vld [vmem:[%s151 + $0x1ec] sm:$0xf]
                %292 = vst [vmem:[%s152 + $0x114] sm:$0xf] %v291
                %v293 = vld [vmem:[%s151 + $0x1f0] sm:$0xf]
                %294 = vst [vmem:[%s152 + $0x118] sm:$0xf] %v293
                %v295 = vld [vmem:[%s151 + $0x1f4] sm:$0xf]
                %296 = vst [vmem:[%s152 + $0x11c] sm:$0xf] %v295
              $region45: #{basic_conv_net_forward.3} parent=39 // loop_footer
                %s150 = sadd.s32 1, %s146
              $region46: #{basic_conv_net_forward.3} parent=39 // loop_footer_branch
                %145 = sbr.rel target = $region42
              $region47: #{basic_conv_net_forward.3} parent=39 // loop_exit
                _
            $region40: #{basic_conv_net_forward.3} parent=31 // pred_fallthru
              _
          $region32: #{basic_conv_net_forward.3} parent=27 // pred_fallthru
            _
          %460 = vnop
        $region28: #{basic_conv_net_forward.3} parent=23 // pred_fallthru
          _
      $region24: #{basic_conv_net_forward.3} parent=5 // pred_fallthru
        _
      %p461 = scmp.le.s32.totalorder 1, %s9
      %p462 = scmp.lt.s32.totalorder %s9, 3
      %p463 = pnand %p461, %p462
      %p464 = pneg %p463
      // Predicated region
      $region66: #{basic_conv_net_forward.3} parent=5 // pred_check
        _
      $region67: #{basic_conv_net_forward.3} parent=5 // pred_check_branch
        %466 = sbr.rel (%p463) target = $region69
      $region68: #{basic_conv_net_forward.3} parent=5 // pred_region
        %s467 = ssub.s32 %s9, 1
        %s468 = sand.u32 %s22, 1
        %s469 = sand.u32 %s22, 1
        %s470 = smul.addr %s469, 288
        %s471 = scalar_lea.vmem [#allocation2], %s470
        // Predicated region
        $region70: #{basic_conv_net_forward.3} parent=68 // pred_check
          %p472 = pneg %p35
        $region71: #{basic_conv_net_forward.3} parent=68 // pred_check_branch
          %474 = sbr.rel (%p472) target = $region73
        $region72: #{basic_conv_net_forward.3} parent=68 // pred_region
          _
        $region73: #{basic_conv_net_forward.3} parent=68 // pred_fallthru
          _
        %s475 = sand.u32 %s22, 1
        %s476 = sand.u32 %s22, 1
        %s477 = smul.addr %s476, 288
        %s478 = scalar_lea.vmem [#allocation2], %s477
        %p479 = pneg %p35
        %p480 = pneg %p32
        %p481 = pneg %p56
        %p482 = pneg %p53
        %p483 = pneg %p77
        %p484 = pneg %p74
        %p485 = pneg %p103
        %p486 = pneg %p100
        %s487 = smul.u32 18, %s14
        %p488 = scmp.lt.s32.totalorder %s487, 35
        %s489 = scalar_select %p488, %s487, 35
        %s490 = smul.addr %s489, 4
        %s491 = scalar_lea.vmem %s3, %s490
        %s492 = smul.u32 18, %s14
        %s493 = smul.u32 18, %s14
        %p494 = scmp.lt.s32.totalorder %s493, 35
        %s495 = scalar_select %p494, %s493, 35
        %s496 = smul.addr %s495, 4
        %s497 = scalar_lea.vmem %s3, %s496
        %s498 = smul.u32 18, %s14
        %v500 = vld [vmem:[%s1] sm:$0xf]
        %v501 = vld [vmem:[%s1 + $0x4] sm:$0xf]
        %v502 = vld [vmem:[%s1 + $0x8] sm:$0xf]
        %v503 = vld [vmem:[%s1 + $0xc] sm:$0x1]
        %v504 = vld [vmem:[%s471] sm:$0xf]
        %v505 = vld [vmem:[%s471 + $0x4] sm:$0xf]
        %v506 = vld [vmem:[%s471 + $0x8] sm:$0xf]
        %v507 = vld [vmem:[%s471 + $0xc] sm:$0xf]
        %v508 = vld [vmem:[%s471 + $0x10] sm:$0xf]
        %v509 = vld [vmem:[%s471 + $0x14] sm:$0xf]
        %v510 = vld [vmem:[%s471 + $0x18] sm:$0xf]
        %v511 = vld [vmem:[%s471 + $0x1c] sm:$0xf]
        %v512 = vld [vmem:[%s471 + $0x20] sm:$0xf]
        %v513 = vld [vmem:[%s471 + $0x24] sm:$0xf]
        %v514 = vld [vmem:[%s471 + $0x28] sm:$0xf]
        %v515 = vld [vmem:[%s471 + $0x2c] sm:$0xf]
        %v516 = vld [vmem:[%s471 + $0x30] sm:$0xf]
        %v517 = vld [vmem:[%s471 + $0x34] sm:$0xf]
        %v518 = vld [vmem:[%s471 + $0x38] sm:$0xf]
        %v519 = vld [vmem:[%s471 + $0x3c] sm:$0xf]
        %v520 = vld [vmem:[%s471 + $0x40] sm:$0xf]
        %v521 = vld [vmem:[%s471 + $0x44] sm:$0xf]
        %v540 = vunpack.c.l.b16 %v504
        %v541 = vunpack.c.l.b16 %v505
        %v542 = vunpack.c.l.b16 %v506
        %v543 = vunpack.c.l.b16 %v507
        %v544 = vunpack.c.l.b16 %v508
        %v545 = vunpack.c.l.b16 %v509
        %v546 = vunpack.c.l.b16 %v510
        %v547 = vunpack.c.l.b16 %v511
        %v548 = vunpack.c.l.b16 %v512
        %v549 = vunpack.c.l.b16 %v513
        %v550 = vunpack.c.l.b16 %v514
        %v551 = vunpack.c.l.b16 %v515
        %v552 = vunpack.c.l.b16 %v516
        %v553 = vunpack.c.l.b16 %v517
        %v554 = vunpack.c.l.b16 %v518
        %v555 = vunpack.c.l.b16 %v519
        %v556 = vunpack.c.l.b16 %v520
        %v557 = vunpack.c.l.b16 %v521
        %v558 = vpack.c.b16 %v541, %v540
        %v559 = vpack.c.b16 %v543, %v542
        %v560 = vpack.c.b16 %v545, %v544
        %v561 = vpack.c.b16 %v547, %v546
        %v562 = vpack.c.b16 %v549, %v548
        %v563 = vpack.c.b16 %v551, %v550
        %v564 = vpack.c.b16 %v553, %v552
        %v565 = vpack.c.b16 %v555, %v554
        %v566 = vpack.c.b16 %v557, %v556
        %v571 = vunpack.c.l.b16 %v500
        %v572 = vunpack.c.l.b16 %v501
        %v573 = vunpack.c.l.b16 %v502
        %v574 = vunpack.c.l.b16 %v503
        %v575 = vpack.c.b16 %v572, %v571
        %v576 = vpack.c.b16 %v574, %v573
        %vm578 = vcmask 203776
        %v580 = vsel %vm578, %v558, 0
        %v583 = vsel %vm578, %v559, 0
        %v586 = vsel %vm578, %v560, 0
        %v589 = vsel %vm578, %v561, 0
        %v592 = vsel %vm578, %v562, 0
        %v595 = vsel %vm578, %v563, 0
        %v598 = vsel %vm578, %v564, 0
        %v601 = vsel %vm578, %v565, 0
        %v604 = vsel %vm578, %v566, 0
        %vm606 = vcmask 1043456
        %vm607 = vcmask 1044480
        %v608 = vsel %vm606, 4294967295, 65535
        %v609 = vsel %vm607, %v608, 0
        %v611 = vand.u32 %v576, %v609
        %613 = vmatprep.subr.bf16.mxu0 0
        %614 = vmatpush1.bf16.msra.mxu0 %v575
        %615 = vmatprep.subr.bf16.mxu0 0
        %616 = vmatpush1.bf16.msra.mxu0 %v611
        %617 = vmatprep.subr.bf16.mxu0 0
        %618 = vmatpush1.bf16.msra.mxu0 0
        %619 = vmatprep.subr.bf16.mxu0 0
        %620 = vmatpush1.bf16.msra.mxu0 0
        %621 = vmatprep.subr.bf16.mxu0 0
        %622 = vmatpush1.bf16.msra.mxu0 0
        %623 = vmatprep.subr.bf16.mxu0 0
        %624 = vmatpush1.bf16.msra.mxu0 0
        %625 = vmatprep.subr.bf16.mxu0 0
        %626 = vmatpush1.bf16.msra.mxu0 0
        %627 = vmatprep.subr.bf16.mxu0 0
        %628 = vmatpush1.bf16.msra.mxu0 0
        %629 = vmatprep.subr.bf16.mxu0 0
        %630 = vmatpush1.bf16.msra.mxu0 0
        %631 = vmatprep.subr.bf16.mxu0 0
        %632 = vmatpush1.bf16.msra.mxu0 0
        %633 = vmatprep.subr.bf16.mxu0 0
        %634 = vmatpush1.bf16.msra.mxu0 0
        %635 = vmatprep.subr.bf16.mxu0 0
        %636 = vmatpush1.bf16.msra.mxu0 0
        %637 = vmatprep.subr.bf16.mxu0 0
        %638 = vmatpush1.bf16.msra.mxu0 0
        %639 = vmatprep.subr.bf16.mxu0 0
        %640 = vmatpush1.bf16.msra.mxu0 0
        %641 = vmatprep.subr.bf16.mxu0 0
        %642 = vmatpush1.bf16.msra.mxu0 0
        %643 = vmatprep.subr.bf16.mxu0 0
        %644 = vmatpush1.bf16.msra.mxu0 0
        %645 = vmatprep.mubr.bf16.mxu0 0
        %646 = vmatmul.mubr.bf16.gmra.mrb[0].mxu0 %v580
        %v647 = vpop.f32.mrb[0].mxu0
        %v648 = vadd.f32 0.0, %v647
        %v649 = vpop.f32.mrb[0].mxu0
        %v650 = vpop.f32.mrb[0].mxu0
        %v651 = vadd.f32 0.0, %v650
        %v652 = vpop.f32.mrb[0].mxu0
        %653 = vmatprep.mubr.bf16.mxu0 0
        %654 = vmatmul.mubr.bf16.gmra.mrb[0].mxu0 %v583
        %v655 = vpop.f32.mrb[0].mxu0
        %v656 = vadd.f32 0.0, %v655
        %v657 = vpop.f32.mrb[0].mxu0
        %v658 = vpop.f32.mrb[0].mxu0
        %v659 = vadd.f32 0.0, %v658
        %v660 = vpop.f32.mrb[0].mxu0
        %661 = vmatprep.mubr.bf16.mxu0 0
        %662 = vmatmul.mubr.bf16.gmra.mrb[0].mxu0 %v586
        %v663 = vpop.f32.mrb[0].mxu0
        %v664 = vadd.f32 0.0, %v663
        %v665 = vpop.f32.mrb[0].mxu0
        %v666 = vpop.f32.mrb[0].mxu0
        %v667 = vadd.f32 0.0, %v666
        %v668 = vpop.f32.mrb[0].mxu0
        %669 = vmatprep.mubr.bf16.mxu0 0
        %670 = vmatmul.mubr.bf16.gmra.mrb[0].mxu0 %v589
        %v671 = vpop.f32.mrb[0].mxu0
        %v672 = vadd.f32 0.0, %v671
        %v673 = vpop.f32.mrb[0].mxu0
        %v674 = vpop.f32.mrb[0].mxu0
        %v675 = vadd.f32 0.0, %v674
        %v676 = vpop.f32.mrb[0].mxu0
        %677 = vmatprep.mubr.bf16.mxu0 0
        %678 = vmatmul.mubr.bf16.gmra.mrb[0].mxu0 %v592
        %v679 = vpop.f32.mrb[0].mxu0
        %v680 = vadd.f32 0.0, %v679
        %v681 = vpop.f32.mrb[0].mxu0
        %v682 = vpop.f32.mrb[0].mxu0
        %v683 = vadd.f32 0.0, %v682
        %v684 = vpop.f32.mrb[0].mxu0
        %685 = vmatprep.mubr.bf16.mxu0 0
        %686 = vmatmul.mubr.bf16.gmra.mrb[0].mxu0 %v595
        %v687 = vpop.f32.mrb[0].mxu0
        %v688 = vadd.f32 0.0, %v687
        %v689 = vpop.f32.mrb[0].mxu0
        %v690 = vpop.f32.mrb[0].mxu0
        %v691 = vadd.f32 0.0, %v690
        %v692 = vpop.f32.mrb[0].mxu0
        %693 = vmatprep.mubr.bf16.mxu0 0
        %694 = vmatmul.mubr.bf16.gmra.mrb[0].mxu0 %v598
        %v695 = vpop.f32.mrb[0].mxu0
        %v696 = vadd.f32 0.0, %v695
        %v697 = vpop.f32.mrb[0].mxu0
        %v698 = vpop.f32.mrb[0].mxu0
        %v699 = vadd.f32 0.0, %v698
        %v700 = vpop.f32.mrb[0].mxu0
        %701 = vmatprep.mubr.bf16.mxu0 0
        %702 = vmatmul.mubr.bf16.gmra.mrb[0].mxu0 %v601
        %v703 = vpop.f32.mrb[0].mxu0
        %v704 = vadd.f32 0.0, %v703
        %v705 = vpop.f32.mrb[0].mxu0
        %v706 = vpop.f32.mrb[0].mxu0
        %v707 = vadd.f32 0.0, %v706
        %v708 = vpop.f32.mrb[0].mxu0
        %709 = vmatprep.mubr.bf16.mxu0 0
        %710 = vmatmul.mubr.bf16.gmra.mrb[0].mxu0 %v604
        %v711 = vpop.f32.mrb[0].mxu0
        %v712 = vadd.f32 0.0, %v711
        %v713 = vpop.f32.mrb[0].mxu0
        %v714 = vpop.f32.mrb[0].mxu0
        %v715 = vadd.f32 0.0, %v714
        %v716 = vpop.f32.mrb[0].mxu0
        %717 = vdwg.mxu0
        %s718 = scalar_lea.vmem %s471, 72 [#allocation2]
        %v719 = vld [vmem:[%s718] sm:$0xf]
        %v720 = vld [vmem:[%s718 + $0x4] sm:$0xf]
        %v721 = vld [vmem:[%s718 + $0x8] sm:$0xf]
        %v722 = vld [vmem:[%s718 + $0xc] sm:$0xf]
        %v723 = vld [vmem:[%s718 + $0x10] sm:$0xf]
        %v724 = vld [vmem:[%s718 + $0x14] sm:$0xf]
        %v725 = vld [vmem:[%s718 + $0x18] sm:$0xf]
        %v726 = vld [vmem:[%s718 + $0x1c] sm:$0xf]
        %v727 = vld [vmem:[%s718 + $0x20] sm:$0xf]
        %v728 = vld [vmem:[%s718 + $0x24] sm:$0xf]
        %v729 = vld [vmem:[%s718 + $0x28] sm:$0xf]
        %v730 = vld [vmem:[%s718 + $0x2c] sm:$0xf]
        %v731 = vld [vmem:[%s718 + $0x30] sm:$0xf]
        %v732 = vld [vmem:[%s718 + $0x34] sm:$0xf]
        %v733 = vld [vmem:[%s718 + $0x38] sm:$0xf]
        %v734 = vld [vmem:[%s718 + $0x3c] sm:$0xf]
        %v735 = vld [vmem:[%s718 + $0x40] sm:$0xf]
        %v736 = vld [vmem:[%s718 + $0x44] sm:$0xf]
        %v755 = vunpack.c.l.b16 %v719
        %v756 = vunpack.c.l.b16 %v720
        %v757 = vunpack.c.l.b16 %v721
        %v758 = vunpack.c.l.b16 %v722
        %v759 = vunpack.c.l.b16 %v723
        %v760 = vunpack.c.l.b16 %v724
        %v761 = vunpack.c.l.b16 %v725
        %v762 = vunpack.c.l.b16 %v726
        %v763 = vunpack.c.l.b16 %v727
        %v764 = vunpack.c.l.b16 %v728
        %v765 = vunpack.c.l.b16 %v729
        %v766 = vunpack.c.l.b16 %v730
        %v767 = vunpack.c.l.b16 %v731
        %v768 = vunpack.c.l.b16 %v732
        %v769 = vunpack.c.l.b16 %v733
        %v770 = vunpack.c.l.b16 %v734
        %v771 = vunpack.c.l.b16 %v735
        %v772 = vunpack.c.l.b16 %v736
        %v773 = vpack.c.b16 %v756, %v755
        %v774 = vpack.c.b16 %v758, %v757
        %v775 = vpack.c.b16 %v760, %v759
        %v776 = vpack.c.b16 %v762, %v761
        %v777 = vpack.c.b16 %v764, %v763
        %v778 = vpack.c.b16 %v766, %v765
        %v779 = vpack.c.b16 %v768, %v767
        %v780 = vpack.c.b16 %v770, %v769
        %v781 = vpack.c.b16 %v772, %v771
        %v783 = vsel %vm578, %v773, 0
        %v786 = vsel %vm578, %v774, 0
        %v789 = vsel %vm578, %v775, 0
        %v792 = vsel %vm578, %v776, 0
        %v795 = vsel %vm578, %v777, 0
        %v798 = vsel %vm578, %v778, 0
        %v801 = vsel %vm578, %v779, 0
        %v804 = vsel %vm578, %v780, 0
        %v807 = vsel %vm578, %v781, 0
        %809 = vmatprep.subr.bf16.mxu0 0
        %810 = vmatpush1.bf16.msra.mxu0 %v575
        %811 = vmatprep.subr.bf16.mxu0 0
        %812 = vmatpush1.bf16.msra.mxu0 %v611
        %813 = vmatprep.subr.bf16.mxu0 0
        %814 = vmatpush1.bf16.msra.mxu0 0
        %815 = vmatprep.subr.bf16.mxu0 0
        %816 = vmatpush1.bf16.msra.mxu0 0
        %817 = vmatprep.subr.bf16.mxu0 0
        %818 = vmatpush1.bf16.msra.mxu0 0
        %819 = vmatprep.subr.bf16.mxu0 0
        %820 = vmatpush1.bf16.msra.mxu0 0
        %821 = vmatprep.subr.bf16.mxu0 0
        %822 = vmatpush1.bf16.msra.mxu0 0
        %823 = vmatprep.subr.bf16.mxu0 0
        %824 = vmatpush1.bf16.msra.mxu0 0
        %825 = vmatprep.subr.bf16.mxu0 0
        %826 = vmatpush1.bf16.msra.mxu0 0
        %827 = vmatprep.subr.bf16.mxu0 0
        %828 = vmatpush1.bf16.msra.mxu0 0
        %829 = vmatprep.subr.bf16.mxu0 0
        %830 = vmatpush1.bf16.msra.mxu0 0
        %831 = vmatprep.subr.bf16.mxu0 0
        %832 = vmatpush1.bf16.msra.mxu0 0
        %833 = vmatprep.subr.bf16.mxu0 0
        %834 = vmatpush1.bf16.msra.mxu0 0
        %835 = vmatprep.subr.bf16.mxu0 0
        %836 = vmatpush1.bf16.msra.mxu0 0
        %837 = vmatprep.subr.bf16.mxu0 0
        %838 = vmatpush1.bf16.msra.mxu0 0
        %839 = vmatprep.subr.bf16.mxu0 0
        %840 = vmatpush1.bf16.msra.mxu0 0
        %841 = vmatprep.mubr.bf16.mxu0 0
        %842 = vmatmul.mubr.bf16.gmra.mrb[0].mxu0 %v783
        %v843 = vpop.f32.mrb[0].mxu0
        %v844 = vadd.f32 0.0, %v843
        %v845 = vpop.f32.mrb[0].mxu0
        %v846 = vpop.f32.mrb[0].mxu0
        %v847 = vadd.f32 0.0, %v846
        %v848 = vpop.f32.mrb[0].mxu0
        %849 = vmatprep.mubr.bf16.mxu0 0
        %850 = vmatmul.mubr.bf16.gmra.mrb[0].mxu0 %v786
        %v851 = vpop.f32.mrb[0].mxu0
        %v852 = vadd.f32 0.0, %v851
        %v853 = vpop.f32.mrb[0].mxu0
        %v854 = vpop.f32.mrb[0].mxu0
        %v855 = vadd.f32 0.0, %v854
        %v856 = vpop.f32.mrb[0].mxu0
        %857 = vmatprep.mubr.bf16.mxu0 0
        %858 = vmatmul.mubr.bf16.gmra.mrb[0].mxu0 %v789
        %v859 = vpop.f32.mrb[0].mxu0
        %v860 = vadd.f32 0.0, %v859
        %v861 = vpop.f32.mrb[0].mxu0
        %v862 = vpop.f32.mrb[0].mxu0
        %v863 = vadd.f32 0.0, %v862
        %v864 = vpop.f32.mrb[0].mxu0
        %865 = vmatprep.mubr.bf16.mxu0 0
        %866 = vmatmul.mubr.bf16.gmra.mrb[0].mxu0 %v792
        %v867 = vpop.f32.mrb[0].mxu0
        %v868 = vadd.f32 0.0, %v867
        %v869 = vpop.f32.mrb[0].mxu0
        %v870 = vpop.f32.mrb[0].mxu0
        %v871 = vadd.f32 0.0, %v870
        %v872 = vpop.f32.mrb[0].mxu0
        %873 = vmatprep.mubr.bf16.mxu0 0
        %874 = vmatmul.mubr.bf16.gmra.mrb[0].mxu0 %v795
        %v875 = vpop.f32.mrb[0].mxu0
        %v876 = vadd.f32 0.0, %v875
        %v877 = vpop.f32.mrb[0].mxu0
        %v878 = vpop.f32.mrb[0].mxu0
        %v879 = vadd.f32 0.0, %v878
        %v880 = vpop.f32.mrb[0].mxu0
        %881 = vmatprep.mubr.bf16.mxu0 0
        %882 = vmatmul.mubr.bf16.gmra.mrb[0].mxu0 %v798
        %v883 = vpop.f32.mrb[0].mxu0
        %v884 = vadd.f32 0.0, %v883
        %v885 = vpop.f32.mrb[0].mxu0
        %v886 = vpop.f32.mrb[0].mxu0
        %v887 = vadd.f32 0.0, %v886
        %v888 = vpop.f32.mrb[0].mxu0
        %889 = vmatprep.mubr.bf16.mxu0 0
        %890 = vmatmul.mubr.bf16.gmra.mrb[0].mxu0 %v801
        %v891 = vpop.f32.mrb[0].mxu0
        %v892 = vadd.f32 0.0, %v891
        %v893 = vpop.f32.mrb[0].mxu0
        %v894 = vpop.f32.mrb[0].mxu0
        %v895 = vadd.f32 0.0, %v894
        %v896 = vpop.f32.mrb[0].mxu0
        %897 = vmatprep.mubr.bf16.mxu0 0
        %898 = vmatmul.mubr.bf16.gmra.mrb[0].mxu0 %v804
        %v899 = vpop.f32.mrb[0].mxu0
        %v900 = vadd.f32 0.0, %v899
        %v901 = vpop.f32.mrb[0].mxu0
        %v902 = vpop.f32.mrb[0].mxu0
        %v903 = vadd.f32 0.0, %v902
        %v904 = vpop.f32.mrb[0].mxu0
        %905 = vmatprep.mubr.bf16.mxu0 0
        %906 = vmatmul.mubr.bf16.gmra.mrb[0].mxu0 %v807
        %v907 = vpop.f32.mrb[0].mxu0
        %v908 = vadd.f32 0.0, %v907
        %v909 = vpop.f32.mrb[0].mxu0
        %v910 = vpop.f32.mrb[0].mxu0
        %v911 = vadd.f32 0.0, %v910
        %v912 = vpop.f32.mrb[0].mxu0
        %913 = vdwg.mxu0
        %v914 = vmax.f32 %v648, %v844
        %v915 = vmax.f32 %v651, %v847
        %v916 = vmax.f32 %v656, %v852
        %v917 = vmax.f32 %v659, %v855
        %v918 = vmax.f32 %v664, %v860
        %v919 = vmax.f32 %v667, %v863
        %v920 = vmax.f32 %v672, %v868
        %v921 = vmax.f32 %v675, %v871
        %v922 = vmax.f32 %v680, %v876
        %v923 = vmax.f32 %v683, %v879
        %v924 = vmax.f32 %v688, %v884
        %v925 = vmax.f32 %v691, %v887
        %v926 = vmax.f32 %v696, %v892
        %v927 = vmax.f32 %v699, %v895
        %v928 = vmax.f32 %v704, %v900
        %v929 = vmax.f32 %v707, %v903
        %v930 = vmax.f32 %v712, %v908
        %v931 = vmax.f32 %v715, %v911
        %s932 = scalar_lea.vmem %s471, 144 [#allocation2]
        %v933 = vld [vmem:[%s932] sm:$0xf]
        %v934 = vld [vmem:[%s932 + $0x4] sm:$0xf]
        %v935 = vld [vmem:[%s932 + $0x8] sm:$0xf]
        %v936 = vld [vmem:[%s932 + $0xc] sm:$0xf]
        %v937 = vld [vmem:[%s932 + $0x10] sm:$0xf]
        %v938 = vld [vmem:[%s932 + $0x14] sm:$0xf]
        %v939 = vld [vmem:[%s932 + $0x18] sm:$0xf]
        %v940 = vld [vmem:[%s932 + $0x1c] sm:$0xf]
        %v941 = vld [vmem:[%s932 + $0x20] sm:$0xf]
        %v942 = vld [vmem:[%s932 + $0x24] sm:$0xf]
        %v943 = vld [vmem:[%s932 + $0x28] sm:$0xf]
        %v944 = vld [vmem:[%s932 + $0x2c] sm:$0xf]
        %v945 = vld [vmem:[%s932 + $0x30] sm:$0xf]
        %v946 = vld [vmem:[%s932 + $0x34] sm:$0xf]
        %v947 = vld [vmem:[%s932 + $0x38] sm:$0xf]
        %v948 = vld [vmem:[%s932 + $0x3c] sm:$0xf]
        %v949 = vld [vmem:[%s932 + $0x40] sm:$0xf]
        %v950 = vld [vmem:[%s932 + $0x44] sm:$0xf]
        %v969 = vunpack.c.l.b16 %v933
        %v970 = vunpack.c.l.b16 %v934
        %v971 = vunpack.c.l.b16 %v935
        %v972 = vunpack.c.l.b16 %v936
        %v973 = vunpack.c.l.b16 %v937
        %v974 = vunpack.c.l.b16 %v938
        %v975 = vunpack.c.l.b16 %v939
        %v976 = vunpack.c.l.b16 %v940
        %v977 = vunpack.c.l.b16 %v941
        %v978 = vunpack.c.l.b16 %v942
        %v979 = vunpack.c.l.b16 %v943
        %v980 = vunpack.c.l.b16 %v944
        %v981 = vunpack.c.l.b16 %v945
        %v982 = vunpack.c.l.b16 %v946
        %v983 = vunpack.c.l.b16 %v947
        %v984 = vunpack.c.l.b16 %v948
        %v985 = vunpack.c.l.b16 %v949
        %v986 = vunpack.c.l.b16 %v950
        %v987 = vpack.c.b16 %v970, %v969
        %v988 = vpack.c.b16 %v972, %v971
        %v989 = vpack.c.b16 %v974, %v973
        %v990 = vpack.c.b16 %v976, %v975
        %v991 = vpack.c.b16 %v978, %v977
        %v992 = vpack.c.b16 %v980, %v979
        %v993 = vpack.c.b16 %v982, %v981
        %v994 = vpack.c.b16 %v984, %v983
        %v995 = vpack.c.b16 %v986, %v985
        %v997 = vsel %vm578, %v987, 0
        %v1000 = vsel %vm578, %v988, 0
        %v1003 = vsel %vm578, %v989, 0
        %v1006 = vsel %vm578, %v990, 0
        %v1009 = vsel %vm578, %v991, 0
        %v1012 = vsel %vm578, %v992, 0
        %v1015 = vsel %vm578, %v993, 0
        %v1018 = vsel %vm578, %v994, 0
        %v1021 = vsel %vm578, %v995, 0
        %1023 = vmatprep.subr.bf16.mxu0 0
        %1024 = vmatpush1.bf16.msra.mxu0 %v575
        %1025 = vmatprep.subr.bf16.mxu0 0
        %1026 = vmatpush1.bf16.msra.mxu0 %v611
        %1027 = vmatprep.subr.bf16.mxu0 0
        %1028 = vmatpush1.bf16.msra.mxu0 0
        %1029 = vmatprep.subr.bf16.mxu0 0
        %1030 = vmatpush1.bf16.msra.mxu0 0
        %1031 = vmatprep.subr.bf16.mxu0 0
        %1032 = vmatpush1.bf16.msra.mxu0 0
        %1033 = vmatprep.subr.bf16.mxu0 0
        %1034 = vmatpush1.bf16.msra.mxu0 0
        %1035 = vmatprep.subr.bf16.mxu0 0
        %1036 = vmatpush1.bf16.msra.mxu0 0
        %1037 = vmatprep.subr.bf16.mxu0 0
        %1038 = vmatpush1.bf16.msra.mxu0 0
        %1039 = vmatprep.subr.bf16.mxu0 0
        %1040 = vmatpush1.bf16.msra.mxu0 0
        %1041 = vmatprep.subr.bf16.mxu0 0
        %1042 = vmatpush1.bf16.msra.mxu0 0
        %1043 = vmatprep.subr.bf16.mxu0 0
        %1044 = vmatpush1.bf16.msra.mxu0 0
        %1045 = vmatprep.subr.bf16.mxu0 0
        %1046 = vmatpush1.bf16.msra.mxu0 0
        %1047 = vmatprep.subr.bf16.mxu0 0
        %1048 = vmatpush1.bf16.msra.mxu0 0
        %1049 = vmatprep.subr.bf16.mxu0 0
        %1050 = vmatpush1.bf16.msra.mxu0 0
        %1051 = vmatprep.subr.bf16.mxu0 0
        %1052 = vmatpush1.bf16.msra.mxu0 0
        %1053 = vmatprep.subr.bf16.mxu0 0
        %1054 = vmatpush1.bf16.msra.mxu0 0
        %1055 = vmatprep.mubr.bf16.mxu0 0
        %1056 = vmatmul.mubr.bf16.gmra.mrb[0].mxu0 %v997
        %v1057 = vpop.f32.mrb[0].mxu0
        %v1058 = vadd.f32 0.0, %v1057
        %v1059 = vpop.f32.mrb[0].mxu0
        %v1060 = vpop.f32.mrb[0].mxu0
        %v1061 = vadd.f32 0.0, %v1060
        %v1062 = vpop.f32.mrb[0].mxu0
        %1063 = vmatprep.mubr.bf16.mxu0 0
        %1064 = vmatmul.mubr.bf16.gmra.mrb[0].mxu0 %v1000
        %v1065 = vpop.f32.mrb[0].mxu0
        %v1066 = vadd.f32 0.0, %v1065
        %v1067 = vpop.f32.mrb[0].mxu0
        %v1068 = vpop.f32.mrb[0].mxu0
        %v1069 = vadd.f32 0.0, %v1068
        %v1070 = vpop.f32.mrb[0].mxu0
        %1071 = vmatprep.mubr.bf16.mxu0 0
        %1072 = vmatmul.mubr.bf16.gmra.mrb[0].mxu0 %v1003
        %v1073 = vpop.f32.mrb[0].mxu0
        %v1074 = vadd.f32 0.0, %v1073
        %v1075 = vpop.f32.mrb[0].mxu0
        %v1076 = vpop.f32.mrb[0].mxu0
        %v1077 = vadd.f32 0.0, %v1076
        %v1078 = vpop.f32.mrb[0].mxu0
        %1079 = vmatprep.mubr.bf16.mxu0 0
        %1080 = vmatmul.mubr.bf16.gmra.mrb[0].mxu0 %v1006
        %v1081 = vpop.f32.mrb[0].mxu0
        %v1082 = vadd.f32 0.0, %v1081
        %v1083 = vpop.f32.mrb[0].mxu0
        %v1084 = vpop.f32.mrb[0].mxu0
        %v1085 = vadd.f32 0.0, %v1084
        %v1086 = vpop.f32.mrb[0].mxu0
        %1087 = vmatprep.mubr.bf16.mxu0 0
        %1088 = vmatmul.mubr.bf16.gmra.mrb[0].mxu0 %v1009
        %v1089 = vpop.f32.mrb[0].mxu0
        %v1090 = vadd.f32 0.0, %v1089
        %v1091 = vpop.f32.mrb[0].mxu0
        %v1092 = vpop.f32.mrb[0].mxu0
        %v1093 = vadd.f32 0.0, %v1092
        %v1094 = vpop.f32.mrb[0].mxu0
        %1095 = vmatprep.mubr.bf16.mxu0 0
        %1096 = vmatmul.mubr.bf16.gmra.mrb[0].mxu0 %v1012
        %v1097 = vpop.f32.mrb[0].mxu0
        %v1098 = vadd.f32 0.0, %v1097
        %v1099 = vpop.f32.mrb[0].mxu0
        %v1100 = vpop.f32.mrb[0].mxu0
        %v1101 = vadd.f32 0.0, %v1100
        %v1102 = vpop.f32.mrb[0].mxu0
        %1103 = vmatprep.mubr.bf16.mxu0 0
        %1104 = vmatmul.mubr.bf16.gmra.mrb[0].mxu0 %v1015
        %v1105 = vpop.f32.mrb[0].mxu0
        %v1106 = vadd.f32 0.0, %v1105
        %v1107 = vpop.f32.mrb[0].mxu0
        %v1108 = vpop.f32.mrb[0].mxu0
        %v1109 = vadd.f32 0.0, %v1108
        %v1110 = vpop.f32.mrb[0].mxu0
        %1111 = vmatprep.mubr.bf16.mxu0 0
        %1112 = vmatmul.mubr.bf16.gmra.mrb[0].mxu0 %v1018
        %v1113 = vpop.f32.mrb[0].mxu0
        %v1114 = vadd.f32 0.0, %v1113
        %v1115 = vpop.f32.mrb[0].mxu0
        %v1116 = vpop.f32.mrb[0].mxu0
        %v1117 = vadd.f32 0.0, %v1116
        %v1118 = vpop.f32.mrb[0].mxu0
        %1119 = vmatprep.mubr.bf16.mxu0 0
        %1120 = vmatmul.mubr.bf16.gmra.mrb[0].mxu0 %v1021
        %v1121 = vpop.f32.mrb[0].mxu0
        %v1122 = vadd.f32 0.0, %v1121
        %v1123 = vpop.f32.mrb[0].mxu0
        %v1124 = vpop.f32.mrb[0].mxu0
        %v1125 = vadd.f32 0.0, %v1124
        %v1126 = vpop.f32.mrb[0].mxu0
        %1127 = vdwg.mxu0
        %v1128 = vmax.f32 %v914, %v1058
        %v1129 = vmax.f32 %v915, %v1061
        %v1130 = vmax.f32 %v916, %v1066
        %v1131 = vmax.f32 %v917, %v1069
        %v1132 = vmax.f32 %v918, %v1074
        %v1133 = vmax.f32 %v919, %v1077
        %v1134 = vmax.f32 %v920, %v1082
        %v1135 = vmax.f32 %v921, %v1085
        %v1136 = vmax.f32 %v922, %v1090
        %v1137 = vmax.f32 %v923, %v1093
        %v1138 = vmax.f32 %v924, %v1098
        %v1139 = vmax.f32 %v925, %v1101
        %v1140 = vmax.f32 %v926, %v1106
        %v1141 = vmax.f32 %v927, %v1109
        %v1142 = vmax.f32 %v928, %v1114
        %v1143 = vmax.f32 %v929, %v1117
        %v1144 = vmax.f32 %v930, %v1122
        %v1145 = vmax.f32 %v931, %v1125
        %s1146 = scalar_lea.vmem %s471, 216 [#allocation2]
        %v1147 = vld [vmem:[%s1146] sm:$0xf]
        %v1148 = vld [vmem:[%s1146 + $0x4] sm:$0xf]
        %v1149 = vld [vmem:[%s1146 + $0x8] sm:$0xf]
        %v1150 = vld [vmem:[%s1146 + $0xc] sm:$0xf]
        %v1151 = vld [vmem:[%s1146 + $0x10] sm:$0xf]
        %v1152 = vld [vmem:[%s1146 + $0x14] sm:$0xf]
        %v1153 = vld [vmem:[%s1146 + $0x18] sm:$0xf]
        %v1154 = vld [vmem:[%s1146 + $0x1c] sm:$0xf]
        %v1155 = vld [vmem:[%s1146 + $0x20] sm:$0xf]
        %v1156 = vld [vmem:[%s1146 + $0x24] sm:$0xf]
        %v1157 = vld [vmem:[%s1146 + $0x28] sm:$0xf]
        %v1158 = vld [vmem:[%s1146 + $0x2c] sm:$0xf]
        %v1159 = vld [vmem:[%s1146 + $0x30] sm:$0xf]
        %v1160 = vld [vmem:[%s1146 + $0x34] sm:$0xf]
        %v1161 = vld [vmem:[%s1146 + $0x38] sm:$0xf]
        %v1162 = vld [vmem:[%s1146 + $0x3c] sm:$0xf]
        %v1163 = vld [vmem:[%s1146 + $0x40] sm:$0xf]
        %v1164 = vld [vmem:[%s1146 + $0x44] sm:$0xf]
        %v1183 = vunpack.c.l.b16 %v1147
        %v1184 = vunpack.c.l.b16 %v1148
        %v1185 = vunpack.c.l.b16 %v1149
        %v1186 = vunpack.c.l.b16 %v1150
        %v1187 = vunpack.c.l.b16 %v1151
        %v1188 = vunpack.c.l.b16 %v1152
        %v1189 = vunpack.c.l.b16 %v1153
        %v1190 = vunpack.c.l.b16 %v1154
        %v1191 = vunpack.c.l.b16 %v1155
        %v1192 = vunpack.c.l.b16 %v1156
        %v1193 = vunpack.c.l.b16 %v1157
        %v1194 = vunpack.c.l.b16 %v1158
        %v1195 = vunpack.c.l.b16 %v1159
        %v1196 = vunpack.c.l.b16 %v1160
        %v1197 = vunpack.c.l.b16 %v1161
        %v1198 = vunpack.c.l.b16 %v1162
        %v1199 = vunpack.c.l.b16 %v1163
        %v1200 = vunpack.c.l.b16 %v1164
        %v1201 = vpack.c.b16 %v1184, %v1183
        %v1202 = vpack.c.b16 %v1186, %v1185
        %v1203 = vpack.c.b16 %v1188, %v1187
        %v1204 = vpack.c.b16 %v1190, %v1189
        %v1205 = vpack.c.b16 %v1192, %v1191
        %v1206 = vpack.c.b16 %v1194, %v1193
        %v1207 = vpack.c.b16 %v1196, %v1195
        %v1208 = vpack.c.b16 %v1198, %v1197
        %v1209 = vpack.c.b16 %v1200, %v1199
        %v1211 = vsel %vm578, %v1201, 0
        %v1214 = vsel %vm578, %v1202, 0
        %v1217 = vsel %vm578, %v1203, 0
        %v1220 = vsel %vm578, %v1204, 0
        %v1223 = vsel %vm578, %v1205, 0
        %v1226 = vsel %vm578, %v1206, 0
        %v1229 = vsel %vm578, %v1207, 0
        %v1232 = vsel %vm578, %v1208, 0
        %v1235 = vsel %vm578, %v1209, 0
        %1237 = vmatprep.subr.bf16.mxu0 0
        %1238 = vmatpush1.bf16.msra.mxu0 %v575
        %1239 = vmatprep.subr.bf16.mxu0 0
        %1240 = vmatpush1.bf16.msra.mxu0 %v611
        %1241 = vmatprep.subr.bf16.mxu0 0
        %1242 = vmatpush1.bf16.msra.mxu0 0
        %1243 = vmatprep.subr.bf16.mxu0 0
        %1244 = vmatpush1.bf16.msra.mxu0 0
        %1245 = vmatprep.subr.bf16.mxu0 0
        %1246 = vmatpush1.bf16.msra.mxu0 0
        %1247 = vmatprep.subr.bf16.mxu0 0
        %1248 = vmatpush1.bf16.msra.mxu0 0
        %1249 = vmatprep.subr.bf16.mxu0 0
        %1250 = vmatpush1.bf16.msra.mxu0 0
        %1251 = vmatprep.subr.bf16.mxu0 0
        %1252 = vmatpush1.bf16.msra.mxu0 0
        %1253 = vmatprep.subr.bf16.mxu0 0
        %1254 = vmatpush1.bf16.msra.mxu0 0
        %1255 = vmatprep.subr.bf16.mxu0 0
        %1256 = vmatpush1.bf16.msra.mxu0 0
        %1257 = vmatprep.subr.bf16.mxu0 0
        %1258 = vmatpush1.bf16.msra.mxu0 0
        %1259 = vmatprep.subr.bf16.mxu0 0
        %1260 = vmatpush1.bf16.msra.mxu0 0
        %1261 = vmatprep.subr.bf16.mxu0 0
        %1262 = vmatpush1.bf16.msra.mxu0 0
        %1263 = vmatprep.subr.bf16.mxu0 0
        %1264 = vmatpush1.bf16.msra.mxu0 0
        %1265 = vmatprep.subr.bf16.mxu0 0
        %1266 = vmatpush1.bf16.msra.mxu0 0
        %1267 = vmatprep.subr.bf16.mxu0 0
        %1268 = vmatpush1.bf16.msra.mxu0 0
        %1269 = vmatprep.mubr.bf16.mxu0 0
        %1270 = vmatmul.mubr.bf16.gmra.mrb[0].mxu0 %v1211
        %v1271 = vpop.f32.mrb[0].mxu0
        %v1272 = vadd.f32 0.0, %v1271
        %v1273 = vpop.f32.mrb[0].mxu0
        %v1274 = vpop.f32.mrb[0].mxu0
        %v1275 = vadd.f32 0.0, %v1274
        %v1276 = vpop.f32.mrb[0].mxu0
        %1277 = vmatprep.mubr.bf16.mxu0 0
        %1278 = vmatmul.mubr.bf16.gmra.mrb[0].mxu0 %v1214
        %v1279 = vpop.f32.mrb[0].mxu0
        %v1280 = vadd.f32 0.0, %v1279
        %v1281 = vpop.f32.mrb[0].mxu0
        %v1282 = vpop.f32.mrb[0].mxu0
        %v1283 = vadd.f32 0.0, %v1282
        %v1284 = vpop.f32.mrb[0].mxu0
        %1285 = vmatprep.mubr.bf16.mxu0 0
        %1286 = vmatmul.mubr.bf16.gmra.mrb[0].mxu0 %v1217
        %v1287 = vpop.f32.mrb[0].mxu0
        %v1288 = vadd.f32 0.0, %v1287
        %v1289 = vpop.f32.mrb[0].mxu0
        %v1290 = vpop.f32.mrb[0].mxu0
        %v1291 = vadd.f32 0.0, %v1290
        %v1292 = vpop.f32.mrb[0].mxu0
        %1293 = vmatprep.mubr.bf16.mxu0 0
        %1294 = vmatmul.mubr.bf16.gmra.mrb[0].mxu0 %v1220
        %v1295 = vpop.f32.mrb[0].mxu0
        %v1296 = vadd.f32 0.0, %v1295
        %v1297 = vpop.f32.mrb[0].mxu0
        %v1298 = vpop.f32.mrb[0].mxu0
        %v1299 = vadd.f32 0.0, %v1298
        %v1300 = vpop.f32.mrb[0].mxu0
        %1301 = vmatprep.mubr.bf16.mxu0 0
        %1302 = vmatmul.mubr.bf16.gmra.mrb[0].mxu0 %v1223
        %v1303 = vpop.f32.mrb[0].mxu0
        %v1304 = vadd.f32 0.0, %v1303
        %v1305 = vpop.f32.mrb[0].mxu0
        %v1306 = vpop.f32.mrb[0].mxu0
        %v1307 = vadd.f32 0.0, %v1306
        %v1308 = vpop.f32.mrb[0].mxu0
        %1309 = vmatprep.mubr.bf16.mxu0 0
        %1310 = vmatmul.mubr.bf16.gmra.mrb[0].mxu0 %v1226
        %v1311 = vpop.f32.mrb[0].mxu0
        %v1312 = vadd.f32 0.0, %v1311
        %v1313 = vpop.f32.mrb[0].mxu0
        %v1314 = vpop.f32.mrb[0].mxu0
        %v1315 = vadd.f32 0.0, %v1314
        %v1316 = vpop.f32.mrb[0].mxu0
        %1317 = vmatprep.mubr.bf16.mxu0 0
        %1318 = vmatmul.mubr.bf16.gmra.mrb[0].mxu0 %v1229
        %v1319 = vpop.f32.mrb[0].mxu0
        %v1320 = vadd.f32 0.0, %v1319
        %v1321 = vpop.f32.mrb[0].mxu0
        %v1322 = vpop.f32.mrb[0].mxu0
        %v1323 = vadd.f32 0.0, %v1322
        %v1324 = vpop.f32.mrb[0].mxu0
        %1325 = vmatprep.mubr.bf16.mxu0 0
        %1326 = vmatmul.mubr.bf16.gmra.mrb[0].mxu0 %v1232
        %v1327 = vpop.f32.mrb[0].mxu0
        %v1328 = vadd.f32 0.0, %v1327
        %v1329 = vpop.f32.mrb[0].mxu0
        %v1330 = vpop.f32.mrb[0].mxu0
        %v1331 = vadd.f32 0.0, %v1330
        %v1332 = vpop.f32.mrb[0].mxu0
        %1333 = vmatprep.mubr.bf16.mxu0 0
        %1334 = vmatmul.mubr.bf16.gmra.mrb[0].mxu0 %v1235
        %v1335 = vpop.f32.mrb[0].mxu0
        %v1336 = vadd.f32 0.0, %v1335
        %v1337 = vpop.f32.mrb[0].mxu0
        %v1338 = vpop.f32.mrb[0].mxu0
        %v1339 = vadd.f32 0.0, %v1338
        %v1340 = vpop.f32.mrb[0].mxu0
        %1341 = vdwg.mxu0
        %v1342 = vmax.f32 %v1128, %v1272
        %v1343 = vmax.f32 %v1129, %v1275
        %v1344 = vmax.f32 %v1130, %v1280
        %v1345 = vmax.f32 %v1131, %v1283
        %v1346 = vmax.f32 %v1132, %v1288
        %v1347 = vmax.f32 %v1133, %v1291
        %v1348 = vmax.f32 %v1134, %v1296
        %v1349 = vmax.f32 %v1135, %v1299
        %v1350 = vmax.f32 %v1136, %v1304
        %v1351 = vmax.f32 %v1137, %v1307
        %v1352 = vmax.f32 %v1138, %v1312
        %v1353 = vmax.f32 %v1139, %v1315
        %v1354 = vmax.f32 %v1140, %v1320
        %v1355 = vmax.f32 %v1141, %v1323
        %v1356 = vmax.f32 %v1142, %v1328
        %v1357 = vmax.f32 %v1143, %v1331
        %v1358 = vmax.f32 %v1144, %v1336
        %v1359 = vmax.f32 %v1145, %v1339
        %v1360 = vld [vmem:[%s2] sm:$0x1]
        %v1362 = vlaneseq
        %v1363 = vshrl.u32 %v1362, 7
        %v1364 = vsub.s32 0, %v1363
        %v1365 = vrot.slane %v1360, %v1364
        %v1367 = vadd.f32 %v1342, %v1365
        %v1368 = vadd.f32 %v1343, %v1365
        %v1369 = vadd.f32 %v1344, %v1365
        %v1370 = vadd.f32 %v1345, %v1365
        %v1371 = vadd.f32 %v1346, %v1365
        %v1372 = vadd.f32 %v1347, %v1365
        %v1373 = vadd.f32 %v1348, %v1365
        %v1374 = vadd.f32 %v1349, %v1365
        %v1375 = vadd.f32 %v1350, %v1365
        %v1376 = vadd.f32 %v1351, %v1365
        %v1377 = vadd.f32 %v1352, %v1365
        %v1378 = vadd.f32 %v1353, %v1365
        %v1379 = vadd.f32 %v1354, %v1365
        %v1380 = vadd.f32 %v1355, %v1365
        %v1381 = vadd.f32 %v1356, %v1365
        %v1382 = vadd.f32 %v1357, %v1365
        %v1383 = vadd.f32 %v1358, %v1365
        %v1384 = vadd.f32 %v1359, %v1365
        %v1385 = vmax.f32 %v1367, 0.0
        %v1386 = vmax.f32 %v1368, 0.0
        %v1387 = vmax.f32 %v1369, 0.0
        %v1388 = vmax.f32 %v1370, 0.0
        %v1389 = vmax.f32 %v1371, 0.0
        %v1390 = vmax.f32 %v1372, 0.0
        %v1391 = vmax.f32 %v1373, 0.0
        %v1392 = vmax.f32 %v1374, 0.0
        %v1393 = vmax.f32 %v1375, 0.0
        %v1394 = vmax.f32 %v1376, 0.0
        %v1395 = vmax.f32 %v1377, 0.0
        %v1396 = vmax.f32 %v1378, 0.0
        %v1397 = vmax.f32 %v1379, 0.0
        %v1398 = vmax.f32 %v1380, 0.0
        %v1399 = vmax.f32 %v1381, 0.0
        %v1400 = vmax.f32 %v1382, 0.0
        %v1401 = vmax.f32 %v1383, 0.0
        %v1402 = vmax.f32 %v1384, 0.0
        %v1403 = vpack.c.bf16 %v1386, %v1385
        %v1404 = vpack.c.bf16 %v1388, %v1387
        %v1405 = vpack.c.bf16 %v1390, %v1389
        %v1406 = vpack.c.bf16 %v1392, %v1391
        %v1407 = vpack.c.bf16 %v1394, %v1393
        %v1408 = vpack.c.bf16 %v1396, %v1395
        %v1409 = vpack.c.bf16 %v1398, %v1397
        %v1410 = vpack.c.bf16 %v1400, %v1399
        %v1411 = vpack.c.bf16 %v1402, %v1401
        %v1421 = vunpack.c.l.b16 %v1403
        %v1422 = vunpack.c.h.b16 %v1403
        %v1423 = vunpack.c.l.b16 %v1404
        %v1424 = vunpack.c.h.b16 %v1404
        %v1425 = vunpack.c.l.b16 %v1405
        %v1426 = vunpack.c.h.b16 %v1405
        %v1427 = vunpack.c.l.b16 %v1406
        %v1428 = vunpack.c.h.b16 %v1406
        %v1429 = vunpack.c.l.b16 %v1407
        %v1430 = vunpack.c.h.b16 %v1407
        %v1431 = vunpack.c.l.b16 %v1408
        %v1432 = vunpack.c.h.b16 %v1408
        %v1433 = vunpack.c.l.b16 %v1409
        %v1434 = vunpack.c.h.b16 %v1409
        %v1435 = vunpack.c.l.b16 %v1410
        %v1436 = vunpack.c.h.b16 %v1410
        %v1437 = vunpack.c.l.b16 %v1411
        %v1438 = vunpack.c.h.b16 %v1411
        %v1439 = vpack.c.b16 %v1421, %v1421
        %v1440 = vpack.c.b16 %v1422, %v1422
        %v1441 = vpack.c.b16 %v1423, %v1423
        %v1442 = vpack.c.b16 %v1424, %v1424
        %v1443 = vpack.c.b16 %v1425, %v1425
        %v1444 = vpack.c.b16 %v1426, %v1426
        %v1445 = vpack.c.b16 %v1427, %v1427
        %v1446 = vpack.c.b16 %v1428, %v1428
        %v1447 = vpack.c.b16 %v1429, %v1429
        %v1448 = vpack.c.b16 %v1430, %v1430
        %v1449 = vpack.c.b16 %v1431, %v1431
        %v1450 = vpack.c.b16 %v1432, %v1432
        %v1451 = vpack.c.b16 %v1433, %v1433
        %v1452 = vpack.c.b16 %v1434, %v1434
        %v1453 = vpack.c.b16 %v1435, %v1435
        %v1454 = vpack.c.b16 %v1436, %v1436
        %v1455 = vpack.c.b16 %v1437, %v1437
        %v1456 = vpack.c.b16 %v1438, %v1438
        %vm1475 = vcmask 158720
        %1476 = vst.msk [vmem:[%s497] sm:$0xf] %vm1475, %v1439
        %1477 = vst.msk [vmem:[%s497 + $0x4] sm:$0xf] %vm1475, %v1440
        %1478 = vst.msk [vmem:[%s497 + $0x8] sm:$0xf] %vm1475, %v1441
        %1479 = vst.msk [vmem:[%s497 + $0xc] sm:$0xf] %vm1475, %v1442
        %1480 = vst.msk [vmem:[%s497 + $0x10] sm:$0xf] %vm1475, %v1443
        %1481 = vst.msk [vmem:[%s497 + $0x14] sm:$0xf] %vm1475, %v1444
        %1482 = vst.msk [vmem:[%s497 + $0x18] sm:$0xf] %vm1475, %v1445
        %1483 = vst.msk [vmem:[%s497 + $0x1c] sm:$0xf] %vm1475, %v1446
        %1484 = vst.msk [vmem:[%s497 + $0x20] sm:$0xf] %vm1475, %v1447
        %1485 = vst.msk [vmem:[%s497 + $0x24] sm:$0xf] %vm1475, %v1448
        %1486 = vst.msk [vmem:[%s497 + $0x28] sm:$0xf] %vm1475, %v1449
        %1487 = vst.msk [vmem:[%s497 + $0x2c] sm:$0xf] %vm1475, %v1450
        %1488 = vst.msk [vmem:[%s497 + $0x30] sm:$0xf] %vm1475, %v1451
        %1489 = vst.msk [vmem:[%s497 + $0x34] sm:$0xf] %vm1475, %v1452
        %1490 = vst.msk [vmem:[%s497 + $0x38] sm:$0xf] %vm1475, %v1453
        %1491 = vst.msk [vmem:[%s497 + $0x3c] sm:$0xf] %vm1475, %v1454
        %1492 = vst.msk [vmem:[%s497 + $0x40] sm:$0xf] %vm1475, %v1455
        %1493 = vst.msk [vmem:[%s497 + $0x44] sm:$0xf] %vm1475, %v1456
        %s1494 = smul.u32 18, %s14
        %p1495 = scmp.lt.s32.totalorder %s1494, 35
        %s1496 = scalar_select %p1495, %s1494, 35
        %s1497 = smul.addr %s1496, 4
        %s1498 = scalar_lea.vmem %s3, %s1497
        // Predicated region
        $region74: #{basic_conv_net_forward.3} parent=68 // pred_check
          %p1499 = pneg %p100
        $region75: #{basic_conv_net_forward.3} parent=68 // pred_check_branch
          %1501 = sbr.rel (%p1499) target = $region77
        $region76: #{basic_conv_net_forward.3} parent=68 // pred_region
          %s1502 = smul.u32 18, %s14
        $region77: #{basic_conv_net_forward.3} parent=68 // pred_fallthru
          _
      $region69: #{basic_conv_net_forward.3} parent=5 // pred_fallthru
        _
      %p1503 = scmp.le.s32.totalorder 2, %s9
      // Predicated region
      $region78: #{basic_conv_net_forward.3} parent=5 // pred_check
        %p1504 = pneg %p1503
      $region79: #{basic_conv_net_forward.3} parent=5 // pred_check_branch
        %1506 = sbr.rel (%p1504) target = $region81
      $region80: #{basic_conv_net_forward.3} parent=5 // pred_region
        %s1507 = ssub.s32 %s9, 2
        // Predicated region
        $region82: #{basic_conv_net_forward.3} parent=80 // pred_check
          %p1508 = pneg %p106
        $region83: #{basic_conv_net_forward.3} parent=80 // pred_check_branch
          %1510 = sbr.rel (%p1508) target = $region85
        $region84: #{basic_conv_net_forward.3} parent=80 // pred_region
          %s1511 = smul.u32 18, %s15
          %p1512 = scmp.lt.s32.totalorder %s1511, 35
          %s1513 = scalar_select %p1512, %s1511, 35
          %s1514 = smul.addr %s1513, 4
          %s1515 = scalar_lea.vmem %s3, %s1514
        $region85: #{basic_conv_net_forward.3} parent=80 // pred_fallthru
          _
      $region81: #{basic_conv_net_forward.3} parent=5 // pred_fallthru
        _
    $region6: #{basic_conv_net_forward.3} parent=1 // loop_footer
      %s13 = sadd.s32 1, %s9
    $region7: #{basic_conv_net_forward.3} parent=1 // loop_footer_branch
      %8 = sbr.rel target = $region3
    $region8: #{basic_conv_net_forward.3} parent=1 // loop_exit
      _

// kernel: basic_conv_net_forward.4
$region0: #{basic_conv_net_forward.4}
  #allocation0 [shape = 'u32[]', space=smem, size = 0x4, offset = 0x4, fixed_abs, tag = 'smem constant byte address 0x4 - core index']
  #allocation1 [shape = 'u32[144,128]{1,0:T(1,128)}', space=vmem, size = 0x12000, scoped, tag = 'internal scratch']
  %s0 = inlined_call_operand.vmem [shape: bf16[4,32,500], index: 0, kind: input, shape index: {}]
  %s1 = inlined_call_operand.vmem [shape: bf16[500,50], index: 1, kind: input, shape index: {}]
  %s2 = inlined_call_operand.vmem [shape: f32[1,50], index: 2, kind: input, shape index: {}]
  %s3 = inlined_call_operand.vmem [shape: bf16[32,50], index: 3, kind: output, shape index: {}]
  %s4 = sld [smem:[#allocation0]]
  $region68: #{basic_conv_net_forward.4} parent=0
    _
  %s6 = ssub.s32 1, %s4
  %s7 = scalar_select 0, %s6, %s4
  $region1: #{basic_conv_net_forward.4} parent=0
    #allocation2 [shape = 'u8[131072]{0}', space=vmem, size = 0x20000, scoped, tag = 'input window, operand 0']
    loop: start=0, step=1, limit=4
    $region2: #{basic_conv_net_forward.4} parent=1 // loop_pre_header
      _
    $region3: #{basic_conv_net_forward.4} parent=1 // loop_header
      %s9 = sphi 0, %s13
      %p10 = scmp.ge.s32.totalorder %s9, 4
      %s19 = sphi 0, %s21
      %s22 = sphi 0, %s19
      %s23 = sphi 0, %s22
      %s39 = sphi 0, %s23
      %s43 = sphi 0, %s43
      %s45 = sphi 0, %s43
      %s46 = sphi 0, %s45
      %s60 = sphi 0, %s46
      %s64 = sphi 0, %s64
      %s66 = sphi 0, %s64
      %s67 = sphi 0, %s66
      %s81 = sphi 0, %s67
      %s87 = sphi 0, %s89
      %s90 = sphi 0, %s87
      %s91 = sphi 0, %s90
      %s107 = sphi 0, %s91
    $region4: #{basic_conv_net_forward.4} parent=1 // loop_header_branch
      %12 = sbr.rel (%p10) target = $region8
    $region5: #{basic_conv_net_forward.4} parent=1 // loop_body
      %s14 = ssub.s32 %s9, 1
      %s15 = ssub.s32 %s9, 2
      %s16 = sadd.s32 %s9, 1
      %s17 = ssub.s32 %s9, %s16
      %p18 = scmp.eq.s32.totalorder %s17, 0
      %s20 = sadd.s32 %s19, 1
      %s21 = scalar_select %p18, %s19, %s20
      %p24 = pneg %p18
      %p25 = scmp.eq.s32.totalorder %s9, 1
      %p26 = por %p24, %p25
      %p27 = scmp.ne.s32.totalorder %s19, %s22
      %p28 = scmp.eq.s32.totalorder %s9, 0
      %p29 = por %p27, %p28
      %p30 = scmp.ne.s32.totalorder %s19, %s22
      %p31 = scmp.eq.s32.totalorder %s14, 1
      %p32 = por %p30, %p31
      %p33 = scmp.ne.s32.totalorder %s22, %s23
      %p34 = scmp.eq.s32.totalorder %s14, 0
      %p35 = por %p33, %p34
      %p36 = scmp.ne.s32.totalorder %s22, %s23
      %p37 = scmp.eq.s32.totalorder %s15, 1
      %p38 = por %p36, %p37
      %p40 = scmp.ne.s32.totalorder %s23, %s39
      %p41 = scmp.eq.s32.totalorder %s15, 0
      %p42 = por %p40, %p41
      %s44 = sadd.s32 %s43, 1
      %p47 = scmp.eq.s32.totalorder %s9, 1
      %p48 = scmp.ne.s32.totalorder %s43, %s45
      %p49 = scmp.eq.s32.totalorder %s9, 0
      %p50 = por %p48, %p49
      %p51 = scmp.ne.s32.totalorder %s43, %s45
      %p52 = scmp.eq.s32.totalorder %s14, 1
      %p53 = por %p51, %p52
      %p54 = scmp.ne.s32.totalorder %s45, %s46
      %p55 = scmp.eq.s32.totalorder %s14, 0
      %p56 = por %p54, %p55
      %p57 = scmp.ne.s32.totalorder %s45, %s46
      %p58 = scmp.eq.s32.totalorder %s15, 1
      %p59 = por %p57, %p58
      %p61 = scmp.ne.s32.totalorder %s46, %s60
      %p62 = scmp.eq.s32.totalorder %s15, 0
      %p63 = por %p61, %p62
      %s65 = sadd.s32 %s64, 1
      %p68 = scmp.eq.s32.totalorder %s9, 1
      %p69 = scmp.ne.s32.totalorder %s64, %s66
      %p70 = scmp.eq.s32.totalorder %s9, 0
      %p71 = por %p69, %p70
      %p72 = scmp.ne.s32.totalorder %s64, %s66
      %p73 = scmp.eq.s32.totalorder %s14, 1
      %p74 = por %p72, %p73
      %p75 = scmp.ne.s32.totalorder %s66, %s67
      %p76 = scmp.eq.s32.totalorder %s14, 0
      %p77 = por %p75, %p76
      %p78 = scmp.ne.s32.totalorder %s66, %s67
      %p79 = scmp.eq.s32.totalorder %s15, 1
      %p80 = por %p78, %p79
      %p82 = scmp.ne.s32.totalorder %s67, %s81
      %p83 = scmp.eq.s32.totalorder %s15, 0
      %p84 = por %p82, %p83
      %s85 = ssub.s32 %s9, %s16
      %p86 = scmp.eq.s32.totalorder %s85, 0
      %s88 = sadd.s32 %s87, 1
      %s89 = scalar_select %p86, %s87, %s88
      %p92 = pneg %p86
      %p93 = scmp.eq.s32.totalorder %s9, 1
      %p94 = por %p92, %p93
      %p95 = scmp.ne.s32.totalorder %s87, %s90
      %p96 = scmp.eq.s32.totalorder %s9, 0
      %p97 = por %p95, %p96
      %p98 = scmp.ne.s32.totalorder %s87, %s90
      %p99 = scmp.eq.s32.totalorder %s14, 1
      %p100 = por %p98, %p99
      %p101 = scmp.ne.s32.totalorder %s90, %s91
      %p102 = scmp.eq.s32.totalorder %s14, 0
      %p103 = por %p101, %p102
      %p104 = scmp.ne.s32.totalorder %s90, %s91
      %p105 = scmp.eq.s32.totalorder %s15, 1
      %p106 = por %p104, %p105
      %p108 = scmp.ne.s32.totalorder %s91, %s107
      %p109 = scmp.eq.s32.totalorder %s15, 0
      %p110 = por %p108, %p109
      %p111 = scmp.le.s32.totalorder 1, %s9
      %p112 = scmp.lt.s32.totalorder %s9, 3
      %p113 = pnand %p111, %p112
      %p114 = pneg %p113
      // Predicated region
      $region9: #{basic_conv_net_forward.4} parent=5 // pred_check
        _
      $region10: #{basic_conv_net_forward.4} parent=5 // pred_check_branch
        %116 = sbr.rel (%p113) target = $region12
      $region11: #{basic_conv_net_forward.4} parent=5 // pred_region
        %s117 = ssub.s32 %s9, 1
        // Predicated region
        $region13: #{basic_conv_net_forward.4} parent=11 // pred_check
          %p118 = pneg %p56
        $region14: #{basic_conv_net_forward.4} parent=11 // pred_check_branch
          %120 = sbr.rel (%p118) target = $region16
        $region15: #{basic_conv_net_forward.4} parent=11 // pred_region
          _
        $region16: #{basic_conv_net_forward.4} parent=11 // pred_fallthru
          _
        // Predicated region
        $region17: #{basic_conv_net_forward.4} parent=11 // pred_check
          %p121 = pneg %p77
        $region18: #{basic_conv_net_forward.4} parent=11 // pred_check_branch
          %123 = sbr.rel (%p121) target = $region20
        $region19: #{basic_conv_net_forward.4} parent=11 // pred_region
          _
        $region20: #{basic_conv_net_forward.4} parent=11 // pred_fallthru
          _
      $region12: #{basic_conv_net_forward.4} parent=5 // pred_fallthru
        _
      %p124 = scmp.lt.s32.totalorder %s9, 2
      // Predicated region
      $region21: #{basic_conv_net_forward.4} parent=5 // pred_check
        %p125 = pneg %p124
      $region22: #{basic_conv_net_forward.4} parent=5 // pred_check_branch
        %127 = sbr.rel (%p125) target = $region24
      $region23: #{basic_conv_net_forward.4} parent=5 // pred_region
        // Predicated region
        $region25: #{basic_conv_net_forward.4} parent=23 // pred_check
          %p128 = pneg %p29
        $region26: #{basic_conv_net_forward.4} parent=23 // pred_check_branch
          %130 = sbr.rel (%p128) target = $region28
        $region27: #{basic_conv_net_forward.4} parent=23 // pred_region
          %s131 = sand.u32 %s19, 1
          %s132 = sand.u32 %s19, 1
          %s133 = smul.addr %s132, 128
          %s134 = scalar_lea.vmem [#allocation2], %s133
          %s135 = smul.u32 2, %s9
          %s136 = smul.addr %s135, 4
          %s137 = smul.addr %s136, 4
          %s138 = scalar_lea.vmem %s0, %s137
          // Predicated region
          $region29: #{basic_conv_net_forward.4} parent=27 // pred_check
            _
          $region30: #{basic_conv_net_forward.4} parent=27 // pred_check_branch
            %140 = sbr.rel (0) target = $region32
          $region31: #{basic_conv_net_forward.4} parent=27 // pred_region
            // Predicated region
            $region33: #{basic_conv_net_forward.4} parent=31 // pred_check
              _
            $region34: #{basic_conv_net_forward.4} parent=31 // pred_check_branch
              %142 = sbr.rel (0) target = $region36
            $region35: #{basic_conv_net_forward.4} parent=31 // pred_region
              loop: start=0, step=1, limit=1
              $region37: #{basic_conv_net_forward.4} parent=35 // loop_pre_header
                _
              $region38: #{basic_conv_net_forward.4} parent=35 // loop_header
                %s144 = sphi 0, %s148
                %p145 = scmp.ge.s32.totalorder %s144, 1
                %s149 = sphi %s138, %s138
                %s150 = sphi %s134, %s134
              $region39: #{basic_conv_net_forward.4} parent=35 // loop_header_branch
                %147 = sbr.rel (%p145) target = $region43
              $region40: #{basic_conv_net_forward.4} parent=35 // loop_body
                %v151 = vld [vmem:[%s149] sm:$0xff]
                %152 = vst [vmem:[%s150] sm:$0xff] %v151
                %v153 = vld [vmem:[%s149 + $0x8] sm:$0xff]
                %154 = vst [vmem:[%s150 + $0x8] sm:$0xff] %v153
                %v155 = vld [vmem:[%s149 + $0x10] sm:$0xff]
                %156 = vst [vmem:[%s150 + $0x10] sm:$0xff] %v155
                %v157 = vld [vmem:[%s149 + $0x18] sm:$0xff]
                %158 = vst [vmem:[%s150 + $0x18] sm:$0xff] %v157
                %v159 = vld [vmem:[%s149 + $0x40] sm:$0xff]
                %160 = vst [vmem:[%s150 + $0x20] sm:$0xff] %v159
                %v161 = vld [vmem:[%s149 + $0x48] sm:$0xff]
                %162 = vst [vmem:[%s150 + $0x28] sm:$0xff] %v161
                %v163 = vld [vmem:[%s149 + $0x50] sm:$0xff]
                %164 = vst [vmem:[%s150 + $0x30] sm:$0xff] %v163
                %v165 = vld [vmem:[%s149 + $0x58] sm:$0xff]
                %166 = vst [vmem:[%s150 + $0x38] sm:$0xff] %v165
                %v167 = vld [vmem:[%s149 + $0x80] sm:$0xff]
                %168 = vst [vmem:[%s150 + $0x40] sm:$0xff] %v167
                %v169 = vld [vmem:[%s149 + $0x88] sm:$0xff]
                %170 = vst [vmem:[%s150 + $0x48] sm:$0xff] %v169
                %v171 = vld [vmem:[%s149 + $0x90] sm:$0xff]
                %172 = vst [vmem:[%s150 + $0x50] sm:$0xff] %v171
                %v173 = vld [vmem:[%s149 + $0x98] sm:$0xff]
                %174 = vst [vmem:[%s150 + $0x58] sm:$0xff] %v173
                %v175 = vld [vmem:[%s149 + $0xc0] sm:$0xff]
                %176 = vst [vmem:[%s150 + $0x60] sm:$0xff] %v175
                %v177 = vld [vmem:[%s149 + $0xc8] sm:$0xff]
                %178 = vst [vmem:[%s150 + $0x68] sm:$0xff] %v177
                %v179 = vld [vmem:[%s149 + $0xd0] sm:$0xff]
                %180 = vst [vmem:[%s150 + $0x70] sm:$0xff] %v179
                %v181 = vld [vmem:[%s149 + $0xd8] sm:$0xff]
                %182 = vst [vmem:[%s150 + $0x78] sm:$0xff] %v181
              $region41: #{basic_conv_net_forward.4} parent=35 // loop_footer
                %s148 = sadd.s32 1, %s144
              $region42: #{basic_conv_net_forward.4} parent=35 // loop_footer_branch
                %143 = sbr.rel target = $region38
              $region43: #{basic_conv_net_forward.4} parent=35 // loop_exit
                _
            $region36: #{basic_conv_net_forward.4} parent=31 // pred_fallthru
              _
            // Predicated region
            $region44: #{basic_conv_net_forward.4} parent=31 // pred_check
              _
            $region45: #{basic_conv_net_forward.4} parent=31 // pred_check_branch
              %184 = sbr.rel target = $region47
            $region46: #{basic_conv_net_forward.4} parent=31 // pred_region
              _
            $region47: #{basic_conv_net_forward.4} parent=31 // pred_fallthru
              _
          $region32: #{basic_conv_net_forward.4} parent=27 // pred_fallthru
            _
          %185 = vnop
        $region28: #{basic_conv_net_forward.4} parent=23 // pred_fallthru
          _
      $region24: #{basic_conv_net_forward.4} parent=5 // pred_fallthru
        _
      %p186 = scmp.le.s32.totalorder 1, %s9
      %p187 = scmp.lt.s32.totalorder %s9, 3
      %p188 = pnand %p186, %p187
      %p189 = pneg %p188
      // Predicated region
      $region48: #{basic_conv_net_forward.4} parent=5 // pred_check
        _
      $region49: #{basic_conv_net_forward.4} parent=5 // pred_check_branch
        %191 = sbr.rel (%p188) target = $region51
      $region50: #{basic_conv_net_forward.4} parent=5 // pred_region
        %s192 = ssub.s32 %s9, 1
        %s193 = sand.u32 %s22, 1
        %s194 = sand.u32 %s22, 1
        %s195 = smul.addr %s194, 128
        %s196 = scalar_lea.vmem [#allocation2], %s195
        // Predicated region
        $region52: #{basic_conv_net_forward.4} parent=50 // pred_check
          %p197 = pneg %p35
        $region53: #{basic_conv_net_forward.4} parent=50 // pred_check_branch
          %199 = sbr.rel (%p197) target = $region55
        $region54: #{basic_conv_net_forward.4} parent=50 // pred_region
          _
        $region55: #{basic_conv_net_forward.4} parent=50 // pred_fallthru
          _
        %s200 = sand.u32 %s22, 1
        %s201 = sand.u32 %s22, 1
        %s202 = smul.addr %s201, 128
        %s203 = scalar_lea.vmem [#allocation2], %s202
        %p204 = pneg %p35
        %p205 = pneg %p32
        %p206 = pneg %p56
        %p207 = pneg %p53
        %p208 = pneg %p77
        %p209 = pneg %p74
        %p210 = pneg %p103
        %p211 = pneg %p100
        %s212 = smul.u32 2, %s14
        %p213 = scmp.lt.s32.totalorder %s212, 3
        %s214 = scalar_select %p213, %s212, 3
        %s215 = smul.addr %s214, 4
        %s216 = scalar_lea.vmem %s3, %s215
        %s217 = smul.u32 2, %s14
        %s218 = smul.u32 2, %s14
        %p219 = scmp.lt.s32.totalorder %s218, 3
        %s220 = scalar_select %p219, %s218, 3
        %s221 = smul.addr %s220, 4
        %s222 = scalar_lea.vmem %s3, %s221
        %s223 = smul.u32 2, %s14
        %v225 = vld [vmem:[%s1] sm:$0xf]
        %v226 = vld [vmem:[%s1 + $0x4] sm:$0xf]
        %v227 = vld [vmem:[%s1 + $0x8] sm:$0xf]
        %v228 = vld [vmem:[%s1 + $0xc] sm:$0xf]
        %v229 = vld [vmem:[%s1 + $0x10] sm:$0xf]
        %v230 = vld [vmem:[%s1 + $0x14] sm:$0xf]
        %v231 = vld [vmem:[%s1 + $0x18] sm:$0xf]
        %v232 = vld [vmem:[%s1 + $0x1c] sm:$0xf]
        %v233 = vld [vmem:[%s1 + $0x20] sm:$0xf]
        %v234 = vld [vmem:[%s1 + $0x24] sm:$0xf]
        %v235 = vld [vmem:[%s1 + $0x28] sm:$0xf]
        %v236 = vld [vmem:[%s1 + $0x2c] sm:$0xf]
        %v237 = vld [vmem:[%s1 + $0x30] sm:$0xf]
        %v238 = vld [vmem:[%s1 + $0x34] sm:$0xf]
        %v239 = vld [vmem:[%s1 + $0x38] sm:$0xf]
        %v240 = vld [vmem:[%s1 + $0x3c] sm:$0xf]
        %v241 = vld [vmem:[%s1 + $0x40] sm:$0xf]
        %v242 = vld [vmem:[%s1 + $0x44] sm:$0xf]
        %v243 = vld [vmem:[%s1 + $0x48] sm:$0xf]
        %v244 = vld [vmem:[%s1 + $0x4c] sm:$0xf]
        %v245 = vld [vmem:[%s1 + $0x50] sm:$0xf]
        %v246 = vld [vmem:[%s1 + $0x54] sm:$0xf]
        %v247 = vld [vmem:[%s1 + $0x58] sm:$0xf]
        %v248 = vld [vmem:[%s1 + $0x5c] sm:$0xf]
        %v249 = vld [vmem:[%s1 + $0x60] sm:$0xf]
        %v250 = vld [vmem:[%s1 + $0x64] sm:$0xf]
        %v251 = vld [vmem:[%s1 + $0x68] sm:$0xf]
        %v252 = vld [vmem:[%s1 + $0x6c] sm:$0xf]
        %v253 = vld [vmem:[%s1 + $0x70] sm:$0xf]
        %v254 = vld [vmem:[%s1 + $0x74] sm:$0xf]
        %v255 = vld [vmem:[%s1 + $0x78] sm:$0xf]
        %v256 = vld [vmem:[%s1 + $0x7c] sm:$0xf]
        %v257 = vld [vmem:[%s1 + $0x80] sm:$0xf]
        %v258 = vld [vmem:[%s1 + $0x84] sm:$0xf]
        %v259 = vld [vmem:[%s1 + $0x88] sm:$0xf]
        %v260 = vld [vmem:[%s1 + $0x8c] sm:$0xf]
        %v261 = vld [vmem:[%s1 + $0x90] sm:$0xf]
        %v262 = vld [vmem:[%s1 + $0x94] sm:$0xf]
        %v263 = vld [vmem:[%s1 + $0x98] sm:$0xf]
        %v264 = vld [vmem:[%s1 + $0x9c] sm:$0xf]
        %v265 = vld [vmem:[%s1 + $0xa0] sm:$0xf]
        %v266 = vld [vmem:[%s1 + $0xa4] sm:$0xf]
        %v267 = vld [vmem:[%s1 + $0xa8] sm:$0xf]
        %v268 = vld [vmem:[%s1 + $0xac] sm:$0xf]
        %v269 = vld [vmem:[%s1 + $0xb0] sm:$0xf]
        %v270 = vld [vmem:[%s1 + $0xb4] sm:$0xf]
        %v271 = vld [vmem:[%s1 + $0xb8] sm:$0xf]
        %v272 = vld [vmem:[%s1 + $0xbc] sm:$0xf]
        %v273 = vld [vmem:[%s1 + $0xc0] sm:$0xf]
        %v274 = vld [vmem:[%s1 + $0xc4] sm:$0xf]
        %v275 = vld [vmem:[%s1 + $0xc8] sm:$0xf]
        %v276 = vld [vmem:[%s1 + $0xcc] sm:$0xf]
        %v277 = vld [vmem:[%s1 + $0xd0] sm:$0xf]
        %v278 = vld [vmem:[%s1 + $0xd4] sm:$0xf]
        %v279 = vld [vmem:[%s1 + $0xd8] sm:$0xf]
        %v280 = vld [vmem:[%s1 + $0xdc] sm:$0xf]
        %v281 = vld [vmem:[%s1 + $0xe0] sm:$0xf]
        %v282 = vld [vmem:[%s1 + $0xe4] sm:$0xf]
        %v283 = vld [vmem:[%s1 + $0xe8] sm:$0xf]
        %v284 = vld [vmem:[%s1 + $0xec] sm:$0xf]
        %v285 = vld [vmem:[%s1 + $0xf0] sm:$0xf]
        %v286 = vld [vmem:[%s1 + $0xf4] sm:$0xf]
        %v287 = vld [vmem:[%s1 + $0xf8] sm:$0x3]
        %v288 = vld [vmem:[%s196] sm:$0xff]
        %v289 = vld [vmem:[%s196 + $0x8] sm:$0xff]
        %v290 = vld [vmem:[%s196 + $0x10] sm:$0xff]
        %v291 = vld [vmem:[%s196 + $0x18] sm:$0xff]
        %v296 = vunpack.c.l.b16 %v288
        %v297 = vunpack.c.h.b16 %v288
        %v298 = vunpack.c.l.b16 %v289
        %v299 = vunpack.c.h.b16 %v289
        %v300 = vunpack.c.l.b16 %v290
        %v301 = vunpack.c.h.b16 %v290
        %v302 = vunpack.c.l.b16 %v291
        %v303 = vunpack.c.h.b16 %v291
        %v304 = vpack.c.b16 %v300, %v296
        %v305 = vpack.c.b16 %v301, %v297
        %v306 = vpack.c.b16 %v302, %v298
        %v307 = vpack.c.b16 %v303, %v299
        %v374 = vunpack.c.l.b16 %v225
        %v375 = vunpack.c.l.b16 %v226
        %v376 = vunpack.c.l.b16 %v227
        %v377 = vunpack.c.l.b16 %v228
        %v378 = vunpack.c.l.b16 %v229
        %v379 = vunpack.c.l.b16 %v230
        %v380 = vunpack.c.l.b16 %v231
        %v381 = vunpack.c.l.b16 %v232
        %v382 = vunpack.c.l.b16 %v233
        %v383 = vunpack.c.l.b16 %v234
        %v384 = vunpack.c.l.b16 %v235
        %v385 = vunpack.c.l.b16 %v236
        %v386 = vunpack.c.l.b16 %v237
        %v387 = vunpack.c.l.b16 %v238
        %v388 = vunpack.c.l.b16 %v239
        %v389 = vunpack.c.l.b16 %v240
        %v390 = vunpack.c.l.b16 %v241
        %v391 = vunpack.c.l.b16 %v242
        %v392 = vunpack.c.l.b16 %v243
        %v393 = vunpack.c.l.b16 %v244
        %v394 = vunpack.c.l.b16 %v245
        %v395 = vunpack.c.l.b16 %v246
        %v396 = vunpack.c.l.b16 %v247
        %v397 = vunpack.c.l.b16 %v248
        %v398 = vunpack.c.l.b16 %v249
        %v399 = vunpack.c.l.b16 %v250
        %v400 = vunpack.c.l.b16 %v251
        %v401 = vunpack.c.l.b16 %v252
        %v402 = vunpack.c.l.b16 %v253
        %v403 = vunpack.c.l.b16 %v254
        %v404 = vunpack.c.l.b16 %v255
        %v405 = vunpack.c.l.b16 %v256
        %v406 = vunpack.c.l.b16 %v257
        %v407 = vunpack.c.l.b16 %v258
        %v408 = vunpack.c.l.b16 %v259
        %v409 = vunpack.c.l.b16 %v260
        %v410 = vunpack.c.l.b16 %v261
        %v411 = vunpack.c.l.b16 %v262
        %v412 = vunpack.c.l.b16 %v263
        %v413 = vunpack.c.l.b16 %v264
        %v414 = vunpack.c.l.b16 %v265
        %v415 = vunpack.c.l.b16 %v266
        %v416 = vunpack.c.l.b16 %v267
        %v417 = vunpack.c.l.b16 %v268
        %v418 = vunpack.c.l.b16 %v269
        %v419 = vunpack.c.l.b16 %v270
        %v420 = vunpack.c.l.b16 %v271
        %v421 = vunpack.c.l.b16 %v272
        %v422 = vunpack.c.l.b16 %v273
        %v423 = vunpack.c.l.b16 %v274
        %v424 = vunpack.c.l.b16 %v275
        %v425 = vunpack.c.l.b16 %v276
        %v426 = vunpack.c.l.b16 %v277
        %v427 = vunpack.c.l.b16 %v278
        %v428 = vunpack.c.l.b16 %v279
        %v429 = vunpack.c.l.b16 %v280
        %v430 = vunpack.c.l.b16 %v281
        %v431 = vunpack.c.l.b16 %v282
        %v432 = vunpack.c.l.b16 %v283
        %v433 = vunpack.c.l.b16 %v284
        %v434 = vunpack.c.l.b16 %v285
        %v435 = vunpack.c.l.b16 %v286
        %v436 = vunpack.c.l.b16 %v287
        %v437 = vpack.c.b16 %v375, %v374
        %v438 = vpack.c.b16 %v377, %v376
        %v439 = vpack.c.b16 %v379, %v378
        %v440 = vpack.c.b16 %v381, %v380
        %v441 = vpack.c.b16 %v383, %v382
        %v442 = vpack.c.b16 %v385, %v384
        %v443 = vpack.c.b16 %v387, %v386
        %v444 = vpack.c.b16 %v389, %v388
        %v445 = vpack.c.b16 %v391, %v390
        %v446 = vpack.c.b16 %v393, %v392
        %v447 = vpack.c.b16 %v395, %v394
        %v448 = vpack.c.b16 %v397, %v396
        %v449 = vpack.c.b16 %v399, %v398
        %v450 = vpack.c.b16 %v401, %v400
        %v451 = vpack.c.b16 %v403, %v402
        %v452 = vpack.c.b16 %v405, %v404
        %v453 = vpack.c.b16 %v407, %v406
        %v454 = vpack.c.b16 %v409, %v408
        %v455 = vpack.c.b16 %v411, %v410
        %v456 = vpack.c.b16 %v413, %v412
        %v457 = vpack.c.b16 %v415, %v414
        %v458 = vpack.c.b16 %v417, %v416
        %v459 = vpack.c.b16 %v419, %v418
        %v460 = vpack.c.b16 %v421, %v420
        %v461 = vpack.c.b16 %v423, %v422
        %v462 = vpack.c.b16 %v425, %v424
        %v463 = vpack.c.b16 %v427, %v426
        %v464 = vpack.c.b16 %v429, %v428
        %v465 = vpack.c.b16 %v431, %v430
        %v466 = vpack.c.b16 %v433, %v432
        %v467 = vpack.c.b16 %v435, %v434
        %v468 = vpack.c.b16 %v436, %v436
        %vm500 = vcmask 949248
        %v502 = vsel %vm500, %v307, 0
        %vm504 = vcmask 1041408
        %v506 = vsel %vm504, %v468, 0
        %508 = vmatprep.subr.bf16.mxu0 0
        %509 = vmatpush1.bf16.msra.mxu0 %v437
        %510 = vmatprep.subr.bf16.mxu0 0
        %511 = vmatpush1.bf16.msra.mxu0 %v438
        %512 = vmatprep.subr.bf16.mxu0 0
        %513 = vmatpush1.bf16.msra.mxu0 %v439
        %514 = vmatprep.subr.bf16.mxu0 0
        %515 = vmatpush1.bf16.msra.mxu0 %v440
        %516 = vmatprep.subr.bf16.mxu0 0
        %517 = vmatpush1.bf16.msra.mxu0 %v441
        %518 = vmatprep.subr.bf16.mxu0 0
        %519 = vmatpush1.bf16.msra.mxu0 %v442
        %520 = vmatprep.subr.bf16.mxu0 0
        %521 = vmatpush1.bf16.msra.mxu0 %v443
        %522 = vmatprep.subr.bf16.mxu0 0
        %523 = vmatpush1.bf16.msra.mxu0 %v444
        %524 = vmatprep.subr.bf16.mxu0 0
        %525 = vmatpush1.bf16.msra.mxu0 %v445
        %526 = vmatprep.subr.bf16.mxu0 0
        %527 = vmatpush1.bf16.msra.mxu0 %v446
        %528 = vmatprep.subr.bf16.mxu0 0
        %529 = vmatpush1.bf16.msra.mxu0 %v447
        %530 = vmatprep.subr.bf16.mxu0 0
        %531 = vmatpush1.bf16.msra.mxu0 %v448
        %532 = vmatprep.subr.bf16.mxu0 0
        %533 = vmatpush1.bf16.msra.mxu0 %v449
        %534 = vmatprep.subr.bf16.mxu0 0
        %535 = vmatpush1.bf16.msra.mxu0 %v450
        %536 = vmatprep.subr.bf16.mxu0 0
        %537 = vmatpush1.bf16.msra.mxu0 %v451
        %538 = vmatprep.subr.bf16.mxu0 0
        %539 = vmatpush1.bf16.msra.mxu0 %v452
        %540 = vmatprep.mubr.bf16.mxu0 %v305
        %541 = vmatmul.mubr.bf16.gmra.mrb[0].mxu0 %v304
        %v542 = vpop.f32.mrb[0].mxu0
        %v543 = vadd.f32 0.0, %v542
        %v544 = vpop.f32.mrb[0].mxu0
        %v545 = vpop.f32.mrb[0].mxu0
        %v546 = vadd.f32 0.0, %v545
        %v547 = vpop.f32.mrb[0].mxu0
        %548 = vdwg.mxu0
        %549 = vmatprep.subr.bf16.mxu0 0
        %550 = vmatpush1.bf16.msra.mxu0 %v453
        %551 = vmatprep.subr.bf16.mxu0 0
        %552 = vmatpush1.bf16.msra.mxu0 %v454
        %553 = vmatprep.subr.bf16.mxu0 0
        %554 = vmatpush1.bf16.msra.mxu0 %v455
        %555 = vmatprep.subr.bf16.mxu0 0
        %556 = vmatpush1.bf16.msra.mxu0 %v456
        %557 = vmatprep.subr.bf16.mxu0 0
        %558 = vmatpush1.bf16.msra.mxu0 %v457
        %559 = vmatprep.subr.bf16.mxu0 0
        %560 = vmatpush1.bf16.msra.mxu0 %v458
        %561 = vmatprep.subr.bf16.mxu0 0
        %562 = vmatpush1.bf16.msra.mxu0 %v459
        %563 = vmatprep.subr.bf16.mxu0 0
        %564 = vmatpush1.bf16.msra.mxu0 %v460
        %565 = vmatprep.subr.bf16.mxu0 0
        %566 = vmatpush1.bf16.msra.mxu0 %v461
        %567 = vmatprep.subr.bf16.mxu0 0
        %568 = vmatpush1.bf16.msra.mxu0 %v462
        %569 = vmatprep.subr.bf16.mxu0 0
        %570 = vmatpush1.bf16.msra.mxu0 %v463
        %571 = vmatprep.subr.bf16.mxu0 0
        %572 = vmatpush1.bf16.msra.mxu0 %v464
        %573 = vmatprep.subr.bf16.mxu0 0
        %574 = vmatpush1.bf16.msra.mxu0 %v465
        %575 = vmatprep.subr.bf16.mxu0 0
        %576 = vmatpush1.bf16.msra.mxu0 %v466
        %577 = vmatprep.subr.bf16.mxu0 0
        %578 = vmatpush1.bf16.msra.mxu0 %v467
        %579 = vmatprep.subr.bf16.mxu0 0
        %580 = vmatpush1.bf16.msra.mxu0 %v506
        %581 = vmatprep.mubr.bf16.mxu0 %v502
        %582 = vmatmul.mubr.bf16.gmra.mrb[0].mxu0 %v306
        %v583 = vpop.f32.mrb[0].mxu0
        %v584 = vadd.f32 %v543, %v583
        %v585 = vpop.f32.mrb[0].mxu0
        %v586 = vpop.f32.mrb[0].mxu0
        %v587 = vadd.f32 %v546, %v586
        %v588 = vpop.f32.mrb[0].mxu0
        %589 = vdwg.mxu0
        %s590 = scalar_lea.vmem %s196, 32 [#allocation2]
        %v591 = vld [vmem:[%s590] sm:$0xff]
        %v592 = vld [vmem:[%s590 + $0x8] sm:$0xff]
        %v593 = vld [vmem:[%s590 + $0x10] sm:$0xff]
        %v594 = vld [vmem:[%s590 + $0x18] sm:$0xff]
        %v599 = vunpack.c.l.b16 %v591
        %v600 = vunpack.c.h.b16 %v591
        %v601 = vunpack.c.l.b16 %v592
        %v602 = vunpack.c.h.b16 %v592
        %v603 = vunpack.c.l.b16 %v593
        %v604 = vunpack.c.h.b16 %v593
        %v605 = vunpack.c.l.b16 %v594
        %v606 = vunpack.c.h.b16 %v594
        %v607 = vpack.c.b16 %v603, %v599
        %v608 = vpack.c.b16 %v604, %v600
        %v609 = vpack.c.b16 %v605, %v601
        %v610 = vpack.c.b16 %v606, %v602
        %v615 = vsel %vm500, %v610, 0
        %617 = vmatprep.subr.bf16.mxu0 0
        %618 = vmatpush1.bf16.msra.mxu0 %v437
        %619 = vmatprep.subr.bf16.mxu0 0
        %620 = vmatpush1.bf16.msra.mxu0 %v438
        %621 = vmatprep.subr.bf16.mxu0 0
        %622 = vmatpush1.bf16.msra.mxu0 %v439
        %623 = vmatprep.subr.bf16.mxu0 0
        %624 = vmatpush1.bf16.msra.mxu0 %v440
        %625 = vmatprep.subr.bf16.mxu0 0
        %626 = vmatpush1.bf16.msra.mxu0 %v441
        %627 = vmatprep.subr.bf16.mxu0 0
        %628 = vmatpush1.bf16.msra.mxu0 %v442
        %629 = vmatprep.subr.bf16.mxu0 0
        %630 = vmatpush1.bf16.msra.mxu0 %v443
        %631 = vmatprep.subr.bf16.mxu0 0
        %632 = vmatpush1.bf16.msra.mxu0 %v444
        %633 = vmatprep.subr.bf16.mxu0 0
        %634 = vmatpush1.bf16.msra.mxu0 %v445
        %635 = vmatprep.subr.bf16.mxu0 0
        %636 = vmatpush1.bf16.msra.mxu0 %v446
        %637 = vmatprep.subr.bf16.mxu0 0
        %638 = vmatpush1.bf16.msra.mxu0 %v447
        %639 = vmatprep.subr.bf16.mxu0 0
        %640 = vmatpush1.bf16.msra.mxu0 %v448
        %641 = vmatprep.subr.bf16.mxu0 0
        %642 = vmatpush1.bf16.msra.mxu0 %v449
        %643 = vmatprep.subr.bf16.mxu0 0
        %644 = vmatpush1.bf16.msra.mxu0 %v450
        %645 = vmatprep.subr.bf16.mxu0 0
        %646 = vmatpush1.bf16.msra.mxu0 %v451
        %647 = vmatprep.subr.bf16.mxu0 0
        %648 = vmatpush1.bf16.msra.mxu0 %v452
        %649 = vmatprep.mubr.bf16.mxu0 %v608
        %650 = vmatmul.mubr.bf16.gmra.mrb[0].mxu0 %v607
        %v651 = vpop.f32.mrb[0].mxu0
        %v652 = vadd.f32 0.0, %v651
        %v653 = vpop.f32.mrb[0].mxu0
        %v654 = vpop.f32.mrb[0].mxu0
        %v655 = vadd.f32 0.0, %v654
        %v656 = vpop.f32.mrb[0].mxu0
        %657 = vdwg.mxu0
        %658 = vmatprep.subr.bf16.mxu0 0
        %659 = vmatpush1.bf16.msra.mxu0 %v453
        %660 = vmatprep.subr.bf16.mxu0 0
        %661 = vmatpush1.bf16.msra.mxu0 %v454
        %662 = vmatprep.subr.bf16.mxu0 0
        %663 = vmatpush1.bf16.msra.mxu0 %v455
        %664 = vmatprep.subr.bf16.mxu0 0
        %665 = vmatpush1.bf16.msra.mxu0 %v456
        %666 = vmatprep.subr.bf16.mxu0 0
        %667 = vmatpush1.bf16.msra.mxu0 %v457
        %668 = vmatprep.subr.bf16.mxu0 0
        %669 = vmatpush1.bf16.msra.mxu0 %v458
        %670 = vmatprep.subr.bf16.mxu0 0
        %671 = vmatpush1.bf16.msra.mxu0 %v459
        %672 = vmatprep.subr.bf16.mxu0 0
        %673 = vmatpush1.bf16.msra.mxu0 %v460
        %674 = vmatprep.subr.bf16.mxu0 0
        %675 = vmatpush1.bf16.msra.mxu0 %v461
        %676 = vmatprep.subr.bf16.mxu0 0
        %677 = vmatpush1.bf16.msra.mxu0 %v462
        %678 = vmatprep.subr.bf16.mxu0 0
        %679 = vmatpush1.bf16.msra.mxu0 %v463
        %680 = vmatprep.subr.bf16.mxu0 0
        %681 = vmatpush1.bf16.msra.mxu0 %v464
        %682 = vmatprep.subr.bf16.mxu0 0
        %683 = vmatpush1.bf16.msra.mxu0 %v465
        %684 = vmatprep.subr.bf16.mxu0 0
        %685 = vmatpush1.bf16.msra.mxu0 %v466
        %686 = vmatprep.subr.bf16.mxu0 0
        %687 = vmatpush1.bf16.msra.mxu0 %v467
        %688 = vmatprep.subr.bf16.mxu0 0
        %689 = vmatpush1.bf16.msra.mxu0 %v506
        %690 = vmatprep.mubr.bf16.mxu0 %v615
        %691 = vmatmul.mubr.bf16.gmra.mrb[0].mxu0 %v609
        %v692 = vpop.f32.mrb[0].mxu0
        %v693 = vadd.f32 %v652, %v692
        %v694 = vpop.f32.mrb[0].mxu0
        %v695 = vpop.f32.mrb[0].mxu0
        %v696 = vadd.f32 %v655, %v695
        %v697 = vpop.f32.mrb[0].mxu0
        %698 = vdwg.mxu0
        %v699 = vmax.f32 %v584, %v693
        %v700 = vmax.f32 %v587, %v696
        %s701 = scalar_lea.vmem %s196, 64 [#allocation2]
        %v702 = vld [vmem:[%s701] sm:$0xff]
        %v703 = vld [vmem:[%s701 + $0x8] sm:$0xff]
        %v704 = vld [vmem:[%s701 + $0x10] sm:$0xff]
        %v705 = vld [vmem:[%s701 + $0x18] sm:$0xff]
        %v710 = vunpack.c.l.b16 %v702
        %v711 = vunpack.c.h.b16 %v702
        %v712 = vunpack.c.l.b16 %v703
        %v713 = vunpack.c.h.b16 %v703
        %v714 = vunpack.c.l.b16 %v704
        %v715 = vunpack.c.h.b16 %v704
        %v716 = vunpack.c.l.b16 %v705
        %v717 = vunpack.c.h.b16 %v705
        %v718 = vpack.c.b16 %v714, %v710
        %v719 = vpack.c.b16 %v715, %v711
        %v720 = vpack.c.b16 %v716, %v712
        %v721 = vpack.c.b16 %v717, %v713
        %v726 = vsel %vm500, %v721, 0
        %728 = vmatprep.subr.bf16.mxu0 0
        %729 = vmatpush1.bf16.msra.mxu0 %v437
        %730 = vmatprep.subr.bf16.mxu0 0
        %731 = vmatpush1.bf16.msra.mxu0 %v438
        %732 = vmatprep.subr.bf16.mxu0 0
        %733 = vmatpush1.bf16.msra.mxu0 %v439
        %734 = vmatprep.subr.bf16.mxu0 0
        %735 = vmatpush1.bf16.msra.mxu0 %v440
        %736 = vmatprep.subr.bf16.mxu0 0
        %737 = vmatpush1.bf16.msra.mxu0 %v441
        %738 = vmatprep.subr.bf16.mxu0 0
        %739 = vmatpush1.bf16.msra.mxu0 %v442
        %740 = vmatprep.subr.bf16.mxu0 0
        %741 = vmatpush1.bf16.msra.mxu0 %v443
        %742 = vmatprep.subr.bf16.mxu0 0
        %743 = vmatpush1.bf16.msra.mxu0 %v444
        %744 = vmatprep.subr.bf16.mxu0 0
        %745 = vmatpush1.bf16.msra.mxu0 %v445
        %746 = vmatprep.subr.bf16.mxu0 0
        %747 = vmatpush1.bf16.msra.mxu0 %v446
        %748 = vmatprep.subr.bf16.mxu0 0
        %749 = vmatpush1.bf16.msra.mxu0 %v447
        %750 = vmatprep.subr.bf16.mxu0 0
        %751 = vmatpush1.bf16.msra.mxu0 %v448
        %752 = vmatprep.subr.bf16.mxu0 0
        %753 = vmatpush1.bf16.msra.mxu0 %v449
        %754 = vmatprep.subr.bf16.mxu0 0
        %755 = vmatpush1.bf16.msra.mxu0 %v450
        %756 = vmatprep.subr.bf16.mxu0 0
        %757 = vmatpush1.bf16.msra.mxu0 %v451
        %758 = vmatprep.subr.bf16.mxu0 0
        %759 = vmatpush1.bf16.msra.mxu0 %v452
        %760 = vmatprep.mubr.bf16.mxu0 %v719
        %761 = vmatmul.mubr.bf16.gmra.mrb[0].mxu0 %v718
        %v762 = vpop.f32.mrb[0].mxu0
        %v763 = vadd.f32 0.0, %v762
        %v764 = vpop.f32.mrb[0].mxu0
        %v765 = vpop.f32.mrb[0].mxu0
        %v766 = vadd.f32 0.0, %v765
        %v767 = vpop.f32.mrb[0].mxu0
        %768 = vdwg.mxu0
        %769 = vmatprep.subr.bf16.mxu0 0
        %770 = vmatpush1.bf16.msra.mxu0 %v453
        %771 = vmatprep.subr.bf16.mxu0 0
        %772 = vmatpush1.bf16.msra.mxu0 %v454
        %773 = vmatprep.subr.bf16.mxu0 0
        %774 = vmatpush1.bf16.msra.mxu0 %v455
        %775 = vmatprep.subr.bf16.mxu0 0
        %776 = vmatpush1.bf16.msra.mxu0 %v456
        %777 = vmatprep.subr.bf16.mxu0 0
        %778 = vmatpush1.bf16.msra.mxu0 %v457
        %779 = vmatprep.subr.bf16.mxu0 0
        %780 = vmatpush1.bf16.msra.mxu0 %v458
        %781 = vmatprep.subr.bf16.mxu0 0
        %782 = vmatpush1.bf16.msra.mxu0 %v459
        %783 = vmatprep.subr.bf16.mxu0 0
        %784 = vmatpush1.bf16.msra.mxu0 %v460
        %785 = vmatprep.subr.bf16.mxu0 0
        %786 = vmatpush1.bf16.msra.mxu0 %v461
        %787 = vmatprep.subr.bf16.mxu0 0
        %788 = vmatpush1.bf16.msra.mxu0 %v462
        %789 = vmatprep.subr.bf16.mxu0 0
        %790 = vmatpush1.bf16.msra.mxu0 %v463
        %791 = vmatprep.subr.bf16.mxu0 0
        %792 = vmatpush1.bf16.msra.mxu0 %v464
        %793 = vmatprep.subr.bf16.mxu0 0
        %794 = vmatpush1.bf16.msra.mxu0 %v465
        %795 = vmatprep.subr.bf16.mxu0 0
        %796 = vmatpush1.bf16.msra.mxu0 %v466
        %797 = vmatprep.subr.bf16.mxu0 0
        %798 = vmatpush1.bf16.msra.mxu0 %v467
        %799 = vmatprep.subr.bf16.mxu0 0
        %800 = vmatpush1.bf16.msra.mxu0 %v506
        %801 = vmatprep.mubr.bf16.mxu0 %v726
        %802 = vmatmul.mubr.bf16.gmra.mrb[0].mxu0 %v720
        %v803 = vpop.f32.mrb[0].mxu0
        %v804 = vadd.f32 %v763, %v803
        %v805 = vpop.f32.mrb[0].mxu0
        %v806 = vpop.f32.mrb[0].mxu0
        %v807 = vadd.f32 %v766, %v806
        %v808 = vpop.f32.mrb[0].mxu0
        %809 = vdwg.mxu0
        %v810 = vmax.f32 %v699, %v804
        %v811 = vmax.f32 %v700, %v807
        %s812 = scalar_lea.vmem %s196, 96 [#allocation2]
        %v813 = vld [vmem:[%s812] sm:$0xff]
        %v814 = vld [vmem:[%s812 + $0x8] sm:$0xff]
        %v815 = vld [vmem:[%s812 + $0x10] sm:$0xff]
        %v816 = vld [vmem:[%s812 + $0x18] sm:$0xff]
        %v821 = vunpack.c.l.b16 %v813
        %v822 = vunpack.c.h.b16 %v813
        %v823 = vunpack.c.l.b16 %v814
        %v824 = vunpack.c.h.b16 %v814
        %v825 = vunpack.c.l.b16 %v815
        %v826 = vunpack.c.h.b16 %v815
        %v827 = vunpack.c.l.b16 %v816
        %v828 = vunpack.c.h.b16 %v816
        %v829 = vpack.c.b16 %v825, %v821
        %v830 = vpack.c.b16 %v826, %v822
        %v831 = vpack.c.b16 %v827, %v823
        %v832 = vpack.c.b16 %v828, %v824
        %v837 = vsel %vm500, %v832, 0
        %839 = vmatprep.subr.bf16.mxu0 0
        %840 = vmatpush1.bf16.msra.mxu0 %v437
        %841 = vmatprep.subr.bf16.mxu0 0
        %842 = vmatpush1.bf16.msra.mxu0 %v438
        %843 = vmatprep.subr.bf16.mxu0 0
        %844 = vmatpush1.bf16.msra.mxu0 %v439
        %845 = vmatprep.subr.bf16.mxu0 0
        %846 = vmatpush1.bf16.msra.mxu0 %v440
        %847 = vmatprep.subr.bf16.mxu0 0
        %848 = vmatpush1.bf16.msra.mxu0 %v441
        %849 = vmatprep.subr.bf16.mxu0 0
        %850 = vmatpush1.bf16.msra.mxu0 %v442
        %851 = vmatprep.subr.bf16.mxu0 0
        %852 = vmatpush1.bf16.msra.mxu0 %v443
        %853 = vmatprep.subr.bf16.mxu0 0
        %854 = vmatpush1.bf16.msra.mxu0 %v444
        %855 = vmatprep.subr.bf16.mxu0 0
        %856 = vmatpush1.bf16.msra.mxu0 %v445
        %857 = vmatprep.subr.bf16.mxu0 0
        %858 = vmatpush1.bf16.msra.mxu0 %v446
        %859 = vmatprep.subr.bf16.mxu0 0
        %860 = vmatpush1.bf16.msra.mxu0 %v447
        %861 = vmatprep.subr.bf16.mxu0 0
        %862 = vmatpush1.bf16.msra.mxu0 %v448
        %863 = vmatprep.subr.bf16.mxu0 0
        %864 = vmatpush1.bf16.msra.mxu0 %v449
        %865 = vmatprep.subr.bf16.mxu0 0
        %866 = vmatpush1.bf16.msra.mxu0 %v450
        %867 = vmatprep.subr.bf16.mxu0 0
        %868 = vmatpush1.bf16.msra.mxu0 %v451
        %869 = vmatprep.subr.bf16.mxu0 0
        %870 = vmatpush1.bf16.msra.mxu0 %v452
        %871 = vmatprep.mubr.bf16.mxu0 %v830
        %872 = vmatmul.mubr.bf16.gmra.mrb[0].mxu0 %v829
        %v873 = vpop.f32.mrb[0].mxu0
        %v874 = vadd.f32 0.0, %v873
        %v875 = vpop.f32.mrb[0].mxu0
        %v876 = vpop.f32.mrb[0].mxu0
        %v877 = vadd.f32 0.0, %v876
        %v878 = vpop.f32.mrb[0].mxu0
        %879 = vdwg.mxu0
        %880 = vmatprep.subr.bf16.mxu0 0
        %881 = vmatpush1.bf16.msra.mxu0 %v453
        %882 = vmatprep.subr.bf16.mxu0 0
        %883 = vmatpush1.bf16.msra.mxu0 %v454
        %884 = vmatprep.subr.bf16.mxu0 0
        %885 = vmatpush1.bf16.msra.mxu0 %v455
        %886 = vmatprep.subr.bf16.mxu0 0
        %887 = vmatpush1.bf16.msra.mxu0 %v456
        %888 = vmatprep.subr.bf16.mxu0 0
        %889 = vmatpush1.bf16.msra.mxu0 %v457
        %890 = vmatprep.subr.bf16.mxu0 0
        %891 = vmatpush1.bf16.msra.mxu0 %v458
        %892 = vmatprep.subr.bf16.mxu0 0
        %893 = vmatpush1.bf16.msra.mxu0 %v459
        %894 = vmatprep.subr.bf16.mxu0 0
        %895 = vmatpush1.bf16.msra.mxu0 %v460
        %896 = vmatprep.subr.bf16.mxu0 0
        %897 = vmatpush1.bf16.msra.mxu0 %v461
        %898 = vmatprep.subr.bf16.mxu0 0
        %899 = vmatpush1.bf16.msra.mxu0 %v462
        %900 = vmatprep.subr.bf16.mxu0 0
        %901 = vmatpush1.bf16.msra.mxu0 %v463
        %902 = vmatprep.subr.bf16.mxu0 0
        %903 = vmatpush1.bf16.msra.mxu0 %v464
        %904 = vmatprep.subr.bf16.mxu0 0
        %905 = vmatpush1.bf16.msra.mxu0 %v465
        %906 = vmatprep.subr.bf16.mxu0 0
        %907 = vmatpush1.bf16.msra.mxu0 %v466
        %908 = vmatprep.subr.bf16.mxu0 0
        %909 = vmatpush1.bf16.msra.mxu0 %v467
        %910 = vmatprep.subr.bf16.mxu0 0
        %911 = vmatpush1.bf16.msra.mxu0 %v506
        %912 = vmatprep.mubr.bf16.mxu0 %v837
        %913 = vmatmul.mubr.bf16.gmra.mrb[0].mxu0 %v831
        %v914 = vpop.f32.mrb[0].mxu0
        %v915 = vadd.f32 %v874, %v914
        %v916 = vpop.f32.mrb[0].mxu0
        %v917 = vpop.f32.mrb[0].mxu0
        %v918 = vadd.f32 %v877, %v917
        %v919 = vpop.f32.mrb[0].mxu0
        %920 = vdwg.mxu0
        %v921 = vmax.f32 %v810, %v915
        %v922 = vmax.f32 %v811, %v918
        %v923 = vld [vmem:[%s2] sm:$0x1]
        %v925 = vlaneseq
        %v926 = vshrl.u32 %v925, 7
        %v927 = vsub.s32 0, %v926
        %v928 = vrot.slane %v923, %v927
        %v930 = vadd.f32 %v921, %v928
        %v931 = vadd.f32 %v922, %v928
        %v932 = vmax.f32 %v930, 0.0
        %v933 = vmax.f32 %v931, 0.0
        %v934 = vpack.c.bf16 %v933, %v932
        %v936 = vunpack.c.l.b16 %v934
        %v937 = vunpack.c.h.b16 %v934
        %v938 = vpack.c.b16 %v936, %v936
        %v939 = vpack.c.b16 %v937, %v937
        %vm942 = vcmask 404480
        %943 = vst.msk [vmem:[%s222] sm:$0xf] %vm942, %v938
        %944 = vst.msk [vmem:[%s222 + $0x4] sm:$0xf] %vm942, %v939
        %s945 = smul.u32 2, %s14
        %p946 = scmp.lt.s32.totalorder %s945, 3
        %s947 = scalar_select %p946, %s945, 3
        %s948 = smul.addr %s947, 4
        %s949 = scalar_lea.vmem %s3, %s948
        // Predicated region
        $region56: #{basic_conv_net_forward.4} parent=50 // pred_check
          %p950 = pneg %p100
        $region57: #{basic_conv_net_forward.4} parent=50 // pred_check_branch
          %952 = sbr.rel (%p950) target = $region59
        $region58: #{basic_conv_net_forward.4} parent=50 // pred_region
          %s953 = smul.u32 2, %s14
        $region59: #{basic_conv_net_forward.4} parent=50 // pred_fallthru
          _
      $region51: #{basic_conv_net_forward.4} parent=5 // pred_fallthru
        _
      %p954 = scmp.le.s32.totalorder 2, %s9
      // Predicated region
      $region60: #{basic_conv_net_forward.4} parent=5 // pred_check
        %p955 = pneg %p954
      $region61: #{basic_conv_net_forward.4} parent=5 // pred_check_branch
        %957 = sbr.rel (%p955) target = $region63
      $region62: #{basic_conv_net_forward.4} parent=5 // pred_region
        %s958 = ssub.s32 %s9, 2
        // Predicated region
        $region64: #{basic_conv_net_forward.4} parent=62 // pred_check
          %p959 = pneg %p106
        $region65: #{basic_conv_net_forward.4} parent=62 // pred_check_branch
          %961 = sbr.rel (%p959) target = $region67
        $region66: #{basic_conv_net_forward.4} parent=62 // pred_region
          %s962 = smul.u32 2, %s15
          %p963 = scmp.lt.s32.totalorder %s962, 3
          %s964 = scalar_select %p963, %s962, 3
          %s965 = smul.addr %s964, 4
          %s966 = scalar_lea.vmem %s3, %s965
        $region67: #{basic_conv_net_forward.4} parent=62 // pred_fallthru
          _
      $region63: #{basic_conv_net_forward.4} parent=5 // pred_fallthru
        _
    $region6: #{basic_conv_net_forward.4} parent=1 // loop_footer
      %s13 = sadd.s32 1, %s9
    $region7: #{basic_conv_net_forward.4} parent=1 // loop_footer_branch
      %8 = sbr.rel target = $region3
    $region8: #{basic_conv_net_forward.4} parent=1 // loop_exit
      _

// kernel: basic_conv_net_forward.5
$region0: #{basic_conv_net_forward.5}
  #allocation0 [shape = 'u32[]', space=smem, size = 0x4, offset = 0x4, fixed_abs, tag = 'smem constant byte address 0x4 - core index']
  #allocation1 [shape = 'u32[144,128]{1,0:T(1,128)}', space=vmem, size = 0x12000, scoped, tag = 'internal scratch']
  %s0 = inlined_call_operand.vmem [shape: bf16[8,800], index: 0, kind: input, shape index: {}]
  %s1 = inlined_call_operand.vmem [shape: bf16[800,128], index: 1, kind: input, shape index: {}]
  %s2 = inlined_call_operand.vmem [shape: f32[1,128], index: 2, kind: input, shape index: {}]
  %s3 = inlined_call_operand.vmem [shape: bf16[128,3], index: 3, kind: input, shape index: {}]
  %s4 = inlined_call_operand.vmem [shape: f32[1,3], index: 4, kind: input, shape index: {}]
  %s5 = inlined_call_operand.vmem [shape: f32[8,3], index: 5, kind: output, shape index: {}]
  %s6 = sld [smem:[#allocation0]]
  $region30: #{basic_conv_net_forward.5} parent=0
    _
  %s8 = ssub.s32 1, %s6
  %s9 = scalar_select 0, %s8, %s6
  // Predicated region
  $region2: #{basic_conv_net_forward.5} parent=0 // pred_check
    _
  $region3: #{basic_conv_net_forward.5} parent=0 // pred_check_branch
    %11 = sbr.rel (0) target = $region5
  $region4: #{basic_conv_net_forward.5} parent=0 // pred_region
    _
  $region5: #{basic_conv_net_forward.5} parent=0 // pred_fallthru
    _
  // Predicated region
  $region6: #{basic_conv_net_forward.5} parent=0 // pred_check
    _
  $region7: #{basic_conv_net_forward.5} parent=0 // pred_check_branch
    %13 = sbr.rel (0) target = $region9
  $region8: #{basic_conv_net_forward.5} parent=0 // pred_region
    _
  $region9: #{basic_conv_net_forward.5} parent=0 // pred_fallthru
    _
  // Predicated region
  $region10: #{basic_conv_net_forward.5} parent=0 // pred_check
    _
  $region11: #{basic_conv_net_forward.5} parent=0 // pred_check_branch
    %15 = sbr.rel (0) target = $region13
  $region12: #{basic_conv_net_forward.5} parent=0 // pred_region
    _
  $region13: #{basic_conv_net_forward.5} parent=0 // pred_fallthru
    _
  // Predicated region
  $region14: #{basic_conv_net_forward.5} parent=0 // pred_check
    _
  $region15: #{basic_conv_net_forward.5} parent=0 // pred_check_branch
    %17 = sbr.rel (0) target = $region17
  $region16: #{basic_conv_net_forward.5} parent=0 // pred_region
    _
  $region17: #{basic_conv_net_forward.5} parent=0 // pred_fallthru
    _
  // Predicated region
  $region18: #{basic_conv_net_forward.5} parent=0 // pred_check
    _
  $region19: #{basic_conv_net_forward.5} parent=0 // pred_check_branch
    %19 = sbr.rel (0) target = $region21
  $region20: #{basic_conv_net_forward.5} parent=0 // pred_region
    _
  $region21: #{basic_conv_net_forward.5} parent=0 // pred_fallthru
    _
  %v21 = vld [vmem:[%s0] sm:$0xff]
  %v22 = vld [vmem:[%s0 + $0x8] sm:$0xff]
  %v23 = vld [vmem:[%s0 + $0x10] sm:$0xff]
  %v24 = vld [vmem:[%s0 + $0x18] sm:$0xf]
  %v25 = vld [vmem:[%s1] sm:$0xf]
  %v26 = vld [vmem:[%s1 + $0x4] sm:$0xf]
  %v27 = vld [vmem:[%s1 + $0x8] sm:$0xf]
  %v28 = vld [vmem:[%s1 + $0xc] sm:$0xf]
  %v29 = vld [vmem:[%s1 + $0x10] sm:$0xf]
  %v30 = vld [vmem:[%s1 + $0x14] sm:$0xf]
  %v31 = vld [vmem:[%s1 + $0x18] sm:$0xf]
  %v32 = vld [vmem:[%s1 + $0x1c] sm:$0xf]
  %v33 = vld [vmem:[%s1 + $0x20] sm:$0xf]
  %v34 = vld [vmem:[%s1 + $0x24] sm:$0xf]
  %v35 = vld [vmem:[%s1 + $0x28] sm:$0xf]
  %v36 = vld [vmem:[%s1 + $0x2c] sm:$0xf]
  %v37 = vld [vmem:[%s1 + $0x30] sm:$0xf]
  %v38 = vld [vmem:[%s1 + $0x34] sm:$0xf]
  %v39 = vld [vmem:[%s1 + $0x38] sm:$0xf]
  %v40 = vld [vmem:[%s1 + $0x3c] sm:$0xf]
  %v41 = vld [vmem:[%s1 + $0x40] sm:$0xf]
  %v42 = vld [vmem:[%s1 + $0x44] sm:$0xf]
  %v43 = vld [vmem:[%s1 + $0x48] sm:$0xf]
  %v44 = vld [vmem:[%s1 + $0x4c] sm:$0xf]
  %v45 = vld [vmem:[%s1 + $0x50] sm:$0xf]
  %v46 = vld [vmem:[%s1 + $0x54] sm:$0xf]
  %v47 = vld [vmem:[%s1 + $0x58] sm:$0xf]
  %v48 = vld [vmem:[%s1 + $0x5c] sm:$0xf]
  %v49 = vld [vmem:[%s1 + $0x60] sm:$0xf]
  %v50 = vld [vmem:[%s1 + $0x64] sm:$0xf]
  %v51 = vld [vmem:[%s1 + $0x68] sm:$0xf]
  %v52 = vld [vmem:[%s1 + $0x6c] sm:$0xf]
  %v53 = vld [vmem:[%s1 + $0x70] sm:$0xf]
  %v54 = vld [vmem:[%s1 + $0x74] sm:$0xf]
  %v55 = vld [vmem:[%s1 + $0x78] sm:$0xf]
  %v56 = vld [vmem:[%s1 + $0x7c] sm:$0xf]
  %v57 = vld [vmem:[%s1 + $0x80] sm:$0xf]
  %v58 = vld [vmem:[%s1 + $0x84] sm:$0xf]
  %v59 = vld [vmem:[%s1 + $0x88] sm:$0xf]
  %v60 = vld [vmem:[%s1 + $0x8c] sm:$0xf]
  %v61 = vld [vmem:[%s1 + $0x90] sm:$0xf]
  %v62 = vld [vmem:[%s1 + $0x94] sm:$0xf]
  %v63 = vld [vmem:[%s1 + $0x98] sm:$0xf]
  %v64 = vld [vmem:[%s1 + $0x9c] sm:$0xf]
  %v65 = vld [vmem:[%s1 + $0xa0] sm:$0xf]
  %v66 = vld [vmem:[%s1 + $0xa4] sm:$0xf]
  %v67 = vld [vmem:[%s1 + $0xa8] sm:$0xf]
  %v68 = vld [vmem:[%s1 + $0xac] sm:$0xf]
  %v69 = vld [vmem:[%s1 + $0xb0] sm:$0xf]
  %v70 = vld [vmem:[%s1 + $0xb4] sm:$0xf]
  %v71 = vld [vmem:[%s1 + $0xb8] sm:$0xf]
  %v72 = vld [vmem:[%s1 + $0xbc] sm:$0xf]
  %v73 = vld [vmem:[%s1 + $0xc0] sm:$0xf]
  %v74 = vld [vmem:[%s1 + $0xc4] sm:$0xf]
  %v75 = vld [vmem:[%s1 + $0xc8] sm:$0xf]
  %v76 = vld [vmem:[%s1 + $0xcc] sm:$0xf]
  %v77 = vld [vmem:[%s1 + $0xd0] sm:$0xf]
  %v78 = vld [vmem:[%s1 + $0xd4] sm:$0xf]
  %v79 = vld [vmem:[%s1 + $0xd8] sm:$0xf]
  %v80 = vld [vmem:[%s1 + $0xdc] sm:$0xf]
  %v81 = vld [vmem:[%s1 + $0xe0] sm:$0xf]
  %v82 = vld [vmem:[%s1 + $0xe4] sm:$0xf]
  %v83 = vld [vmem:[%s1 + $0xe8] sm:$0xf]
  %v84 = vld [vmem:[%s1 + $0xec] sm:$0xf]
  %v85 = vld [vmem:[%s1 + $0xf0] sm:$0xf]
  %v86 = vld [vmem:[%s1 + $0xf4] sm:$0xf]
  %v87 = vld [vmem:[%s1 + $0xf8] sm:$0xf]
  %v88 = vld [vmem:[%s1 + $0xfc] sm:$0xf]
  %v89 = vld [vmem:[%s1 + $0x100] sm:$0xf]
  %v90 = vld [vmem:[%s1 + $0x104] sm:$0xf]
  %v91 = vld [vmem:[%s1 + $0x108] sm:$0xf]
  %v92 = vld [vmem:[%s1 + $0x10c] sm:$0xf]
  %v93 = vld [vmem:[%s1 + $0x110] sm:$0xf]
  %v94 = vld [vmem:[%s1 + $0x114] sm:$0xf]
  %v95 = vld [vmem:[%s1 + $0x118] sm:$0xf]
  %v96 = vld [vmem:[%s1 + $0x11c] sm:$0xf]
  %v97 = vld [vmem:[%s1 + $0x120] sm:$0xf]
  %v98 = vld [vmem:[%s1 + $0x124] sm:$0xf]
  %v99 = vld [vmem:[%s1 + $0x128] sm:$0xf]
  %v100 = vld [vmem:[%s1 + $0x12c] sm:$0xf]
  %v101 = vld [vmem:[%s1 + $0x130] sm:$0xf]
  %v102 = vld [vmem:[%s1 + $0x134] sm:$0xf]
  %v103 = vld [vmem:[%s1 + $0x138] sm:$0xf]
  %v104 = vld [vmem:[%s1 + $0x13c] sm:$0xf]
  %v105 = vld [vmem:[%s1 + $0x140] sm:$0xf]
  %v106 = vld [vmem:[%s1 + $0x144] sm:$0xf]
  %v107 = vld [vmem:[%s1 + $0x148] sm:$0xf]
  %v108 = vld [vmem:[%s1 + $0x14c] sm:$0xf]
  %v109 = vld [vmem:[%s1 + $0x150] sm:$0xf]
  %v110 = vld [vmem:[%s1 + $0x154] sm:$0xf]
  %v111 = vld [vmem:[%s1 + $0x158] sm:$0xf]
  %v112 = vld [vmem:[%s1 + $0x15c] sm:$0xf]
  %v113 = vld [vmem:[%s1 + $0x160] sm:$0xf]
  %v114 = vld [vmem:[%s1 + $0x164] sm:$0xf]
  %v115 = vld [vmem:[%s1 + $0x168] sm:$0xf]
  %v116 = vld [vmem:[%s1 + $0x16c] sm:$0xf]
  %v117 = vld [vmem:[%s1 + $0x170] sm:$0xf]
  %v118 = vld [vmem:[%s1 + $0x174] sm:$0xf]
  %v119 = vld [vmem:[%s1 + $0x178] sm:$0xf]
  %v120 = vld [vmem:[%s1 + $0x17c] sm:$0xf]
  %v121 = vld [vmem:[%s1 + $0x180] sm:$0xf]
  %v122 = vld [vmem:[%s1 + $0x184] sm:$0xf]
  %v123 = vld [vmem:[%s1 + $0x188] sm:$0xf]
  %v124 = vld [vmem:[%s1 + $0x18c] sm:$0xf]
  %v125 = vld [vmem:[%s2] sm:$0x1]
  %v127 = vlaneseq
  %v128 = vshrl.u32 %v127, 7
  %v129 = vsub.s32 0, %v128
  %v130 = vrot.slane %v125, %v129
  %v136 = vunpack.c.l.b16 %v21
  %v137 = vunpack.c.h.b16 %v21
  %v138 = vunpack.c.l.b16 %v22
  %v139 = vunpack.c.h.b16 %v22
  %v140 = vunpack.c.l.b16 %v23
  %v141 = vunpack.c.h.b16 %v23
  %v142 = vunpack.c.l.b16 %v24
  %v143 = vpack.c.b16 %v136, %v136
  %v144 = vpack.c.b16 %v137, %v137
  %v145 = vpack.c.b16 %v138, %v138
  %v146 = vpack.c.b16 %v139, %v139
  %v147 = vpack.c.b16 %v140, %v140
  %v148 = vpack.c.b16 %v141, %v141
  %v149 = vpack.c.b16 %v142, %v142
  %v256 = vunpack.c.l.b16 %v25
  %v257 = vunpack.c.l.b16 %v26
  %v258 = vunpack.c.l.b16 %v27
  %v259 = vunpack.c.l.b16 %v28
  %v260 = vunpack.c.l.b16 %v29
  %v261 = vunpack.c.l.b16 %v30
  %v262 = vunpack.c.l.b16 %v31
  %v263 = vunpack.c.l.b16 %v32
  %v264 = vunpack.c.l.b16 %v33
  %v265 = vunpack.c.l.b16 %v34
  %v266 = vunpack.c.l.b16 %v35
  %v267 = vunpack.c.l.b16 %v36
  %v268 = vunpack.c.l.b16 %v37
  %v269 = vunpack.c.l.b16 %v38
  %v270 = vunpack.c.l.b16 %v39
  %v271 = vunpack.c.l.b16 %v40
  %v272 = vunpack.c.l.b16 %v41
  %v273 = vunpack.c.l.b16 %v42
  %v274 = vunpack.c.l.b16 %v43
  %v275 = vunpack.c.l.b16 %v44
  %v276 = vunpack.c.l.b16 %v45
  %v277 = vunpack.c.l.b16 %v46
  %v278 = vunpack.c.l.b16 %v47
  %v279 = vunpack.c.l.b16 %v48
  %v280 = vunpack.c.l.b16 %v49
  %v281 = vunpack.c.l.b16 %v50
  %v282 = vunpack.c.l.b16 %v51
  %v283 = vunpack.c.l.b16 %v52
  %v284 = vunpack.c.l.b16 %v53
  %v285 = vunpack.c.l.b16 %v54
  %v286 = vunpack.c.l.b16 %v55
  %v287 = vunpack.c.l.b16 %v56
  %v288 = vunpack.c.l.b16 %v57
  %v289 = vunpack.c.l.b16 %v58
  %v290 = vunpack.c.l.b16 %v59
  %v291 = vunpack.c.l.b16 %v60
  %v292 = vunpack.c.l.b16 %v61
  %v293 = vunpack.c.l.b16 %v62
  %v294 = vunpack.c.l.b16 %v63
  %v295 = vunpack.c.l.b16 %v64
  %v296 = vunpack.c.l.b16 %v65
  %v297 = vunpack.c.l.b16 %v66
  %v298 = vunpack.c.l.b16 %v67
  %v299 = vunpack.c.l.b16 %v68
  %v300 = vunpack.c.l.b16 %v69
  %v301 = vunpack.c.l.b16 %v70
  %v302 = vunpack.c.l.b16 %v71
  %v303 = vunpack.c.l.b16 %v72
  %v304 = vunpack.c.l.b16 %v73
  %v305 = vunpack.c.l.b16 %v74
  %v306 = vunpack.c.l.b16 %v75
  %v307 = vunpack.c.l.b16 %v76
  %v308 = vunpack.c.l.b16 %v77
  %v309 = vunpack.c.l.b16 %v78
  %v310 = vunpack.c.l.b16 %v79
  %v311 = vunpack.c.l.b16 %v80
  %v312 = vunpack.c.l.b16 %v81
  %v313 = vunpack.c.l.b16 %v82
  %v314 = vunpack.c.l.b16 %v83
  %v315 = vunpack.c.l.b16 %v84
  %v316 = vunpack.c.l.b16 %v85
  %v317 = vunpack.c.l.b16 %v86
  %v318 = vunpack.c.l.b16 %v87
  %v319 = vunpack.c.l.b16 %v88
  %v320 = vunpack.c.l.b16 %v89
  %v321 = vunpack.c.l.b16 %v90
  %v322 = vunpack.c.l.b16 %v91
  %v323 = vunpack.c.l.b16 %v92
  %v324 = vunpack.c.l.b16 %v93
  %v325 = vunpack.c.l.b16 %v94
  %v326 = vunpack.c.l.b16 %v95
  %v327 = vunpack.c.l.b16 %v96
  %v328 = vunpack.c.l.b16 %v97
  %v329 = vunpack.c.l.b16 %v98
  %v330 = vunpack.c.l.b16 %v99
  %v331 = vunpack.c.l.b16 %v100
  %v332 = vunpack.c.l.b16 %v101
  %v333 = vunpack.c.l.b16 %v102
  %v334 = vunpack.c.l.b16 %v103
  %v335 = vunpack.c.l.b16 %v104
  %v336 = vunpack.c.l.b16 %v105
  %v337 = vunpack.c.l.b16 %v106
  %v338 = vunpack.c.l.b16 %v107
  %v339 = vunpack.c.l.b16 %v108
  %v340 = vunpack.c.l.b16 %v109
  %v341 = vunpack.c.l.b16 %v110
  %v342 = vunpack.c.l.b16 %v111
  %v343 = vunpack.c.l.b16 %v112
  %v344 = vunpack.c.l.b16 %v113
  %v345 = vunpack.c.l.b16 %v114
  %v346 = vunpack.c.l.b16 %v115
  %v347 = vunpack.c.l.b16 %v116
  %v348 = vunpack.c.l.b16 %v117
  %v349 = vunpack.c.l.b16 %v118
  %v350 = vunpack.c.l.b16 %v119
  %v351 = vunpack.c.l.b16 %v120
  %v352 = vunpack.c.l.b16 %v121
  %v353 = vunpack.c.l.b16 %v122
  %v354 = vunpack.c.l.b16 %v123
  %v355 = vunpack.c.l.b16 %v124
  %v356 = vpack.c.b16 %v257, %v256
  %v357 = vpack.c.b16 %v259, %v258
  %v358 = vpack.c.b16 %v261, %v260
  %v359 = vpack.c.b16 %v263, %v262
  %v360 = vpack.c.b16 %v265, %v264
  %v361 = vpack.c.b16 %v267, %v266
  %v362 = vpack.c.b16 %v269, %v268
  %v363 = vpack.c.b16 %v271, %v270
  %v364 = vpack.c.b16 %v273, %v272
  %v365 = vpack.c.b16 %v275, %v274
  %v366 = vpack.c.b16 %v277, %v276
  %v367 = vpack.c.b16 %v279, %v278
  %v368 = vpack.c.b16 %v281, %v280
  %v369 = vpack.c.b16 %v283, %v282
  %v370 = vpack.c.b16 %v285, %v284
  %v371 = vpack.c.b16 %v287, %v286
  %v372 = vpack.c.b16 %v289, %v288
  %v373 = vpack.c.b16 %v291, %v290
  %v374 = vpack.c.b16 %v293, %v292
  %v375 = vpack.c.b16 %v295, %v294
  %v376 = vpack.c.b16 %v297, %v296
  %v377 = vpack.c.b16 %v299, %v298
  %v378 = vpack.c.b16 %v301, %v300
  %v379 = vpack.c.b16 %v303, %v302
  %v380 = vpack.c.b16 %v305, %v304
  %v381 = vpack.c.b16 %v307, %v306
  %v382 = vpack.c.b16 %v309, %v308
  %v383 = vpack.c.b16 %v311, %v310
  %v384 = vpack.c.b16 %v313, %v312
  %v385 = vpack.c.b16 %v315, %v314
  %v386 = vpack.c.b16 %v317, %v316
  %v387 = vpack.c.b16 %v319, %v318
  %v388 = vpack.c.b16 %v321, %v320
  %v389 = vpack.c.b16 %v323, %v322
  %v390 = vpack.c.b16 %v325, %v324
  %v391 = vpack.c.b16 %v327, %v326
  %v392 = vpack.c.b16 %v329, %v328
  %v393 = vpack.c.b16 %v331, %v330
  %v394 = vpack.c.b16 %v333, %v332
  %v395 = vpack.c.b16 %v335, %v334
  %v396 = vpack.c.b16 %v337, %v336
  %v397 = vpack.c.b16 %v339, %v338
  %v398 = vpack.c.b16 %v341, %v340
  %v399 = vpack.c.b16 %v343, %v342
  %v400 = vpack.c.b16 %v345, %v344
  %v401 = vpack.c.b16 %v347, %v346
  %v402 = vpack.c.b16 %v349, %v348
  %v403 = vpack.c.b16 %v351, %v350
  %v404 = vpack.c.b16 %v353, %v352
  %v405 = vpack.c.b16 %v355, %v354
  %vm456 = vcmask 261120
  %v458 = vsel %vm456, %v149, 0
  %460 = vmatprep.subr.bf16.mxu0 0
  %461 = vmatpush1.bf16.msra.mxu0 %v356
  %462 = vmatprep.subr.bf16.mxu0 0
  %463 = vmatpush1.bf16.msra.mxu0 %v357
  %464 = vmatprep.subr.bf16.mxu0 0
  %465 = vmatpush1.bf16.msra.mxu0 %v358
  %466 = vmatprep.subr.bf16.mxu0 0
  %467 = vmatpush1.bf16.msra.mxu0 %v359
  %468 = vmatprep.subr.bf16.mxu0 0
  %469 = vmatpush1.bf16.msra.mxu0 %v360
  %470 = vmatprep.subr.bf16.mxu0 0
  %471 = vmatpush1.bf16.msra.mxu0 %v361
  %472 = vmatprep.subr.bf16.mxu0 0
  %473 = vmatpush1.bf16.msra.mxu0 %v362
  %474 = vmatprep.subr.bf16.mxu0 0
  %475 = vmatpush1.bf16.msra.mxu0 %v363
  %476 = vmatprep.subr.bf16.mxu0 0
  %477 = vmatpush1.bf16.msra.mxu0 %v364
  %478 = vmatprep.subr.bf16.mxu0 0
  %479 = vmatpush1.bf16.msra.mxu0 %v365
  %480 = vmatprep.subr.bf16.mxu0 0
  %481 = vmatpush1.bf16.msra.mxu0 %v366
  %482 = vmatprep.subr.bf16.mxu0 0
  %483 = vmatpush1.bf16.msra.mxu0 %v367
  %484 = vmatprep.subr.bf16.mxu0 0
  %485 = vmatpush1.bf16.msra.mxu0 %v368
  %486 = vmatprep.subr.bf16.mxu0 0
  %487 = vmatpush1.bf16.msra.mxu0 %v369
  %488 = vmatprep.subr.bf16.mxu0 0
  %489 = vmatpush1.bf16.msra.mxu0 %v370
  %490 = vmatprep.subr.bf16.mxu0 0
  %491 = vmatpush1.bf16.msra.mxu0 %v371
  %492 = vmatprep.mubr.bf16.mxu0 %v144
  %493 = vmatmul.mubr.bf16.gmra.mrb[0].mxu0 %v143
  %v494 = vpop.f32.mrb[0].mxu0
  %v495 = vadd.f32 %v130, %v494
  %v496 = vpop.f32.mrb[0].mxu0
  %v497 = vpop.f32.mrb[0].mxu0
  %v498 = vpop.f32.mrb[0].mxu0
  %499 = vdwg.mxu0
  %500 = vmatprep.subr.bf16.mxu0 0
  %501 = vmatpush1.bf16.msra.mxu0 %v372
  %502 = vmatprep.subr.bf16.mxu0 0
  %503 = vmatpush1.bf16.msra.mxu0 %v373
  %504 = vmatprep.subr.bf16.mxu0 0
  %505 = vmatpush1.bf16.msra.mxu0 %v374
  %506 = vmatprep.subr.bf16.mxu0 0
  %507 = vmatpush1.bf16.msra.mxu0 %v375
  %508 = vmatprep.subr.bf16.mxu0 0
  %509 = vmatpush1.bf16.msra.mxu0 %v376
  %510 = vmatprep.subr.bf16.mxu0 0
  %511 = vmatpush1.bf16.msra.mxu0 %v377
  %512 = vmatprep.subr.bf16.mxu0 0
  %513 = vmatpush1.bf16.msra.mxu0 %v378
  %514 = vmatprep.subr.bf16.mxu0 0
  %515 = vmatpush1.bf16.msra.mxu0 %v379
  %516 = vmatprep.subr.bf16.mxu0 0
  %517 = vmatpush1.bf16.msra.mxu0 %v380
  %518 = vmatprep.subr.bf16.mxu0 0
  %519 = vmatpush1.bf16.msra.mxu0 %v381
  %520 = vmatprep.subr.bf16.mxu0 0
  %521 = vmatpush1.bf16.msra.mxu0 %v382
  %522 = vmatprep.subr.bf16.mxu0 0
  %523 = vmatpush1.bf16.msra.mxu0 %v383
  %524 = vmatprep.subr.bf16.mxu0 0
  %525 = vmatpush1.bf16.msra.mxu0 %v384
  %526 = vmatprep.subr.bf16.mxu0 0
  %527 = vmatpush1.bf16.msra.mxu0 %v385
  %528 = vmatprep.subr.bf16.mxu0 0
  %529 = vmatpush1.bf16.msra.mxu0 %v386
  %530 = vmatprep.subr.bf16.mxu0 0
  %531 = vmatpush1.bf16.msra.mxu0 %v387
  %532 = vmatprep.mubr.bf16.mxu0 %v146
  %533 = vmatmul.mubr.bf16.gmra.mrb[0].mxu0 %v145
  %v534 = vpop.f32.mrb[0].mxu0
  %v535 = vadd.f32 %v495, %v534
  %v536 = vpop.f32.mrb[0].mxu0
  %v537 = vpop.f32.mrb[0].mxu0
  %v538 = vpop.f32.mrb[0].mxu0
  %539 = vdwg.mxu0
  %540 = vmatprep.subr.bf16.mxu0 0
  %541 = vmatpush1.bf16.msra.mxu0 %v388
  %542 = vmatprep.subr.bf16.mxu0 0
  %543 = vmatpush1.bf16.msra.mxu0 %v389
  %544 = vmatprep.subr.bf16.mxu0 0
  %545 = vmatpush1.bf16.msra.mxu0 %v390
  %546 = vmatprep.subr.bf16.mxu0 0
  %547 = vmatpush1.bf16.msra.mxu0 %v391
  %548 = vmatprep.subr.bf16.mxu0 0
  %549 = vmatpush1.bf16.msra.mxu0 %v392
  %550 = vmatprep.subr.bf16.mxu0 0
  %551 = vmatpush1.bf16.msra.mxu0 %v393
  %552 = vmatprep.subr.bf16.mxu0 0
  %553 = vmatpush1.bf16.msra.mxu0 %v394
  %554 = vmatprep.subr.bf16.mxu0 0
  %555 = vmatpush1.bf16.msra.mxu0 %v395
  %556 = vmatprep.subr.bf16.mxu0 0
  %557 = vmatpush1.bf16.msra.mxu0 %v396
  %558 = vmatprep.subr.bf16.mxu0 0
  %559 = vmatpush1.bf16.msra.mxu0 %v397
  %560 = vmatprep.subr.bf16.mxu0 0
  %561 = vmatpush1.bf16.msra.mxu0 %v398
  %562 = vmatprep.subr.bf16.mxu0 0
  %563 = vmatpush1.bf16.msra.mxu0 %v399
  %564 = vmatprep.subr.bf16.mxu0 0
  %565 = vmatpush1.bf16.msra.mxu0 %v400
  %566 = vmatprep.subr.bf16.mxu0 0
  %567 = vmatpush1.bf16.msra.mxu0 %v401
  %568 = vmatprep.subr.bf16.mxu0 0
  %569 = vmatpush1.bf16.msra.mxu0 %v402
  %570 = vmatprep.subr.bf16.mxu0 0
  %571 = vmatpush1.bf16.msra.mxu0 %v403
  %572 = vmatprep.mubr.bf16.mxu0 %v148
  %573 = vmatmul.mubr.bf16.gmra.mrb[0].mxu0 %v147
  %v574 = vpop.f32.mrb[0].mxu0
  %v575 = vadd.f32 %v535, %v574
  %v576 = vpop.f32.mrb[0].mxu0
  %v577 = vpop.f32.mrb[0].mxu0
  %v578 = vpop.f32.mrb[0].mxu0
  %579 = vdwg.mxu0
  %580 = vmatprep.subr.bf16.mxu0 0
  %581 = vmatpush1.bf16.msra.mxu0 %v404
  %582 = vmatprep.subr.bf16.mxu0 0
  %583 = vmatpush1.bf16.msra.mxu0 %v405
  %584 = vmatprep.subr.bf16.mxu0 0
  %585 = vmatpush1.bf16.msra.mxu0 0
  %586 = vmatprep.subr.bf16.mxu0 0
  %587 = vmatpush1.bf16.msra.mxu0 0
  %588 = vmatprep.subr.bf16.mxu0 0
  %589 = vmatpush1.bf16.msra.mxu0 0
  %590 = vmatprep.subr.bf16.mxu0 0
  %591 = vmatpush1.bf16.msra.mxu0 0
  %592 = vmatprep.subr.bf16.mxu0 0
  %593 = vmatpush1.bf16.msra.mxu0 0
  %594 = vmatprep.subr.bf16.mxu0 0
  %595 = vmatpush1.bf16.msra.mxu0 0
  %596 = vmatprep.subr.bf16.mxu0 0
  %597 = vmatpush1.bf16.msra.mxu0 0
  %598 = vmatprep.subr.bf16.mxu0 0
  %599 = vmatpush1.bf16.msra.mxu0 0
  %600 = vmatprep.subr.bf16.mxu0 0
  %601 = vmatpush1.bf16.msra.mxu0 0
  %602 = vmatprep.subr.bf16.mxu0 0
  %603 = vmatpush1.bf16.msra.mxu0 0
  %604 = vmatprep.subr.bf16.mxu0 0
  %605 = vmatpush1.bf16.msra.mxu0 0
  %606 = vmatprep.subr.bf16.mxu0 0
  %607 = vmatpush1.bf16.msra.mxu0 0
  %608 = vmatprep.subr.bf16.mxu0 0
  %609 = vmatpush1.bf16.msra.mxu0 0
  %610 = vmatprep.subr.bf16.mxu0 0
  %611 = vmatpush1.bf16.msra.mxu0 0
  %612 = vmatprep.mubr.bf16.mxu0 0
  %613 = vmatmul.mubr.bf16.gmra.mrb[0].mxu0 %v458
  %v614 = vpop.f32.mrb[0].mxu0
  %v615 = vadd.f32 %v575, %v614
  %v616 = vpop.f32.mrb[0].mxu0
  %v617 = vpop.f32.mrb[0].mxu0
  %v618 = vpop.f32.mrb[0].mxu0
  %619 = vdwg.mxu0
  %v620 = vmax.f32 %v615, 0.0
  %v621 = vpack.c.bf16 %v620, %v620
  %v622 = vld [vmem:[%s3] sm:$0xf]
  %v623 = vld [vmem:[%s3 + $0x4] sm:$0xf]
  %v624 = vld [vmem:[%s3 + $0x8] sm:$0xf]
  %v625 = vld [vmem:[%s3 + $0xc] sm:$0xf]
  %v626 = vld [vmem:[%s3 + $0x10] sm:$0xf]
  %v627 = vld [vmem:[%s3 + $0x14] sm:$0xf]
  %v628 = vld [vmem:[%s3 + $0x18] sm:$0xf]
  %v629 = vld [vmem:[%s3 + $0x1c] sm:$0xf]
  %v630 = vld [vmem:[%s3 + $0x20] sm:$0xf]
  %v631 = vld [vmem:[%s3 + $0x24] sm:$0xf]
  %v632 = vld [vmem:[%s3 + $0x28] sm:$0xf]
  %v633 = vld [vmem:[%s3 + $0x2c] sm:$0xf]
  %v634 = vld [vmem:[%s3 + $0x30] sm:$0xf]
  %v635 = vld [vmem:[%s3 + $0x34] sm:$0xf]
  %v636 = vld [vmem:[%s3 + $0x38] sm:$0xf]
  %v637 = vld [vmem:[%s3 + $0x3c] sm:$0xf]
  %v638 = vld [vmem:[%s4] sm:$0x1]
  %v640 = vlaneseq
  %v641 = vshrl.u32 %v640, 7
  %v642 = vsub.s32 0, %v641
  %v643 = vrot.slane %v638, %v642
  %v661 = vunpack.c.l.b16 %v622
  %v662 = vunpack.c.l.b16 %v623
  %v663 = vunpack.c.l.b16 %v624
  %v664 = vunpack.c.l.b16 %v625
  %v665 = vunpack.c.l.b16 %v626
  %v666 = vunpack.c.l.b16 %v627
  %v667 = vunpack.c.l.b16 %v628
  %v668 = vunpack.c.l.b16 %v629
  %v669 = vunpack.c.l.b16 %v630
  %v670 = vunpack.c.l.b16 %v631
  %v671 = vunpack.c.l.b16 %v632
  %v672 = vunpack.c.l.b16 %v633
  %v673 = vunpack.c.l.b16 %v634
  %v674 = vunpack.c.l.b16 %v635
  %v675 = vunpack.c.l.b16 %v636
  %v676 = vunpack.c.l.b16 %v637
  %v677 = vpack.c.b16 %v662, %v661
  %v678 = vpack.c.b16 %v664, %v663
  %v679 = vpack.c.b16 %v666, %v665
  %v680 = vpack.c.b16 %v668, %v667
  %v681 = vpack.c.b16 %v670, %v669
  %v682 = vpack.c.b16 %v672, %v671
  %v683 = vpack.c.b16 %v674, %v673
  %v684 = vpack.c.b16 %v676, %v675
  %693 = vmatprep.subr.bf16.mxu0 0
  %694 = vmatpush1.bf16.msra.mxu0 %v677
  %695 = vmatprep.subr.bf16.mxu0 0
  %696 = vmatpush1.bf16.msra.mxu0 %v678
  %697 = vmatprep.subr.bf16.mxu0 0
  %698 = vmatpush1.bf16.msra.mxu0 %v679
  %699 = vmatprep.subr.bf16.mxu0 0
  %700 = vmatpush1.bf16.msra.mxu0 %v680
  %701 = vmatprep.subr.bf16.mxu0 0
  %702 = vmatpush1.bf16.msra.mxu0 %v681
  %703 = vmatprep.subr.bf16.mxu0 0
  %704 = vmatpush1.bf16.msra.mxu0 %v682
  %705 = vmatprep.subr.bf16.mxu0 0
  %706 = vmatpush1.bf16.msra.mxu0 %v683
  %707 = vmatprep.subr.bf16.mxu0 0
  %708 = vmatpush1.bf16.msra.mxu0 %v684
  %709 = vmatprep.subr.bf16.mxu0 0
  %710 = vmatpush1.bf16.msra.mxu0 0
  %711 = vmatprep.subr.bf16.mxu0 0
  %712 = vmatpush1.bf16.msra.mxu0 0
  %713 = vmatprep.subr.bf16.mxu0 0
  %714 = vmatpush1.bf16.msra.mxu0 0
  %715 = vmatprep.subr.bf16.mxu0 0
  %716 = vmatpush1.bf16.msra.mxu0 0
  %717 = vmatprep.subr.bf16.mxu0 0
  %718 = vmatpush1.bf16.msra.mxu0 0
  %719 = vmatprep.subr.bf16.mxu0 0
  %720 = vmatpush1.bf16.msra.mxu0 0
  %721 = vmatprep.subr.bf16.mxu0 0
  %722 = vmatpush1.bf16.msra.mxu0 0
  %723 = vmatprep.subr.bf16.mxu0 0
  %724 = vmatpush1.bf16.msra.mxu0 0
  %725 = vmatprep.mubr.bf16.mxu0 0
  %726 = vmatmul.mubr.bf16.gmra.mrb[0].mxu0 %v621
  %v727 = vpop.f32.mrb[0].mxu0
  %v728 = vadd.f32 %v643, %v727
  %v729 = vpop.f32.mrb[0].mxu0
  %v730 = vpop.f32.mrb[0].mxu0
  %v731 = vpop.f32.mrb[0].mxu0
  %732 = vdwg.mxu0
  %vm733 = vcmask 23552
  %734 = vst.msk [vmem:[%s5] sm:$0xff] %vm733, %v728
  // Predicated region
  $region22: #{basic_conv_net_forward.5} parent=0 // pred_check
    _
  $region23: #{basic_conv_net_forward.5} parent=0 // pred_check_branch
    %736 = sbr.rel (0) target = $region25
  $region24: #{basic_conv_net_forward.5} parent=0 // pred_region
    _
  $region25: #{basic_conv_net_forward.5} parent=0 // pred_fallthru
    _
  // Predicated region
  $region26: #{basic_conv_net_forward.5} parent=0 // pred_check
    _
  $region27: #{basic_conv_net_forward.5} parent=0 // pred_check_branch
    %738 = sbr.rel (0) target = $region29
  $region28: #{basic_conv_net_forward.5} parent=0 // pred_region
    _
  $region29: #{basic_conv_net_forward.5} parent=0 // pred_fallthru
    _

</llo_original>
